<compile_context>
chip_gen: v6e
topology: v6e:2x2x1
jax: 0.10.0
libtpu: 0.0.40
codegen_flags: <defaults>
</compile_context>

<pallas_src>
import jax
import jax.numpy as jnp
from jax.experimental import pallas as pl
from jax.experimental.pallas import tpu as pltpu

H1 = 400          # logical fc1 width
H2 = 300          # logical fc2 width
H1_PAD = 512      # lane-dense padded fc1 width
H2_PAD = 384      # lane-dense padded fc2 width
OUT_PAD = 128     # lane-dense padded output width (column 0 holds Q)
BN_EPS = 1e-5


def critic_kernel(x_ref, a_ref, w1_ref, w2s_ref, w2a_ref, w3_ref, p_ref,
                  out_ref):
    x = x_ref[...]                               # (B, D_in)  bf16
    a = a_ref[...]                               # (B, D_act) bf16

    # Packed parameter slab (8, 512) f32: static ref slices are free.
    b1 = p_ref[0:1, :]                           # (1, 512)
    gamma = p_ref[1:2, :]                        # (1, 512)
    beta = p_ref[2:3, :]                         # (1, 512)
    b2 = p_ref[3:4, :H2_PAD]                     # (1, 384)
    b3 = p_ref[4:5, :OUT_PAD]                    # (1, 128) (b3 in col 0)

    # fc1 + ReLU   (W1 pre-transposed & zero-padded: (D_in, 512) bf16)
    h1 = jnp.dot(x, w1_ref[...], preferred_element_type=jnp.float32) + b1
    h1 = jnp.maximum(h1, 0.0)                    # (B, 512) f32

    # BatchNorm1d, training mode (batch mean, biased variance).
    # Single-pass statistics, then folded into one scale/shift pass.
    inv_b = jnp.float32(1.0 / h1.shape[0])
    s = jnp.sum(h1, axis=0, keepdims=True)             # (1, 512)
    ss = jnp.sum(h1 * h1, axis=0, keepdims=True)        # (1, 512)
    mean = s * inv_b
    var = jnp.maximum(ss * inv_b - mean * mean, 0.0)
    scale = jax.lax.rsqrt(var + BN_EPS) * gamma
    shift = beta - mean * scale
    h1n = h1 * scale + shift                     # (B, 512) f32

    # fc2 over concat([h1n, a]) expressed as split matmuls accumulated into
    # one f32 buffer, then ReLU.  W2s (512, 384), W2a (D_act, 384), bf16.
    h2 = (jnp.dot(h1n.astype(jnp.bfloat16), w2s_ref[...],
                  preferred_element_type=jnp.float32)
          + jnp.dot(a, w2a_ref[...], preferred_element_type=jnp.float32)
          + b2)
    h2 = jnp.maximum(h2, 0.0)                    # (B, 384) f32

    # fc3 as a tiny MXU matmul against w3 padded to (384, 128); column 0 of
    # the lane-dense (B, 128) output holds Q (caller slices).
    q = jnp.dot(h2.astype(jnp.bfloat16), w3_ref[...],
                preferred_element_type=jnp.float32) + b3
    out_ref[...] = q.astype(out_ref.dtype)       # (B, 128) f32


def critic_forward(x, a, params):
    B, d_in = x.shape
    d_act = a.shape[1]
    w1, w2s, w2a, w3, slab = params

    # Cast activations to bf16 host-side: halves input DMA, no in-kernel cast.
    xb = x.astype(jnp.bfloat16)
    ab = a.astype(jnp.bfloat16)

    flops = 2 * B * (d_in * H1_PAD + H1_PAD * H2_PAD
                     + d_act * H2_PAD + H2_PAD * OUT_PAD)
    bytes_accessed = (xb.size * 2 + ab.size * 2 + w1.size * 2 + w2s.size * 2
                      + w2a.size * 2 + w3.size * 2 + slab.size * 4
                      + B * OUT_PAD * 4)
    cost = pl.CostEstimate(flops=flops, transcendentals=H1_PAD,
                           bytes_accessed=bytes_accessed)

    vmem = pl.BlockSpec(memory_space=pltpu.MemorySpace.VMEM)
    q_full = pl.pallas_call(
        critic_kernel,
        out_shape=jax.ShapeDtypeStruct((B, OUT_PAD), jnp.float32),
        in_specs=[vmem] * 7,
        out_specs=vmem,
        cost_estimate=cost,
    )(xb, ab, w1, w2s, w2a, w3, slab)
    return q_full[:, :1]                         # (B, 1)


def init_params(key, d_in, d_act):
    """Parameter init mirroring the PyTorch module.  Matmul weights are
    pre-transposed, zero-padded to lane-dense widths, and stored bf16; the
    small f32 rows are packed into one (8, 512) slab."""
    ks = jax.random.split(key, 6)

    # fc1: fanin_init(size=(400, d_in)) -> bound = 1/sqrt(400)
    w1_bound = 1.0 / jnp.sqrt(jnp.float32(H1))
    w1 = jax.random.uniform(ks[0], (H1, d_in), jnp.float32, -w1_bound, w1_bound)
    w1_t = jnp.zeros((d_in, H1_PAD), jnp.float32).at[:, :H1].set(w1.T)
    w1_t = w1_t.astype(jnp.bfloat16)                                # (d_in, 512)
    b1_bound = 1.0 / jnp.sqrt(jnp.float32(d_in))                    # Linear default
    b1 = jax.random.uniform(ks[1], (H1,), jnp.float32, -b1_bound, b1_bound)

    # fc2: fanin_init(size=(300, 400+d_act)) -> bound = 1/sqrt(300)
    w2_bound = 1.0 / jnp.sqrt(jnp.float32(H2))
    w2 = jax.random.uniform(ks[2], (H2, H1 + d_act), jnp.float32,
                            -w2_bound, w2_bound)
    w2s_t = (jnp.zeros((H1_PAD, H2_PAD), jnp.float32)
             .at[:H1, :H2].set(w2[:, :H1].T).astype(jnp.bfloat16))  # (512, 384)
    w2a_t = (jnp.zeros((d_act, H2_PAD), jnp.float32)
             .at[:, :H2].set(w2[:, H1:].T).astype(jnp.bfloat16))    # (d_act, 384)
    b2_bound = 1.0 / jnp.sqrt(jnp.float32(H1 + d_act))
    b2 = jax.random.uniform(ks[3], (H2,), jnp.float32, -b2_bound, b2_bound)

    # fc3: weight uniform(-0.003, 0.003); stored as (384, 128) bf16 with the
    # real weights in column 0 (MXU path, lane-dense output).
    w3 = jax.random.uniform(ks[4], (H2,), jnp.float32, -0.003, 0.003)
    w3_mat = (jnp.zeros((H2_PAD, OUT_PAD), jnp.float32)
              .at[:H2, 0].set(w3).astype(jnp.bfloat16))
    b3_bound = 1.0 / jnp.sqrt(jnp.float32(H2))                      # Linear default
    b3 = jax.random.uniform(ks[5], (), jnp.float32, -b3_bound, b3_bound)

    # Packed (8, 512) f32 slab: row0=b1, row1=gamma, row2=beta, row3=b2,
    # row4[0]=b3, rest zero.  Padded b1/beta/b2 stay 0; padded gamma may be 1
    # (padded h1 columns are exactly 0, so BN there yields 0 regardless).
    slab = jnp.zeros((8, H1_PAD), jnp.float32)
    slab = slab.at[0, :H1].set(b1)
    slab = slab.at[1, :].set(1.0)        # gamma
    slab = slab.at[3, :H2].set(b2)
    slab = slab.at[4, 0].set(b3)

    return (w1_t, w2s_t, w2a_t, w3_mat, slab)


def critic_reference(x, a, params):
    """Pure-JAX reference with the same bf16-operand / f32-accumulate matmul
    semantics as the kernel (BN math in f32, two-pass variance)."""
    w1, w2s, w2a, w3, slab = params
    b1 = slab[0:1, :]
    gamma = slab[1:2, :]
    beta = slab[2:3, :]
    b2 = slab[3:4, :H2_PAD]
    b3 = slab[4, 0]
    xb = x.astype(jnp.bfloat16)
    ab = a.astype(jnp.bfloat16)
    h1 = jnp.maximum(
        jnp.dot(xb, w1, preferred_element_type=jnp.float32) + b1, 0.0)
    mean = jnp.mean(h1, axis=0, keepdims=True)
    var = jnp.mean((h1 - mean) ** 2, axis=0, keepdims=True)
    h1n = (h1 - mean) / jnp.sqrt(var + BN_EPS) * gamma + beta
    h2 = jnp.maximum(
        jnp.dot(h1n.astype(jnp.bfloat16), w2s, preferred_element_type=jnp.float32)
        + jnp.dot(ab, w2a, preferred_element_type=jnp.float32) + b2, 0.0)
    q = jnp.dot(h2.astype(jnp.bfloat16), w3,
                preferred_element_type=jnp.float32)[:, :1] + b3
    return q


if __name__ == "__main__":
    key = jax.random.PRNGKey(0)
    k_x, k_a, k_p = jax.random.split(key, 3)

    # B=256 fills the 256-row MXU on v6e/v7x (and v5e's 128-row MXU); still
    # tiny in absolute size, single grid point.
    B, D_IN, D_ACT = 256, 16, 4
    x = jax.random.normal(k_x, (B, D_IN), jnp.float32)
    a = jax.random.normal(k_a, (B, D_ACT), jnp.float32)
    params = init_params(k_p, D_IN, D_ACT)

    q = critic_forward(x, a, params)
    q = jax.block_until_ready(q)

    q_ref = critic_reference(x, a, params)
    assert q.shape == (B, 1)
    assert jnp.allclose(q, q_ref, atol=2e-3, rtol=2e-3), (
        float(jnp.max(jnp.abs(q - q_ref))))

    print("KERNEL_OK")
</pallas_src>

<mosaic_0001>
module attributes {stable_mosaic.version = 11 : i64} {
  func.func @critic_kernel(%arg0: memref<256x16xbf16, #tpu.memory_space<vmem>>, %arg1: memref<256x4xbf16, #tpu.memory_space<vmem>>, %arg2: memref<16x512xbf16, #tpu.memory_space<vmem>>, %arg3: memref<512x384xbf16, #tpu.memory_space<vmem>>, %arg4: memref<4x384xbf16, #tpu.memory_space<vmem>>, %arg5: memref<384x128xbf16, #tpu.memory_space<vmem>>, %arg6: memref<8x512xf32, #tpu.memory_space<vmem>>, %arg7: memref<256x128xf32, #tpu.memory_space<vmem>>) attributes {dimension_semantics = [], scalar_prefetch = 0 : i64, scratch_operands = 0 : i64, tpu.core_type = #tpu.core_type<tc>} {
    %c0 = arith.constant 0 : index
    %c0_0 = arith.constant 0 : index
    %0 = vector.load %arg0[%c0, %c0_0] : memref<256x16xbf16, #tpu.memory_space<vmem>>, vector<256x16xbf16>
    %c0_1 = arith.constant 0 : index
    %c0_2 = arith.constant 0 : index
    %1 = vector.load %arg1[%c0_1, %c0_2] : memref<256x4xbf16, #tpu.memory_space<vmem>>, vector<256x4xbf16>
    %c0_3 = arith.constant 0 : index
    %c0_4 = arith.constant 0 : index
    %2 = vector.load %arg6[%c0_3, %c0_4] : memref<8x512xf32, #tpu.memory_space<vmem>>, vector<1x512xf32>
    %c1 = arith.constant 1 : index
    %c0_5 = arith.constant 0 : index
    %3 = vector.load %arg6[%c1, %c0_5] : memref<8x512xf32, #tpu.memory_space<vmem>>, vector<1x512xf32>
    %c2 = arith.constant 2 : index
    %c0_6 = arith.constant 0 : index
    %4 = vector.load %arg6[%c2, %c0_6] : memref<8x512xf32, #tpu.memory_space<vmem>>, vector<1x512xf32>
    %c3 = arith.constant 3 : index
    %c0_7 = arith.constant 0 : index
    %5 = vector.load %arg6[%c3, %c0_7] : memref<8x512xf32, #tpu.memory_space<vmem>>, vector<1x384xf32>
    %c4 = arith.constant 4 : index
    %c0_8 = arith.constant 0 : index
    %6 = vector.load %arg6[%c4, %c0_8] : memref<8x512xf32, #tpu.memory_space<vmem>>, vector<1x128xf32>
    %c0_9 = arith.constant 0 : index
    %c0_10 = arith.constant 0 : index
    %7 = vector.load %arg2[%c0_9, %c0_10] : memref<16x512xbf16, #tpu.memory_space<vmem>>, vector<16x512xbf16>
    %cst = arith.constant dense<0.000000e+00> : vector<256x512xf32>
    %8 = tpu.matmul %0, %7, %cst {dimension_numbers = #tpu.dot_dimension_numbers<[1], [0], [0], [1], [0, 0, 1, 1], [], []>} : vector<256x16xbf16>, vector<16x512xbf16>, vector<256x512xf32> -> vector<256x512xf32>
    %9 = vector.broadcast %2 : vector<1x512xf32> to vector<256x512xf32>
    %10 = arith.addf %8, %9 : vector<256x512xf32>
    %cst_11 = arith.constant 0.000000e+00 : f32
    %11 = vector.broadcast %cst_11 : f32 to vector<256x512xf32>
    %12 = arith.maximumf %10, %11 : vector<256x512xf32>
    %cst_12 = arith.constant dense<0.000000e+00> : vector<512xf32>
    %13 = vector.multi_reduction <add>, %12, %cst_12 [0] : vector<256x512xf32> to vector<512xf32>
    %14 = vector.shape_cast %13 : vector<512xf32> to vector<1x512xf32>
    %15 = arith.mulf %12, %12 : vector<256x512xf32>
    %cst_13 = arith.constant dense<0.000000e+00> : vector<512xf32>
    %16 = vector.multi_reduction <add>, %15, %cst_13 [0] : vector<256x512xf32> to vector<512xf32>
    %17 = vector.shape_cast %16 : vector<512xf32> to vector<1x512xf32>
    %cst_14 = arith.constant 3.906250e-03 : f32
    %18 = vector.broadcast %cst_14 : f32 to vector<1x512xf32>
    %19 = arith.mulf %14, %18 : vector<1x512xf32>
    %cst_15 = arith.constant 3.906250e-03 : f32
    %20 = vector.broadcast %cst_15 : f32 to vector<1x512xf32>
    %21 = arith.mulf %17, %20 : vector<1x512xf32>
    %22 = arith.mulf %19, %19 : vector<1x512xf32>
    %23 = arith.subf %21, %22 : vector<1x512xf32>
    %cst_16 = arith.constant 0.000000e+00 : f32
    %24 = vector.broadcast %cst_16 : f32 to vector<1x512xf32>
    %25 = arith.maximumf %23, %24 : vector<1x512xf32>
    %cst_17 = arith.constant 9.99999974E-6 : f32
    %26 = vector.broadcast %cst_17 : f32 to vector<1x512xf32>
    %27 = arith.addf %25, %26 : vector<1x512xf32>
    %28 = math.rsqrt %27 : vector<1x512xf32>
    %29 = arith.mulf %28, %3 : vector<1x512xf32>
    %30 = arith.mulf %19, %29 : vector<1x512xf32>
    %31 = arith.subf %4, %30 : vector<1x512xf32>
    %32 = vector.broadcast %29 : vector<1x512xf32> to vector<256x512xf32>
    %33 = arith.mulf %12, %32 : vector<256x512xf32>
    %34 = vector.broadcast %31 : vector<1x512xf32> to vector<256x512xf32>
    %35 = arith.addf %33, %34 : vector<256x512xf32>
    %36 = arith.truncf %35 : vector<256x512xf32> to vector<256x512xbf16>
    %c0_18 = arith.constant 0 : index
    %c0_19 = arith.constant 0 : index
    %37 = vector.load %arg3[%c0_18, %c0_19] : memref<512x384xbf16, #tpu.memory_space<vmem>>, vector<512x384xbf16>
    %cst_20 = arith.constant dense<0.000000e+00> : vector<256x384xf32>
    %38 = tpu.matmul %36, %37, %cst_20 {dimension_numbers = #tpu.dot_dimension_numbers<[1], [0], [0], [1], [0, 0, 1, 1], [], []>} : vector<256x512xbf16>, vector<512x384xbf16>, vector<256x384xf32> -> vector<256x384xf32>
    %c0_21 = arith.constant 0 : index
    %c0_22 = arith.constant 0 : index
    %39 = vector.load %arg4[%c0_21, %c0_22] : memref<4x384xbf16, #tpu.memory_space<vmem>>, vector<4x384xbf16>
    %cst_23 = arith.constant dense<0.000000e+00> : vector<256x384xf32>
    %40 = tpu.matmul %1, %39, %cst_23 {dimension_numbers = #tpu.dot_dimension_numbers<[1], [0], [0], [1], [0, 0, 1, 1], [], []>} : vector<256x4xbf16>, vector<4x384xbf16>, vector<256x384xf32> -> vector<256x384xf32>
    %41 = arith.addf %38, %40 : vector<256x384xf32>
    %42 = vector.broadcast %5 : vector<1x384xf32> to vector<256x384xf32>
    %43 = arith.addf %41, %42 : vector<256x384xf32>
    %cst_24 = arith.constant 0.000000e+00 : f32
    %44 = vector.broadcast %cst_24 : f32 to vector<256x384xf32>
    %45 = arith.maximumf %43, %44 : vector<256x384xf32>
    %46 = arith.truncf %45 : vector<256x384xf32> to vector<256x384xbf16>
    %c0_25 = arith.constant 0 : index
    %c0_26 = arith.constant 0 : index
    %47 = vector.load %arg5[%c0_25, %c0_26] : memref<384x128xbf16, #tpu.memory_space<vmem>>, vector<384x128xbf16>
    %cst_27 = arith.constant dense<0.000000e+00> : vector<256x128xf32>
    %48 = tpu.matmul %46, %47, %cst_27 {dimension_numbers = #tpu.dot_dimension_numbers<[1], [0], [0], [1], [0, 0, 1, 1], [], []>} : vector<256x384xbf16>, vector<384x128xbf16>, vector<256x128xf32> -> vector<256x128xf32>
    %49 = vector.broadcast %6 : vector<1x128xf32> to vector<256x128xf32>
    %50 = arith.addf %48, %49 : vector<256x128xf32>
    %c0_28 = arith.constant 0 : index
    %c0_29 = arith.constant 0 : index
    %51 = vector.load %arg7[%c0_28, %c0_29] : memref<256x128xf32, #tpu.memory_space<vmem>>, vector<256x128xf32>
    tpu.vector_store %arg7[%c0_28, %c0_29], %50 {strides = array<i32>} : memref<256x128xf32, #tpu.memory_space<vmem>>, vector<256x128xf32>,
    return
  }
}

</mosaic_0001>

<llo_original>
// kernel: tpu_custom_call.1
$region0: #{tpu_custom_call.1}
  #allocation0 [shape = 'u32[]', space=smem, size = 0x4, offset = 0x4, fixed_abs, tag = 'smem constant byte address 0x4 - core index']
  #allocation1 [shape = 'u32[144,128]{1,0:T(1,128)}', space=vmem, size = 0x12000, scoped, tag = 'internal scratch']
  %s0 = inlined_call_operand.vmem [shape: bf16[256,16], index: 0, kind: input, shape index: {}]
  %s1 = inlined_call_operand.vmem [shape: bf16[256,4], index: 1, kind: input, shape index: {}]
  %s2 = inlined_call_operand.vmem [shape: bf16[16,512], index: 2, kind: input, shape index: {}]
  %s3 = inlined_call_operand.hbm [shape: bf16[512,384], index: 3, kind: input, shape index: {}]
  %s4 = inlined_call_operand.vmem [shape: bf16[4,384], index: 4, kind: input, shape index: {}]
  %s5 = inlined_call_operand.vmem [shape: bf16[384,128], index: 5, kind: input, shape index: {}]
  %s6 = inlined_call_operand.vmem [shape: f32[8,512], index: 6, kind: input, shape index: {}]
  %s7 = inlined_call_operand.hbm [shape: f32[256,128], index: 7, kind: output, shape index: {}]
  %s8 = sld [smem:[#allocation0]]
  $region42: #{tpu_custom_call.1} parent=0
    _
  %s10 = ssub.s32 1, %s8
  %s11 = scalar_select 0, %s10, %s8
  $region1: #{tpu_custom_call.1} parent=0
    #allocation2 [shape = 'u8[393216]{0}', space=vmem, size = 0x60000, scoped, tag = 'input window, operand 3, single buffered']
    #allocation3 [shape = 's32[1]{0}', space=sflag, size = 0x4, scoped, tag = 'scoped memory for tpu_custom_call.1']
    #allocation4 [shape = 's32[1]{0}', space=sflag, size = 0x4, scoped, tag = 'scoped memory for tpu_custom_call.1']
    #allocation5 [shape = 'u8[131072]{0}', space=vmem, size = 0x20000, scoped, tag = 'output window, operand 0, single buffered']
    %12 = vsyncpa [#allocation3], 0
    %13 = vsyncpa [#allocation4], 0
    // Predicated region
    $region2: #{tpu_custom_call.1} parent=1 // pred_check
      _
    $region3: #{tpu_custom_call.1} parent=1 // pred_check_branch
      %15 = sbr.rel (0) target = $region5
    $region4: #{tpu_custom_call.1} parent=1 // pred_region
      _
    $region5: #{tpu_custom_call.1} parent=1 // pred_fallthru
      _
    // Predicated region
    $region6: #{tpu_custom_call.1} parent=1 // pred_check
      _
    $region7: #{tpu_custom_call.1} parent=1 // pred_check_branch
      %17 = sbr.rel (0) target = $region9
    $region8: #{tpu_custom_call.1} parent=1 // pred_region
      _
    $region9: #{tpu_custom_call.1} parent=1 // pred_fallthru
      _
    // Predicated region
    $region10: #{tpu_custom_call.1} parent=1 // pred_check
      _
    $region11: #{tpu_custom_call.1} parent=1 // pred_check_branch
      %19 = sbr.rel (0) target = $region13
    $region12: #{tpu_custom_call.1} parent=1 // pred_region
      _
    $region13: #{tpu_custom_call.1} parent=1 // pred_fallthru
      _
    // Predicated region
    $region14: #{tpu_custom_call.1} parent=1 // pred_check
      _
    $region15: #{tpu_custom_call.1} parent=1 // pred_check_branch
      %21 = sbr.rel (0) target = $region17
    $region16: #{tpu_custom_call.1} parent=1 // pred_region
      %s23 = ssub.s32 12288, 12288
      %24 = vsyncadd [#allocation3], %s23
      %s25 = sshll.u32 [#allocation2], 4
      %s26 = int_to_ptr.vmem [resolvable:$true] %s25
      %31 = dma.hbm_to_vmem [thread:$0]  %s3, 12288, %s26, [#allocation3], 192, 192, 12
    $region17: #{tpu_custom_call.1} parent=1 // pred_fallthru
      _
    // Predicated region
    $region18: #{tpu_custom_call.1} parent=1 // pred_check
      _
    $region19: #{tpu_custom_call.1} parent=1 // pred_check_branch
      %33 = sbr.rel (0) target = $region21
    $region20: #{tpu_custom_call.1} parent=1 // pred_region
      _
    $region21: #{tpu_custom_call.1} parent=1 // pred_fallthru
      _
    // Predicated region
    $region22: #{tpu_custom_call.1} parent=1 // pred_check
      _
    $region23: #{tpu_custom_call.1} parent=1 // pred_check_branch
      %35 = sbr.rel (0) target = $region25
    $region24: #{tpu_custom_call.1} parent=1 // pred_region
      _
    $region25: #{tpu_custom_call.1} parent=1 // pred_fallthru
      _
    // Predicated region
    $region26: #{tpu_custom_call.1} parent=1 // pred_check
      _
    $region27: #{tpu_custom_call.1} parent=1 // pred_check_branch
      %37 = sbr.rel (0) target = $region29
    $region28: #{tpu_custom_call.1} parent=1 // pred_region
      _
    $region29: #{tpu_custom_call.1} parent=1 // pred_fallthru
      _
    // Predicated region
    $region30: #{tpu_custom_call.1} parent=1 // pred_check
      _
    $region31: #{tpu_custom_call.1} parent=1 // pred_check_branch
      %39 = sbr.rel (0) target = $region33
    $region32: #{tpu_custom_call.1} parent=1 // pred_region
      %40 = dma.done [#allocation3], 12288
    $region33: #{tpu_custom_call.1} parent=1 // pred_fallthru
      _
    %v42 = vld [vmem:[%s0] sm:$0xf]
    %v43 = vld [vmem:[%s0 + $0x4] sm:$0xf]
    %v44 = vld [vmem:[%s0 + $0x8] sm:$0xf]
    %v45 = vld [vmem:[%s0 + $0xc] sm:$0xf]
    %v46 = vld [vmem:[%s0 + $0x10] sm:$0xf]
    %v47 = vld [vmem:[%s0 + $0x14] sm:$0xf]
    %v48 = vld [vmem:[%s0 + $0x18] sm:$0xf]
    %v49 = vld [vmem:[%s0 + $0x1c] sm:$0xf]
    %v50 = vld [vmem:[%s0 + $0x20] sm:$0xf]
    %v51 = vld [vmem:[%s0 + $0x24] sm:$0xf]
    %v52 = vld [vmem:[%s0 + $0x28] sm:$0xf]
    %v53 = vld [vmem:[%s0 + $0x2c] sm:$0xf]
    %v54 = vld [vmem:[%s0 + $0x30] sm:$0xf]
    %v55 = vld [vmem:[%s0 + $0x34] sm:$0xf]
    %v56 = vld [vmem:[%s0 + $0x38] sm:$0xf]
    %v57 = vld [vmem:[%s0 + $0x3c] sm:$0xf]
    %v58 = vld [vmem:[%s0 + $0x40] sm:$0xf]
    %v59 = vld [vmem:[%s0 + $0x44] sm:$0xf]
    %v60 = vld [vmem:[%s0 + $0x48] sm:$0xf]
    %v61 = vld [vmem:[%s0 + $0x4c] sm:$0xf]
    %v62 = vld [vmem:[%s0 + $0x50] sm:$0xf]
    %v63 = vld [vmem:[%s0 + $0x54] sm:$0xf]
    %v64 = vld [vmem:[%s0 + $0x58] sm:$0xf]
    %v65 = vld [vmem:[%s0 + $0x5c] sm:$0xf]
    %v66 = vld [vmem:[%s0 + $0x60] sm:$0xf]
    %v67 = vld [vmem:[%s0 + $0x64] sm:$0xf]
    %v68 = vld [vmem:[%s0 + $0x68] sm:$0xf]
    %v69 = vld [vmem:[%s0 + $0x6c] sm:$0xf]
    %v70 = vld [vmem:[%s0 + $0x70] sm:$0xf]
    %v71 = vld [vmem:[%s0 + $0x74] sm:$0xf]
    %v72 = vld [vmem:[%s0 + $0x78] sm:$0xf]
    %v73 = vld [vmem:[%s0 + $0x7c] sm:$0xf]
    %v74 = vld [vmem:[%s1] sm:$0xf]
    %v75 = vld [vmem:[%s1 + $0x4] sm:$0xf]
    %v76 = vld [vmem:[%s1 + $0x8] sm:$0xf]
    %v77 = vld [vmem:[%s1 + $0xc] sm:$0xf]
    %v78 = vld [vmem:[%s1 + $0x10] sm:$0xf]
    %v79 = vld [vmem:[%s1 + $0x14] sm:$0xf]
    %v80 = vld [vmem:[%s1 + $0x18] sm:$0xf]
    %v81 = vld [vmem:[%s1 + $0x1c] sm:$0xf]
    %v82 = vld [vmem:[%s1 + $0x20] sm:$0xf]
    %v83 = vld [vmem:[%s1 + $0x24] sm:$0xf]
    %v84 = vld [vmem:[%s1 + $0x28] sm:$0xf]
    %v85 = vld [vmem:[%s1 + $0x2c] sm:$0xf]
    %v86 = vld [vmem:[%s1 + $0x30] sm:$0xf]
    %v87 = vld [vmem:[%s1 + $0x34] sm:$0xf]
    %v88 = vld [vmem:[%s1 + $0x38] sm:$0xf]
    %v89 = vld [vmem:[%s1 + $0x3c] sm:$0xf]
    %v90 = vld [vmem:[%s1 + $0x40] sm:$0xf]
    %v91 = vld [vmem:[%s1 + $0x44] sm:$0xf]
    %v92 = vld [vmem:[%s1 + $0x48] sm:$0xf]
    %v93 = vld [vmem:[%s1 + $0x4c] sm:$0xf]
    %v94 = vld [vmem:[%s1 + $0x50] sm:$0xf]
    %v95 = vld [vmem:[%s1 + $0x54] sm:$0xf]
    %v96 = vld [vmem:[%s1 + $0x58] sm:$0xf]
    %v97 = vld [vmem:[%s1 + $0x5c] sm:$0xf]
    %v98 = vld [vmem:[%s1 + $0x60] sm:$0xf]
    %v99 = vld [vmem:[%s1 + $0x64] sm:$0xf]
    %v100 = vld [vmem:[%s1 + $0x68] sm:$0xf]
    %v101 = vld [vmem:[%s1 + $0x6c] sm:$0xf]
    %v102 = vld [vmem:[%s1 + $0x70] sm:$0xf]
    %v103 = vld [vmem:[%s1 + $0x74] sm:$0xf]
    %v104 = vld [vmem:[%s1 + $0x78] sm:$0xf]
    %v105 = vld [vmem:[%s1 + $0x7c] sm:$0xf]
    %v106 = vld [vmem:[%s6] ss:$8 sm:$0xf]
    %s107 = scalar_lea.vmem %s6, 1
    %v108 = vld [vmem:[%s107] ss:$8 sm:$0xf]
    %s109 = scalar_lea.vmem %s6, 2
    %v110 = vld [vmem:[%s109] ss:$8 sm:$0xf]
    %s111 = scalar_lea.vmem %s6, 3
    %v112 = vld [vmem:[%s111] ss:$8 sm:$0x7]
    %v113 = vld [vmem:[%s6 + $0x4] ss:$0 sm:$0xff]
    %v114 = vld [vmem:[%s2] sm:$0xff]
    %v115 = vld [vmem:[%s2 + $0x8] sm:$0xff]
    %v116 = vld [vmem:[%s2 + $0x10] sm:$0xff]
    %v117 = vld [vmem:[%s2 + $0x18] sm:$0xff]
    %v119 = vlaneseq
    %v120 = vshrl.u32 %v119, 7
    %v121 = vsub.s32 0, %v120
    %v122 = vrot.slane %v106, %v121
    %v123 = vlaneseq
    %v124 = vshrl.u32 %v123, 7
    %v125 = vsub.s32 1, %v124
    %v126 = vrot.slane %v106, %v125
    %v127 = vlaneseq
    %v128 = vshrl.u32 %v127, 7
    %v129 = vsub.s32 2, %v128
    %v130 = vrot.slane %v106, %v129
    %v131 = vlaneseq
    %v132 = vshrl.u32 %v131, 7
    %v133 = vsub.s32 3, %v132
    %v134 = vrot.slane %v106, %v133
    %v171 = vunpack.c.l.b16 %v42
    %v172 = vunpack.c.l.b16 %v43
    %v173 = vunpack.c.l.b16 %v44
    %v174 = vunpack.c.l.b16 %v45
    %v175 = vunpack.c.l.b16 %v46
    %v176 = vunpack.c.l.b16 %v47
    %v177 = vunpack.c.l.b16 %v48
    %v178 = vunpack.c.l.b16 %v49
    %v179 = vunpack.c.l.b16 %v50
    %v180 = vunpack.c.l.b16 %v51
    %v181 = vunpack.c.l.b16 %v52
    %v182 = vunpack.c.l.b16 %v53
    %v183 = vunpack.c.l.b16 %v54
    %v184 = vunpack.c.l.b16 %v55
    %v185 = vunpack.c.l.b16 %v56
    %v186 = vunpack.c.l.b16 %v57
    %v187 = vunpack.c.l.b16 %v58
    %v188 = vunpack.c.l.b16 %v59
    %v189 = vunpack.c.l.b16 %v60
    %v190 = vunpack.c.l.b16 %v61
    %v191 = vunpack.c.l.b16 %v62
    %v192 = vunpack.c.l.b16 %v63
    %v193 = vunpack.c.l.b16 %v64
    %v194 = vunpack.c.l.b16 %v65
    %v195 = vunpack.c.l.b16 %v66
    %v196 = vunpack.c.l.b16 %v67
    %v197 = vunpack.c.l.b16 %v68
    %v198 = vunpack.c.l.b16 %v69
    %v199 = vunpack.c.l.b16 %v70
    %v200 = vunpack.c.l.b16 %v71
    %v201 = vunpack.c.l.b16 %v72
    %v202 = vunpack.c.l.b16 %v73
    %v203 = vpack.c.b16 %v172, %v171
    %v204 = vpack.c.b16 %v174, %v173
    %v205 = vpack.c.b16 %v176, %v175
    %v206 = vpack.c.b16 %v178, %v177
    %v207 = vpack.c.b16 %v180, %v179
    %v208 = vpack.c.b16 %v182, %v181
    %v209 = vpack.c.b16 %v184, %v183
    %v210 = vpack.c.b16 %v186, %v185
    %v211 = vpack.c.b16 %v188, %v187
    %v212 = vpack.c.b16 %v190, %v189
    %v213 = vpack.c.b16 %v192, %v191
    %v214 = vpack.c.b16 %v194, %v193
    %v215 = vpack.c.b16 %v196, %v195
    %v216 = vpack.c.b16 %v198, %v197
    %v217 = vpack.c.b16 %v200, %v199
    %v218 = vpack.c.b16 %v202, %v201
    %v223 = vunpack.c.l.b16 %v114
    %v224 = vunpack.c.h.b16 %v114
    %v225 = vunpack.c.l.b16 %v115
    %v226 = vunpack.c.h.b16 %v115
    %v227 = vunpack.c.l.b16 %v116
    %v228 = vunpack.c.h.b16 %v116
    %v229 = vunpack.c.l.b16 %v117
    %v230 = vunpack.c.h.b16 %v117
    %v231 = vpack.c.b16 %v227, %v223
    %v232 = vpack.c.b16 %v228, %v224
    %v233 = vpack.c.b16 %v229, %v225
    %v234 = vpack.c.b16 %v230, %v226
    %vm239 = vcmask 130048
    %v241 = vsel %vm239, %v203, 0
    %v244 = vsel %vm239, %v204, 0
    %v247 = vsel %vm239, %v205, 0
    %v250 = vsel %vm239, %v206, 0
    %v253 = vsel %vm239, %v207, 0
    %v256 = vsel %vm239, %v208, 0
    %v259 = vsel %vm239, %v209, 0
    %v262 = vsel %vm239, %v210, 0
    %v265 = vsel %vm239, %v211, 0
    %v268 = vsel %vm239, %v212, 0
    %v271 = vsel %vm239, %v213, 0
    %v274 = vsel %vm239, %v214, 0
    %v277 = vsel %vm239, %v215, 0
    %v280 = vsel %vm239, %v216, 0
    %v283 = vsel %vm239, %v217, 0
    %v286 = vsel %vm239, %v218, 0
    %288 = vmatprep.subr.bf16.mxu0 0
    %289 = vmatpush1.bf16.msra.mxu0 0
    %290 = vmatprep.subr.bf16.mxu0 0
    %291 = vmatpush1.bf16.msra.mxu0 0
    %292 = vmatprep.subr.bf16.mxu0 0
    %293 = vmatpush1.bf16.msra.mxu0 0
    %294 = vmatprep.subr.bf16.mxu0 0
    %295 = vmatpush1.bf16.msra.mxu0 0
    %296 = vmatprep.subr.bf16.mxu0 0
    %297 = vmatpush1.bf16.msra.mxu0 0
    %298 = vmatprep.subr.bf16.mxu0 0
    %299 = vmatpush1.bf16.msra.mxu0 0
    %300 = vmatprep.subr.bf16.mxu0 0
    %301 = vmatpush1.bf16.msra.mxu0 0
    %302 = vmatprep.subr.bf16.mxu0 %v232
    %303 = vmatpush1.bf16.msra.mxu0 %v231
    %304 = vmatprep.subr.bf16.mxu0 0
    %305 = vmatpush2.bf16.msra.mxu0 0
    %306 = vmatprep.subr.bf16.mxu0 0
    %307 = vmatpush2.bf16.msra.mxu0 0
    %308 = vmatprep.subr.bf16.mxu0 0
    %309 = vmatpush2.bf16.msra.mxu0 0
    %310 = vmatprep.subr.bf16.mxu0 0
    %311 = vmatpush2.bf16.msra.mxu0 0
    %312 = vmatprep.subr.bf16.mxu0 0
    %313 = vmatpush2.bf16.msra.mxu0 0
    %314 = vmatprep.subr.bf16.mxu0 0
    %315 = vmatpush2.bf16.msra.mxu0 0
    %316 = vmatprep.subr.bf16.mxu0 0
    %317 = vmatpush2.bf16.msra.mxu0 0
    %318 = vmatprep.subr.bf16.mxu0 0
    %319 = vmatpush2.bf16.msra.mxu0 0
    %320 = vmatprep.mubr.bf16.mxu0 0
    %321 = vmatmul.mubr.bf16.gmra.mxu0 %v241
    %v322 = vpop.f32.mrf.mxu0
    %v323 = vadd.f32 %v122, %v322
    %v324 = vpop.f32.mrf.mxu0
    %v325 = vadd.f32 %v126, %v324
    %v326 = vpop.f32.mrf.mxu0
    %v327 = vadd.f32 %v122, %v326
    %v328 = vpop.f32.mrf.mxu0
    %v329 = vadd.f32 %v126, %v328
    %330 = vmatprep.mubr.bf16.mxu0 0
    %331 = vmatmul.mubr.bf16.gmra.mxu0 %v244
    %v332 = vpop.f32.mrf.mxu0
    %v333 = vadd.f32 %v122, %v332
    %v334 = vpop.f32.mrf.mxu0
    %v335 = vadd.f32 %v126, %v334
    %v336 = vpop.f32.mrf.mxu0
    %v337 = vadd.f32 %v122, %v336
    %v338 = vpop.f32.mrf.mxu0
    %v339 = vadd.f32 %v126, %v338
    %340 = vmatprep.mubr.bf16.mxu0 0
    %341 = vmatmul.mubr.bf16.gmra.mxu0 %v247
    %v342 = vpop.f32.mrf.mxu0
    %v343 = vadd.f32 %v122, %v342
    %v344 = vpop.f32.mrf.mxu0
    %v345 = vadd.f32 %v126, %v344
    %v346 = vpop.f32.mrf.mxu0
    %v347 = vadd.f32 %v122, %v346
    %v348 = vpop.f32.mrf.mxu0
    %v349 = vadd.f32 %v126, %v348
    %350 = vmatprep.mubr.bf16.mxu0 0
    %351 = vmatmul.mubr.bf16.gmra.mxu0 %v250
    %v352 = vpop.f32.mrf.mxu0
    %v353 = vadd.f32 %v122, %v352
    %v354 = vpop.f32.mrf.mxu0
    %v355 = vadd.f32 %v126, %v354
    %v356 = vpop.f32.mrf.mxu0
    %v357 = vadd.f32 %v122, %v356
    %v358 = vpop.f32.mrf.mxu0
    %v359 = vadd.f32 %v126, %v358
    %360 = vmatprep.mubr.bf16.mxu0 0
    %361 = vmatmul.mubr.bf16.gmra.mxu0 %v253
    %v362 = vpop.f32.mrf.mxu0
    %v363 = vadd.f32 %v122, %v362
    %v364 = vpop.f32.mrf.mxu0
    %v365 = vadd.f32 %v126, %v364
    %v366 = vpop.f32.mrf.mxu0
    %v367 = vadd.f32 %v122, %v366
    %v368 = vpop.f32.mrf.mxu0
    %v369 = vadd.f32 %v126, %v368
    %370 = vmatprep.mubr.bf16.mxu0 0
    %371 = vmatmul.mubr.bf16.gmra.mxu0 %v256
    %v372 = vpop.f32.mrf.mxu0
    %v373 = vadd.f32 %v122, %v372
    %v374 = vpop.f32.mrf.mxu0
    %v375 = vadd.f32 %v126, %v374
    %v376 = vpop.f32.mrf.mxu0
    %v377 = vadd.f32 %v122, %v376
    %v378 = vpop.f32.mrf.mxu0
    %v379 = vadd.f32 %v126, %v378
    %380 = vmatprep.mubr.bf16.mxu0 0
    %381 = vmatmul.mubr.bf16.gmra.mxu0 %v259
    %v382 = vpop.f32.mrf.mxu0
    %v383 = vadd.f32 %v122, %v382
    %v384 = vpop.f32.mrf.mxu0
    %v385 = vadd.f32 %v126, %v384
    %v386 = vpop.f32.mrf.mxu0
    %v387 = vadd.f32 %v122, %v386
    %v388 = vpop.f32.mrf.mxu0
    %v389 = vadd.f32 %v126, %v388
    %390 = vmatprep.mubr.bf16.mxu0 0
    %391 = vmatmul.mubr.bf16.gmra.mxu0 %v262
    %v392 = vpop.f32.mrf.mxu0
    %v393 = vadd.f32 %v122, %v392
    %v394 = vpop.f32.mrf.mxu0
    %v395 = vadd.f32 %v126, %v394
    %v396 = vpop.f32.mrf.mxu0
    %v397 = vadd.f32 %v122, %v396
    %v398 = vpop.f32.mrf.mxu0
    %v399 = vadd.f32 %v126, %v398
    %400 = vmatprep.mubr.bf16.mxu0 0
    %401 = vmatmul.mubr.bf16.gmra.mxu0 %v265
    %v402 = vpop.f32.mrf.mxu0
    %v403 = vadd.f32 %v122, %v402
    %v404 = vpop.f32.mrf.mxu0
    %v405 = vadd.f32 %v126, %v404
    %v406 = vpop.f32.mrf.mxu0
    %v407 = vadd.f32 %v122, %v406
    %v408 = vpop.f32.mrf.mxu0
    %v409 = vadd.f32 %v126, %v408
    %410 = vmatprep.mubr.bf16.mxu0 0
    %411 = vmatmul.mubr.bf16.gmra.mxu0 %v268
    %v412 = vpop.f32.mrf.mxu0
    %v413 = vadd.f32 %v122, %v412
    %v414 = vpop.f32.mrf.mxu0
    %v415 = vadd.f32 %v126, %v414
    %v416 = vpop.f32.mrf.mxu0
    %v417 = vadd.f32 %v122, %v416
    %v418 = vpop.f32.mrf.mxu0
    %v419 = vadd.f32 %v126, %v418
    %420 = vmatprep.mubr.bf16.mxu0 0
    %421 = vmatmul.mubr.bf16.gmra.mxu0 %v271
    %v422 = vpop.f32.mrf.mxu0
    %v423 = vadd.f32 %v122, %v422
    %v424 = vpop.f32.mrf.mxu0
    %v425 = vadd.f32 %v126, %v424
    %v426 = vpop.f32.mrf.mxu0
    %v427 = vadd.f32 %v122, %v426
    %v428 = vpop.f32.mrf.mxu0
    %v429 = vadd.f32 %v126, %v428
    %430 = vmatprep.mubr.bf16.mxu0 0
    %431 = vmatmul.mubr.bf16.gmra.mxu0 %v274
    %v432 = vpop.f32.mrf.mxu0
    %v433 = vadd.f32 %v122, %v432
    %v434 = vpop.f32.mrf.mxu0
    %v435 = vadd.f32 %v126, %v434
    %v436 = vpop.f32.mrf.mxu0
    %v437 = vadd.f32 %v122, %v436
    %v438 = vpop.f32.mrf.mxu0
    %v439 = vadd.f32 %v126, %v438
    %440 = vmatprep.mubr.bf16.mxu0 0
    %441 = vmatmul.mubr.bf16.gmra.mxu0 %v277
    %v442 = vpop.f32.mrf.mxu0
    %v443 = vadd.f32 %v122, %v442
    %v444 = vpop.f32.mrf.mxu0
    %v445 = vadd.f32 %v126, %v444
    %v446 = vpop.f32.mrf.mxu0
    %v447 = vadd.f32 %v122, %v446
    %v448 = vpop.f32.mrf.mxu0
    %v449 = vadd.f32 %v126, %v448
    %450 = vmatprep.mubr.bf16.mxu0 0
    %451 = vmatmul.mubr.bf16.gmra.mxu0 %v280
    %v452 = vpop.f32.mrf.mxu0
    %v453 = vadd.f32 %v122, %v452
    %v454 = vpop.f32.mrf.mxu0
    %v455 = vadd.f32 %v126, %v454
    %v456 = vpop.f32.mrf.mxu0
    %v457 = vadd.f32 %v122, %v456
    %v458 = vpop.f32.mrf.mxu0
    %v459 = vadd.f32 %v126, %v458
    %460 = vmatprep.mubr.bf16.mxu0 0
    %461 = vmatmul.mubr.bf16.gmra.mxu0 %v283
    %v462 = vpop.f32.mrf.mxu0
    %v463 = vadd.f32 %v122, %v462
    %v464 = vpop.f32.mrf.mxu0
    %v465 = vadd.f32 %v126, %v464
    %v466 = vpop.f32.mrf.mxu0
    %v467 = vadd.f32 %v122, %v466
    %v468 = vpop.f32.mrf.mxu0
    %v469 = vadd.f32 %v126, %v468
    %470 = vmatprep.mubr.bf16.mxu0 0
    %471 = vmatmul.mubr.bf16.gmra.mxu0 %v286
    %v472 = vpop.f32.mrf.mxu0
    %v473 = vadd.f32 %v122, %v472
    %v474 = vpop.f32.mrf.mxu0
    %v475 = vadd.f32 %v126, %v474
    %v476 = vpop.f32.mrf.mxu0
    %v477 = vadd.f32 %v122, %v476
    %v478 = vpop.f32.mrf.mxu0
    %v479 = vadd.f32 %v126, %v478
    %480 = vdwg.mxu0
    %481 = vmatprep.subr.bf16.mxu0 0
    %482 = vmatpush1.bf16.msra.mxu0 0
    %483 = vmatprep.subr.bf16.mxu0 0
    %484 = vmatpush1.bf16.msra.mxu0 0
    %485 = vmatprep.subr.bf16.mxu0 0
    %486 = vmatpush1.bf16.msra.mxu0 0
    %487 = vmatprep.subr.bf16.mxu0 0
    %488 = vmatpush1.bf16.msra.mxu0 0
    %489 = vmatprep.subr.bf16.mxu0 0
    %490 = vmatpush1.bf16.msra.mxu0 0
    %491 = vmatprep.subr.bf16.mxu0 0
    %492 = vmatpush1.bf16.msra.mxu0 0
    %493 = vmatprep.subr.bf16.mxu0 0
    %494 = vmatpush1.bf16.msra.mxu0 0
    %495 = vmatprep.subr.bf16.mxu0 %v234
    %496 = vmatpush1.bf16.msra.mxu0 %v233
    %497 = vmatprep.subr.bf16.mxu0 0
    %498 = vmatpush2.bf16.msra.mxu0 0
    %499 = vmatprep.subr.bf16.mxu0 0
    %500 = vmatpush2.bf16.msra.mxu0 0
    %501 = vmatprep.subr.bf16.mxu0 0
    %502 = vmatpush2.bf16.msra.mxu0 0
    %503 = vmatprep.subr.bf16.mxu0 0
    %504 = vmatpush2.bf16.msra.mxu0 0
    %505 = vmatprep.subr.bf16.mxu0 0
    %506 = vmatpush2.bf16.msra.mxu0 0
    %507 = vmatprep.subr.bf16.mxu0 0
    %508 = vmatpush2.bf16.msra.mxu0 0
    %509 = vmatprep.subr.bf16.mxu0 0
    %510 = vmatpush2.bf16.msra.mxu0 0
    %511 = vmatprep.subr.bf16.mxu0 0
    %512 = vmatpush2.bf16.msra.mxu0 0
    %513 = vmatprep.mubr.bf16.mxu0 0
    %514 = vmatmul.mubr.bf16.gmra.mxu0 %v241
    %v515 = vpop.f32.mrf.mxu0
    %v516 = vadd.f32 %v130, %v515
    %v517 = vpop.f32.mrf.mxu0
    %v518 = vadd.f32 %v134, %v517
    %v519 = vpop.f32.mrf.mxu0
    %v520 = vadd.f32 %v130, %v519
    %v521 = vpop.f32.mrf.mxu0
    %v522 = vadd.f32 %v134, %v521
    %523 = vmatprep.mubr.bf16.mxu0 0
    %524 = vmatmul.mubr.bf16.gmra.mxu0 %v244
    %v525 = vpop.f32.mrf.mxu0
    %v526 = vadd.f32 %v130, %v525
    %v527 = vpop.f32.mrf.mxu0
    %v528 = vadd.f32 %v134, %v527
    %v529 = vpop.f32.mrf.mxu0
    %v530 = vadd.f32 %v130, %v529
    %v531 = vpop.f32.mrf.mxu0
    %v532 = vadd.f32 %v134, %v531
    %533 = vmatprep.mubr.bf16.mxu0 0
    %534 = vmatmul.mubr.bf16.gmra.mxu0 %v247
    %v535 = vpop.f32.mrf.mxu0
    %v536 = vadd.f32 %v130, %v535
    %v537 = vpop.f32.mrf.mxu0
    %v538 = vadd.f32 %v134, %v537
    %v539 = vpop.f32.mrf.mxu0
    %v540 = vadd.f32 %v130, %v539
    %v541 = vpop.f32.mrf.mxu0
    %v542 = vadd.f32 %v134, %v541
    %543 = vmatprep.mubr.bf16.mxu0 0
    %544 = vmatmul.mubr.bf16.gmra.mxu0 %v250
    %v545 = vpop.f32.mrf.mxu0
    %v546 = vadd.f32 %v130, %v545
    %v547 = vpop.f32.mrf.mxu0
    %v548 = vadd.f32 %v134, %v547
    %v549 = vpop.f32.mrf.mxu0
    %v550 = vadd.f32 %v130, %v549
    %v551 = vpop.f32.mrf.mxu0
    %v552 = vadd.f32 %v134, %v551
    %553 = vmatprep.mubr.bf16.mxu0 0
    %554 = vmatmul.mubr.bf16.gmra.mxu0 %v253
    %v555 = vpop.f32.mrf.mxu0
    %v556 = vadd.f32 %v130, %v555
    %v557 = vpop.f32.mrf.mxu0
    %v558 = vadd.f32 %v134, %v557
    %v559 = vpop.f32.mrf.mxu0
    %v560 = vadd.f32 %v130, %v559
    %v561 = vpop.f32.mrf.mxu0
    %v562 = vadd.f32 %v134, %v561
    %563 = vmatprep.mubr.bf16.mxu0 0
    %564 = vmatmul.mubr.bf16.gmra.mxu0 %v256
    %v565 = vpop.f32.mrf.mxu0
    %v566 = vadd.f32 %v130, %v565
    %v567 = vpop.f32.mrf.mxu0
    %v568 = vadd.f32 %v134, %v567
    %v569 = vpop.f32.mrf.mxu0
    %v570 = vadd.f32 %v130, %v569
    %v571 = vpop.f32.mrf.mxu0
    %v572 = vadd.f32 %v134, %v571
    %573 = vmatprep.mubr.bf16.mxu0 0
    %574 = vmatmul.mubr.bf16.gmra.mxu0 %v259
    %v575 = vpop.f32.mrf.mxu0
    %v576 = vadd.f32 %v130, %v575
    %v577 = vpop.f32.mrf.mxu0
    %v578 = vadd.f32 %v134, %v577
    %v579 = vpop.f32.mrf.mxu0
    %v580 = vadd.f32 %v130, %v579
    %v581 = vpop.f32.mrf.mxu0
    %v582 = vadd.f32 %v134, %v581
    %583 = vmatprep.mubr.bf16.mxu0 0
    %584 = vmatmul.mubr.bf16.gmra.mxu0 %v262
    %v585 = vpop.f32.mrf.mxu0
    %v586 = vadd.f32 %v130, %v585
    %v587 = vpop.f32.mrf.mxu0
    %v588 = vadd.f32 %v134, %v587
    %v589 = vpop.f32.mrf.mxu0
    %v590 = vadd.f32 %v130, %v589
    %v591 = vpop.f32.mrf.mxu0
    %v592 = vadd.f32 %v134, %v591
    %593 = vmatprep.mubr.bf16.mxu0 0
    %594 = vmatmul.mubr.bf16.gmra.mxu0 %v265
    %v595 = vpop.f32.mrf.mxu0
    %v596 = vadd.f32 %v130, %v595
    %v597 = vpop.f32.mrf.mxu0
    %v598 = vadd.f32 %v134, %v597
    %v599 = vpop.f32.mrf.mxu0
    %v600 = vadd.f32 %v130, %v599
    %v601 = vpop.f32.mrf.mxu0
    %v602 = vadd.f32 %v134, %v601
    %603 = vmatprep.mubr.bf16.mxu0 0
    %604 = vmatmul.mubr.bf16.gmra.mxu0 %v268
    %v605 = vpop.f32.mrf.mxu0
    %v606 = vadd.f32 %v130, %v605
    %v607 = vpop.f32.mrf.mxu0
    %v608 = vadd.f32 %v134, %v607
    %v609 = vpop.f32.mrf.mxu0
    %v610 = vadd.f32 %v130, %v609
    %v611 = vpop.f32.mrf.mxu0
    %v612 = vadd.f32 %v134, %v611
    %613 = vmatprep.mubr.bf16.mxu0 0
    %614 = vmatmul.mubr.bf16.gmra.mxu0 %v271
    %v615 = vpop.f32.mrf.mxu0
    %v616 = vadd.f32 %v130, %v615
    %v617 = vpop.f32.mrf.mxu0
    %v618 = vadd.f32 %v134, %v617
    %v619 = vpop.f32.mrf.mxu0
    %v620 = vadd.f32 %v130, %v619
    %v621 = vpop.f32.mrf.mxu0
    %v622 = vadd.f32 %v134, %v621
    %623 = vmatprep.mubr.bf16.mxu0 0
    %624 = vmatmul.mubr.bf16.gmra.mxu0 %v274
    %v625 = vpop.f32.mrf.mxu0
    %v626 = vadd.f32 %v130, %v625
    %v627 = vpop.f32.mrf.mxu0
    %v628 = vadd.f32 %v134, %v627
    %v629 = vpop.f32.mrf.mxu0
    %v630 = vadd.f32 %v130, %v629
    %v631 = vpop.f32.mrf.mxu0
    %v632 = vadd.f32 %v134, %v631
    %633 = vmatprep.mubr.bf16.mxu0 0
    %634 = vmatmul.mubr.bf16.gmra.mxu0 %v277
    %v635 = vpop.f32.mrf.mxu0
    %v636 = vadd.f32 %v130, %v635
    %v637 = vpop.f32.mrf.mxu0
    %v638 = vadd.f32 %v134, %v637
    %v639 = vpop.f32.mrf.mxu0
    %v640 = vadd.f32 %v130, %v639
    %v641 = vpop.f32.mrf.mxu0
    %v642 = vadd.f32 %v134, %v641
    %643 = vmatprep.mubr.bf16.mxu0 0
    %644 = vmatmul.mubr.bf16.gmra.mxu0 %v280
    %v645 = vpop.f32.mrf.mxu0
    %v646 = vadd.f32 %v130, %v645
    %v647 = vpop.f32.mrf.mxu0
    %v648 = vadd.f32 %v134, %v647
    %v649 = vpop.f32.mrf.mxu0
    %v650 = vadd.f32 %v130, %v649
    %v651 = vpop.f32.mrf.mxu0
    %v652 = vadd.f32 %v134, %v651
    %653 = vmatprep.mubr.bf16.mxu0 0
    %654 = vmatmul.mubr.bf16.gmra.mxu0 %v283
    %v655 = vpop.f32.mrf.mxu0
    %v656 = vadd.f32 %v130, %v655
    %v657 = vpop.f32.mrf.mxu0
    %v658 = vadd.f32 %v134, %v657
    %v659 = vpop.f32.mrf.mxu0
    %v660 = vadd.f32 %v130, %v659
    %v661 = vpop.f32.mrf.mxu0
    %v662 = vadd.f32 %v134, %v661
    %663 = vmatprep.mubr.bf16.mxu0 0
    %664 = vmatmul.mubr.bf16.gmra.mxu0 %v286
    %v665 = vpop.f32.mrf.mxu0
    %v666 = vadd.f32 %v130, %v665
    %v667 = vpop.f32.mrf.mxu0
    %v668 = vadd.f32 %v134, %v667
    %v669 = vpop.f32.mrf.mxu0
    %v670 = vadd.f32 %v130, %v669
    %v671 = vpop.f32.mrf.mxu0
    %v672 = vadd.f32 %v134, %v671
    %673 = vdwg.mxu0
    %v674 = vmax.f32 %v323, 0.0
    %v675 = vmax.f32 %v325, 0.0
    %v676 = vmax.f32 %v516, 0.0
    %v677 = vmax.f32 %v518, 0.0
    %v678 = vmax.f32 %v327, 0.0
    %v679 = vmax.f32 %v329, 0.0
    %v680 = vmax.f32 %v520, 0.0
    %v681 = vmax.f32 %v522, 0.0
    %v682 = vmax.f32 %v333, 0.0
    %v683 = vmax.f32 %v335, 0.0
    %v684 = vmax.f32 %v526, 0.0
    %v685 = vmax.f32 %v528, 0.0
    %v686 = vmax.f32 %v337, 0.0
    %v687 = vmax.f32 %v339, 0.0
    %v688 = vmax.f32 %v530, 0.0
    %v689 = vmax.f32 %v532, 0.0
    %v690 = vmax.f32 %v343, 0.0
    %v691 = vmax.f32 %v345, 0.0
    %v692 = vmax.f32 %v536, 0.0
    %v693 = vmax.f32 %v538, 0.0
    %v694 = vmax.f32 %v347, 0.0
    %v695 = vmax.f32 %v349, 0.0
    %v696 = vmax.f32 %v540, 0.0
    %v697 = vmax.f32 %v542, 0.0
    %v698 = vmax.f32 %v353, 0.0
    %v699 = vmax.f32 %v355, 0.0
    %v700 = vmax.f32 %v546, 0.0
    %v701 = vmax.f32 %v548, 0.0
    %v702 = vmax.f32 %v357, 0.0
    %v703 = vmax.f32 %v359, 0.0
    %v704 = vmax.f32 %v550, 0.0
    %v705 = vmax.f32 %v552, 0.0
    %v706 = vmax.f32 %v363, 0.0
    %v707 = vmax.f32 %v365, 0.0
    %v708 = vmax.f32 %v556, 0.0
    %v709 = vmax.f32 %v558, 0.0
    %v710 = vmax.f32 %v367, 0.0
    %v711 = vmax.f32 %v369, 0.0
    %v712 = vmax.f32 %v560, 0.0
    %v713 = vmax.f32 %v562, 0.0
    %v714 = vmax.f32 %v373, 0.0
    %v715 = vmax.f32 %v375, 0.0
    %v716 = vmax.f32 %v566, 0.0
    %v717 = vmax.f32 %v568, 0.0
    %v718 = vmax.f32 %v377, 0.0
    %v719 = vmax.f32 %v379, 0.0
    %v720 = vmax.f32 %v570, 0.0
    %v721 = vmax.f32 %v572, 0.0
    %v722 = vmax.f32 %v383, 0.0
    %v723 = vmax.f32 %v385, 0.0
    %v724 = vmax.f32 %v576, 0.0
    %v725 = vmax.f32 %v578, 0.0
    %v726 = vmax.f32 %v387, 0.0
    %v727 = vmax.f32 %v389, 0.0
    %v728 = vmax.f32 %v580, 0.0
    %v729 = vmax.f32 %v582, 0.0
    %v730 = vmax.f32 %v393, 0.0
    %v731 = vmax.f32 %v395, 0.0
    %v732 = vmax.f32 %v586, 0.0
    %v733 = vmax.f32 %v588, 0.0
    %v734 = vmax.f32 %v397, 0.0
    %v735 = vmax.f32 %v399, 0.0
    %v736 = vmax.f32 %v590, 0.0
    %v737 = vmax.f32 %v592, 0.0
    %v738 = vmax.f32 %v403, 0.0
    %v739 = vmax.f32 %v405, 0.0
    %v740 = vmax.f32 %v596, 0.0
    %v741 = vmax.f32 %v598, 0.0
    %v742 = vmax.f32 %v407, 0.0
    %v743 = vmax.f32 %v409, 0.0
    %v744 = vmax.f32 %v600, 0.0
    %v745 = vmax.f32 %v602, 0.0
    %v746 = vmax.f32 %v413, 0.0
    %v747 = vmax.f32 %v415, 0.0
    %v748 = vmax.f32 %v606, 0.0
    %v749 = vmax.f32 %v608, 0.0
    %v750 = vmax.f32 %v417, 0.0
    %v751 = vmax.f32 %v419, 0.0
    %v752 = vmax.f32 %v610, 0.0
    %v753 = vmax.f32 %v612, 0.0
    %v754 = vmax.f32 %v423, 0.0
    %v755 = vmax.f32 %v425, 0.0
    %v756 = vmax.f32 %v616, 0.0
    %v757 = vmax.f32 %v618, 0.0
    %v758 = vmax.f32 %v427, 0.0
    %v759 = vmax.f32 %v429, 0.0
    %v760 = vmax.f32 %v620, 0.0
    %v761 = vmax.f32 %v622, 0.0
    %v762 = vmax.f32 %v433, 0.0
    %v763 = vmax.f32 %v435, 0.0
    %v764 = vmax.f32 %v626, 0.0
    %v765 = vmax.f32 %v628, 0.0
    %v766 = vmax.f32 %v437, 0.0
    %v767 = vmax.f32 %v439, 0.0
    %v768 = vmax.f32 %v630, 0.0
    %v769 = vmax.f32 %v632, 0.0
    %v770 = vmax.f32 %v443, 0.0
    %v771 = vmax.f32 %v445, 0.0
    %v772 = vmax.f32 %v636, 0.0
    %v773 = vmax.f32 %v638, 0.0
    %v774 = vmax.f32 %v447, 0.0
    %v775 = vmax.f32 %v449, 0.0
    %v776 = vmax.f32 %v640, 0.0
    %v777 = vmax.f32 %v642, 0.0
    %v778 = vmax.f32 %v453, 0.0
    %v779 = vmax.f32 %v455, 0.0
    %v780 = vmax.f32 %v646, 0.0
    %v781 = vmax.f32 %v648, 0.0
    %v782 = vmax.f32 %v457, 0.0
    %v783 = vmax.f32 %v459, 0.0
    %v784 = vmax.f32 %v650, 0.0
    %v785 = vmax.f32 %v652, 0.0
    %v786 = vmax.f32 %v463, 0.0
    %v787 = vmax.f32 %v465, 0.0
    %v788 = vmax.f32 %v656, 0.0
    %v789 = vmax.f32 %v658, 0.0
    %v790 = vmax.f32 %v467, 0.0
    %v791 = vmax.f32 %v469, 0.0
    %v792 = vmax.f32 %v660, 0.0
    %v793 = vmax.f32 %v662, 0.0
    %v794 = vmax.f32 %v473, 0.0
    %v795 = vmax.f32 %v475, 0.0
    %v796 = vmax.f32 %v666, 0.0
    %v797 = vmax.f32 %v668, 0.0
    %v798 = vmax.f32 %v477, 0.0
    %v799 = vmax.f32 %v479, 0.0
    %v800 = vmax.f32 %v670, 0.0
    %v801 = vmax.f32 %v672, 0.0
    %v802 = vadd.f32 %v674, %v678
    %v803 = vadd.f32 %v802, %v682
    %v804 = vadd.f32 %v803, %v686
    %v805 = vadd.f32 %v804, %v690
    %v806 = vadd.f32 %v805, %v694
    %v807 = vadd.f32 %v806, %v698
    %v808 = vadd.f32 %v807, %v702
    %v809 = vadd.f32 %v808, %v706
    %v810 = vadd.f32 %v809, %v710
    %v811 = vadd.f32 %v810, %v714
    %v812 = vadd.f32 %v811, %v718
    %v813 = vadd.f32 %v812, %v722
    %v814 = vadd.f32 %v813, %v726
    %v815 = vadd.f32 %v814, %v730
    %v816 = vadd.f32 %v815, %v734
    %v817 = vadd.f32 %v816, %v738
    %v818 = vadd.f32 %v817, %v742
    %v819 = vadd.f32 %v818, %v746
    %v820 = vadd.f32 %v819, %v750
    %v821 = vadd.f32 %v820, %v754
    %v822 = vadd.f32 %v821, %v758
    %v823 = vadd.f32 %v822, %v762
    %v824 = vadd.f32 %v823, %v766
    %v825 = vadd.f32 %v824, %v770
    %v826 = vadd.f32 %v825, %v774
    %v827 = vadd.f32 %v826, %v778
    %v828 = vadd.f32 %v827, %v782
    %v829 = vadd.f32 %v828, %v786
    %v830 = vadd.f32 %v829, %v790
    %v831 = vadd.f32 %v830, %v794
    %v832 = vadd.f32 %v831, %v798
    %v833 = vrot.slane %v832, 4
    %v834 = vadd.f32 %v832, %v833
    %v835 = vrot.slane %v834, 2
    %v836 = vadd.f32 %v834, %v835
    %v837 = vrot.slane %v836, 1
    %v838 = vadd.f32 %v836, %v837
    %v839 = vadd.f32 %v675, %v679
    %v840 = vadd.f32 %v839, %v683
    %v841 = vadd.f32 %v840, %v687
    %v842 = vadd.f32 %v841, %v691
    %v843 = vadd.f32 %v842, %v695
    %v844 = vadd.f32 %v843, %v699
    %v845 = vadd.f32 %v844, %v703
    %v846 = vadd.f32 %v845, %v707
    %v847 = vadd.f32 %v846, %v711
    %v848 = vadd.f32 %v847, %v715
    %v849 = vadd.f32 %v848, %v719
    %v850 = vadd.f32 %v849, %v723
    %v851 = vadd.f32 %v850, %v727
    %v852 = vadd.f32 %v851, %v731
    %v853 = vadd.f32 %v852, %v735
    %v854 = vadd.f32 %v853, %v739
    %v855 = vadd.f32 %v854, %v743
    %v856 = vadd.f32 %v855, %v747
    %v857 = vadd.f32 %v856, %v751
    %v858 = vadd.f32 %v857, %v755
    %v859 = vadd.f32 %v858, %v759
    %v860 = vadd.f32 %v859, %v763
    %v861 = vadd.f32 %v860, %v767
    %v862 = vadd.f32 %v861, %v771
    %v863 = vadd.f32 %v862, %v775
    %v864 = vadd.f32 %v863, %v779
    %v865 = vadd.f32 %v864, %v783
    %v866 = vadd.f32 %v865, %v787
    %v867 = vadd.f32 %v866, %v791
    %v868 = vadd.f32 %v867, %v795
    %v869 = vadd.f32 %v868, %v799
    %v870 = vrot.slane %v869, 4
    %v871 = vadd.f32 %v869, %v870
    %v872 = vrot.slane %v871, 2
    %v873 = vadd.f32 %v871, %v872
    %v874 = vrot.slane %v873, 1
    %v875 = vadd.f32 %v873, %v874
    %v876 = vadd.f32 %v676, %v680
    %v877 = vadd.f32 %v876, %v684
    %v878 = vadd.f32 %v877, %v688
    %v879 = vadd.f32 %v878, %v692
    %v880 = vadd.f32 %v879, %v696
    %v881 = vadd.f32 %v880, %v700
    %v882 = vadd.f32 %v881, %v704
    %v883 = vadd.f32 %v882, %v708
    %v884 = vadd.f32 %v883, %v712
    %v885 = vadd.f32 %v884, %v716
    %v886 = vadd.f32 %v885, %v720
    %v887 = vadd.f32 %v886, %v724
    %v888 = vadd.f32 %v887, %v728
    %v889 = vadd.f32 %v888, %v732
    %v890 = vadd.f32 %v889, %v736
    %v891 = vadd.f32 %v890, %v740
    %v892 = vadd.f32 %v891, %v744
    %v893 = vadd.f32 %v892, %v748
    %v894 = vadd.f32 %v893, %v752
    %v895 = vadd.f32 %v894, %v756
    %v896 = vadd.f32 %v895, %v760
    %v897 = vadd.f32 %v896, %v764
    %v898 = vadd.f32 %v897, %v768
    %v899 = vadd.f32 %v898, %v772
    %v900 = vadd.f32 %v899, %v776
    %v901 = vadd.f32 %v900, %v780
    %v902 = vadd.f32 %v901, %v784
    %v903 = vadd.f32 %v902, %v788
    %v904 = vadd.f32 %v903, %v792
    %v905 = vadd.f32 %v904, %v796
    %v906 = vadd.f32 %v905, %v800
    %v907 = vrot.slane %v906, 4
    %v908 = vadd.f32 %v906, %v907
    %v909 = vrot.slane %v908, 2
    %v910 = vadd.f32 %v908, %v909
    %v911 = vrot.slane %v910, 1
    %v912 = vadd.f32 %v910, %v911
    %v913 = vadd.f32 %v677, %v681
    %v914 = vadd.f32 %v913, %v685
    %v915 = vadd.f32 %v914, %v689
    %v916 = vadd.f32 %v915, %v693
    %v917 = vadd.f32 %v916, %v697
    %v918 = vadd.f32 %v917, %v701
    %v919 = vadd.f32 %v918, %v705
    %v920 = vadd.f32 %v919, %v709
    %v921 = vadd.f32 %v920, %v713
    %v922 = vadd.f32 %v921, %v717
    %v923 = vadd.f32 %v922, %v721
    %v924 = vadd.f32 %v923, %v725
    %v925 = vadd.f32 %v924, %v729
    %v926 = vadd.f32 %v925, %v733
    %v927 = vadd.f32 %v926, %v737
    %v928 = vadd.f32 %v927, %v741
    %v929 = vadd.f32 %v928, %v745
    %v930 = vadd.f32 %v929, %v749
    %v931 = vadd.f32 %v930, %v753
    %v932 = vadd.f32 %v931, %v757
    %v933 = vadd.f32 %v932, %v761
    %v934 = vadd.f32 %v933, %v765
    %v935 = vadd.f32 %v934, %v769
    %v936 = vadd.f32 %v935, %v773
    %v937 = vadd.f32 %v936, %v777
    %v938 = vadd.f32 %v937, %v781
    %v939 = vadd.f32 %v938, %v785
    %v940 = vadd.f32 %v939, %v789
    %v941 = vadd.f32 %v940, %v793
    %v942 = vadd.f32 %v941, %v797
    %v943 = vadd.f32 %v942, %v801
    %v944 = vrot.slane %v943, 4
    %v945 = vadd.f32 %v943, %v944
    %v946 = vrot.slane %v945, 2
    %v947 = vadd.f32 %v945, %v946
    %v948 = vrot.slane %v947, 1
    %v949 = vadd.f32 %v947, %v948
    %v950 = vmul.f32 %v674, %v674
    %v951 = vmul.f32 %v675, %v675
    %v952 = vmul.f32 %v676, %v676
    %v953 = vmul.f32 %v677, %v677
    %v954 = vmul.f32 %v678, %v678
    %v955 = vmul.f32 %v679, %v679
    %v956 = vmul.f32 %v680, %v680
    %v957 = vmul.f32 %v681, %v681
    %v958 = vmul.f32 %v682, %v682
    %v959 = vmul.f32 %v683, %v683
    %v960 = vmul.f32 %v684, %v684
    %v961 = vmul.f32 %v685, %v685
    %v962 = vmul.f32 %v686, %v686
    %v963 = vmul.f32 %v687, %v687
    %v964 = vmul.f32 %v688, %v688
    %v965 = vmul.f32 %v689, %v689
    %v966 = vmul.f32 %v690, %v690
    %v967 = vmul.f32 %v691, %v691
    %v968 = vmul.f32 %v692, %v692
    %v969 = vmul.f32 %v693, %v693
    %v970 = vmul.f32 %v694, %v694
    %v971 = vmul.f32 %v695, %v695
    %v972 = vmul.f32 %v696, %v696
    %v973 = vmul.f32 %v697, %v697
    %v974 = vmul.f32 %v698, %v698
    %v975 = vmul.f32 %v699, %v699
    %v976 = vmul.f32 %v700, %v700
    %v977 = vmul.f32 %v701, %v701
    %v978 = vmul.f32 %v702, %v702
    %v979 = vmul.f32 %v703, %v703
    %v980 = vmul.f32 %v704, %v704
    %v981 = vmul.f32 %v705, %v705
    %v982 = vmul.f32 %v706, %v706
    %v983 = vmul.f32 %v707, %v707
    %v984 = vmul.f32 %v708, %v708
    %v985 = vmul.f32 %v709, %v709
    %v986 = vmul.f32 %v710, %v710
    %v987 = vmul.f32 %v711, %v711
    %v988 = vmul.f32 %v712, %v712
    %v989 = vmul.f32 %v713, %v713
    %v990 = vmul.f32 %v714, %v714
    %v991 = vmul.f32 %v715, %v715
    %v992 = vmul.f32 %v716, %v716
    %v993 = vmul.f32 %v717, %v717
    %v994 = vmul.f32 %v718, %v718
    %v995 = vmul.f32 %v719, %v719
    %v996 = vmul.f32 %v720, %v720
    %v997 = vmul.f32 %v721, %v721
    %v998 = vmul.f32 %v722, %v722
    %v999 = vmul.f32 %v723, %v723
    %v1000 = vmul.f32 %v724, %v724
    %v1001 = vmul.f32 %v725, %v725
    %v1002 = vmul.f32 %v726, %v726
    %v1003 = vmul.f32 %v727, %v727
    %v1004 = vmul.f32 %v728, %v728
    %v1005 = vmul.f32 %v729, %v729
    %v1006 = vmul.f32 %v730, %v730
    %v1007 = vmul.f32 %v731, %v731
    %v1008 = vmul.f32 %v732, %v732
    %v1009 = vmul.f32 %v733, %v733
    %v1010 = vmul.f32 %v734, %v734
    %v1011 = vmul.f32 %v735, %v735
    %v1012 = vmul.f32 %v736, %v736
    %v1013 = vmul.f32 %v737, %v737
    %v1014 = vmul.f32 %v738, %v738
    %v1015 = vmul.f32 %v739, %v739
    %v1016 = vmul.f32 %v740, %v740
    %v1017 = vmul.f32 %v741, %v741
    %v1018 = vmul.f32 %v742, %v742
    %v1019 = vmul.f32 %v743, %v743
    %v1020 = vmul.f32 %v744, %v744
    %v1021 = vmul.f32 %v745, %v745
    %v1022 = vmul.f32 %v746, %v746
    %v1023 = vmul.f32 %v747, %v747
    %v1024 = vmul.f32 %v748, %v748
    %v1025 = vmul.f32 %v749, %v749
    %v1026 = vmul.f32 %v750, %v750
    %v1027 = vmul.f32 %v751, %v751
    %v1028 = vmul.f32 %v752, %v752
    %v1029 = vmul.f32 %v753, %v753
    %v1030 = vmul.f32 %v754, %v754
    %v1031 = vmul.f32 %v755, %v755
    %v1032 = vmul.f32 %v756, %v756
    %v1033 = vmul.f32 %v757, %v757
    %v1034 = vmul.f32 %v758, %v758
    %v1035 = vmul.f32 %v759, %v759
    %v1036 = vmul.f32 %v760, %v760
    %v1037 = vmul.f32 %v761, %v761
    %v1038 = vmul.f32 %v762, %v762
    %v1039 = vmul.f32 %v763, %v763
    %v1040 = vmul.f32 %v764, %v764
    %v1041 = vmul.f32 %v765, %v765
    %v1042 = vmul.f32 %v766, %v766
    %v1043 = vmul.f32 %v767, %v767
    %v1044 = vmul.f32 %v768, %v768
    %v1045 = vmul.f32 %v769, %v769
    %v1046 = vmul.f32 %v770, %v770
    %v1047 = vmul.f32 %v771, %v771
    %v1048 = vmul.f32 %v772, %v772
    %v1049 = vmul.f32 %v773, %v773
    %v1050 = vmul.f32 %v774, %v774
    %v1051 = vmul.f32 %v775, %v775
    %v1052 = vmul.f32 %v776, %v776
    %v1053 = vmul.f32 %v777, %v777
    %v1054 = vmul.f32 %v778, %v778
    %v1055 = vmul.f32 %v779, %v779
    %v1056 = vmul.f32 %v780, %v780
    %v1057 = vmul.f32 %v781, %v781
    %v1058 = vmul.f32 %v782, %v782
    %v1059 = vmul.f32 %v783, %v783
    %v1060 = vmul.f32 %v784, %v784
    %v1061 = vmul.f32 %v785, %v785
    %v1062 = vmul.f32 %v786, %v786
    %v1063 = vmul.f32 %v787, %v787
    %v1064 = vmul.f32 %v788, %v788
    %v1065 = vmul.f32 %v789, %v789
    %v1066 = vmul.f32 %v790, %v790
    %v1067 = vmul.f32 %v791, %v791
    %v1068 = vmul.f32 %v792, %v792
    %v1069 = vmul.f32 %v793, %v793
    %v1070 = vmul.f32 %v794, %v794
    %v1071 = vmul.f32 %v795, %v795
    %v1072 = vmul.f32 %v796, %v796
    %v1073 = vmul.f32 %v797, %v797
    %v1074 = vmul.f32 %v798, %v798
    %v1075 = vmul.f32 %v799, %v799
    %v1076 = vmul.f32 %v800, %v800
    %v1077 = vmul.f32 %v801, %v801
    %v1078 = vadd.f32 %v950, %v954
    %v1079 = vadd.f32 %v1078, %v958
    %v1080 = vadd.f32 %v1079, %v962
    %v1081 = vadd.f32 %v1080, %v966
    %v1082 = vadd.f32 %v1081, %v970
    %v1083 = vadd.f32 %v1082, %v974
    %v1084 = vadd.f32 %v1083, %v978
    %v1085 = vadd.f32 %v1084, %v982
    %v1086 = vadd.f32 %v1085, %v986
    %v1087 = vadd.f32 %v1086, %v990
    %v1088 = vadd.f32 %v1087, %v994
    %v1089 = vadd.f32 %v1088, %v998
    %v1090 = vadd.f32 %v1089, %v1002
    %v1091 = vadd.f32 %v1090, %v1006
    %v1092 = vadd.f32 %v1091, %v1010
    %v1093 = vadd.f32 %v1092, %v1014
    %v1094 = vadd.f32 %v1093, %v1018
    %v1095 = vadd.f32 %v1094, %v1022
    %v1096 = vadd.f32 %v1095, %v1026
    %v1097 = vadd.f32 %v1096, %v1030
    %v1098 = vadd.f32 %v1097, %v1034
    %v1099 = vadd.f32 %v1098, %v1038
    %v1100 = vadd.f32 %v1099, %v1042
    %v1101 = vadd.f32 %v1100, %v1046
    %v1102 = vadd.f32 %v1101, %v1050
    %v1103 = vadd.f32 %v1102, %v1054
    %v1104 = vadd.f32 %v1103, %v1058
    %v1105 = vadd.f32 %v1104, %v1062
    %v1106 = vadd.f32 %v1105, %v1066
    %v1107 = vadd.f32 %v1106, %v1070
    %v1108 = vadd.f32 %v1107, %v1074
    %v1109 = vrot.slane %v1108, 4
    %v1110 = vadd.f32 %v1108, %v1109
    %v1111 = vrot.slane %v1110, 2
    %v1112 = vadd.f32 %v1110, %v1111
    %v1113 = vrot.slane %v1112, 1
    %v1114 = vadd.f32 %v1112, %v1113
    %v1115 = vadd.f32 %v951, %v955
    %v1116 = vadd.f32 %v1115, %v959
    %v1117 = vadd.f32 %v1116, %v963
    %v1118 = vadd.f32 %v1117, %v967
    %v1119 = vadd.f32 %v1118, %v971
    %v1120 = vadd.f32 %v1119, %v975
    %v1121 = vadd.f32 %v1120, %v979
    %v1122 = vadd.f32 %v1121, %v983
    %v1123 = vadd.f32 %v1122, %v987
    %v1124 = vadd.f32 %v1123, %v991
    %v1125 = vadd.f32 %v1124, %v995
    %v1126 = vadd.f32 %v1125, %v999
    %v1127 = vadd.f32 %v1126, %v1003
    %v1128 = vadd.f32 %v1127, %v1007
    %v1129 = vadd.f32 %v1128, %v1011
    %v1130 = vadd.f32 %v1129, %v1015
    %v1131 = vadd.f32 %v1130, %v1019
    %v1132 = vadd.f32 %v1131, %v1023
    %v1133 = vadd.f32 %v1132, %v1027
    %v1134 = vadd.f32 %v1133, %v1031
    %v1135 = vadd.f32 %v1134, %v1035
    %v1136 = vadd.f32 %v1135, %v1039
    %v1137 = vadd.f32 %v1136, %v1043
    %v1138 = vadd.f32 %v1137, %v1047
    %v1139 = vadd.f32 %v1138, %v1051
    %v1140 = vadd.f32 %v1139, %v1055
    %v1141 = vadd.f32 %v1140, %v1059
    %v1142 = vadd.f32 %v1141, %v1063
    %v1143 = vadd.f32 %v1142, %v1067
    %v1144 = vadd.f32 %v1143, %v1071
    %v1145 = vadd.f32 %v1144, %v1075
    %v1146 = vrot.slane %v1145, 4
    %v1147 = vadd.f32 %v1145, %v1146
    %v1148 = vrot.slane %v1147, 2
    %v1149 = vadd.f32 %v1147, %v1148
    %v1150 = vrot.slane %v1149, 1
    %v1151 = vadd.f32 %v1149, %v1150
    %v1152 = vadd.f32 %v952, %v956
    %v1153 = vadd.f32 %v1152, %v960
    %v1154 = vadd.f32 %v1153, %v964
    %v1155 = vadd.f32 %v1154, %v968
    %v1156 = vadd.f32 %v1155, %v972
    %v1157 = vadd.f32 %v1156, %v976
    %v1158 = vadd.f32 %v1157, %v980
    %v1159 = vadd.f32 %v1158, %v984
    %v1160 = vadd.f32 %v1159, %v988
    %v1161 = vadd.f32 %v1160, %v992
    %v1162 = vadd.f32 %v1161, %v996
    %v1163 = vadd.f32 %v1162, %v1000
    %v1164 = vadd.f32 %v1163, %v1004
    %v1165 = vadd.f32 %v1164, %v1008
    %v1166 = vadd.f32 %v1165, %v1012
    %v1167 = vadd.f32 %v1166, %v1016
    %v1168 = vadd.f32 %v1167, %v1020
    %v1169 = vadd.f32 %v1168, %v1024
    %v1170 = vadd.f32 %v1169, %v1028
    %v1171 = vadd.f32 %v1170, %v1032
    %v1172 = vadd.f32 %v1171, %v1036
    %v1173 = vadd.f32 %v1172, %v1040
    %v1174 = vadd.f32 %v1173, %v1044
    %v1175 = vadd.f32 %v1174, %v1048
    %v1176 = vadd.f32 %v1175, %v1052
    %v1177 = vadd.f32 %v1176, %v1056
    %v1178 = vadd.f32 %v1177, %v1060
    %v1179 = vadd.f32 %v1178, %v1064
    %v1180 = vadd.f32 %v1179, %v1068
    %v1181 = vadd.f32 %v1180, %v1072
    %v1182 = vadd.f32 %v1181, %v1076
    %v1183 = vrot.slane %v1182, 4
    %v1184 = vadd.f32 %v1182, %v1183
    %v1185 = vrot.slane %v1184, 2
    %v1186 = vadd.f32 %v1184, %v1185
    %v1187 = vrot.slane %v1186, 1
    %v1188 = vadd.f32 %v1186, %v1187
    %v1189 = vadd.f32 %v953, %v957
    %v1190 = vadd.f32 %v1189, %v961
    %v1191 = vadd.f32 %v1190, %v965
    %v1192 = vadd.f32 %v1191, %v969
    %v1193 = vadd.f32 %v1192, %v973
    %v1194 = vadd.f32 %v1193, %v977
    %v1195 = vadd.f32 %v1194, %v981
    %v1196 = vadd.f32 %v1195, %v985
    %v1197 = vadd.f32 %v1196, %v989
    %v1198 = vadd.f32 %v1197, %v993
    %v1199 = vadd.f32 %v1198, %v997
    %v1200 = vadd.f32 %v1199, %v1001
    %v1201 = vadd.f32 %v1200, %v1005
    %v1202 = vadd.f32 %v1201, %v1009
    %v1203 = vadd.f32 %v1202, %v1013
    %v1204 = vadd.f32 %v1203, %v1017
    %v1205 = vadd.f32 %v1204, %v1021
    %v1206 = vadd.f32 %v1205, %v1025
    %v1207 = vadd.f32 %v1206, %v1029
    %v1208 = vadd.f32 %v1207, %v1033
    %v1209 = vadd.f32 %v1208, %v1037
    %v1210 = vadd.f32 %v1209, %v1041
    %v1211 = vadd.f32 %v1210, %v1045
    %v1212 = vadd.f32 %v1211, %v1049
    %v1213 = vadd.f32 %v1212, %v1053
    %v1214 = vadd.f32 %v1213, %v1057
    %v1215 = vadd.f32 %v1214, %v1061
    %v1216 = vadd.f32 %v1215, %v1065
    %v1217 = vadd.f32 %v1216, %v1069
    %v1218 = vadd.f32 %v1217, %v1073
    %v1219 = vadd.f32 %v1218, %v1077
    %v1220 = vrot.slane %v1219, 4
    %v1221 = vadd.f32 %v1219, %v1220
    %v1222 = vrot.slane %v1221, 2
    %v1223 = vadd.f32 %v1221, %v1222
    %v1224 = vrot.slane %v1223, 1
    %v1225 = vadd.f32 %v1223, %v1224
    %v1226 = vmul.f32 %v838, 0.00390625
    %v1227 = vmul.f32 %v875, 0.00390625
    %v1228 = vmul.f32 %v912, 0.00390625
    %v1229 = vmul.f32 %v949, 0.00390625
    %v1230 = vmul.f32 %v1114, 0.00390625
    %v1231 = vmul.f32 %v1151, 0.00390625
    %v1232 = vmul.f32 %v1188, 0.00390625
    %v1233 = vmul.f32 %v1225, 0.00390625
    %v1234 = vmul.f32 %v1226, %v1226
    %v1235 = vmul.f32 %v1227, %v1227
    %v1236 = vmul.f32 %v1228, %v1228
    %v1237 = vmul.f32 %v1229, %v1229
    %v1238 = vsub.f32 %v1230, %v1234
    %v1239 = vsub.f32 %v1231, %v1235
    %v1240 = vsub.f32 %v1232, %v1236
    %v1241 = vsub.f32 %v1233, %v1237
    %v1242 = vmax.f32 %v1238, 0.0
    %v1243 = vmax.f32 %v1239, 0.0
    %v1244 = vmax.f32 %v1240, 0.0
    %v1245 = vmax.f32 %v1241, 0.0
    %v1246 = vadd.f32 %v1242, 1e-05
    %v1247 = vadd.f32 %v1243, 1e-05
    %v1248 = vadd.f32 %v1244, 1e-05
    %v1249 = vadd.f32 %v1245, 1e-05
    %v1250 = vrsqrt.pop %v1246
    %v1251 = vrsqrt.pop %v1247
    %v1252 = vrsqrt.pop %v1248
    %v1253 = vrsqrt.pop %v1249
    %v1255 = vlaneseq
    %v1256 = vshrl.u32 %v1255, 7
    %v1257 = vsub.s32 0, %v1256
    %v1258 = vrot.slane %v108, %v1257
    %v1259 = vlaneseq
    %v1260 = vshrl.u32 %v1259, 7
    %v1261 = vsub.s32 1, %v1260
    %v1262 = vrot.slane %v108, %v1261
    %v1263 = vlaneseq
    %v1264 = vshrl.u32 %v1263, 7
    %v1265 = vsub.s32 2, %v1264
    %v1266 = vrot.slane %v108, %v1265
    %v1267 = vlaneseq
    %v1268 = vshrl.u32 %v1267, 7
    %v1269 = vsub.s32 3, %v1268
    %v1270 = vrot.slane %v108, %v1269
    %v1275 = vmul.f32 %v1250, %v1258
    %v1276 = vmul.f32 %v1251, %v1262
    %v1277 = vmul.f32 %v1252, %v1266
    %v1278 = vmul.f32 %v1253, %v1270
    %v1279 = vmul.f32 %v1226, %v1275
    %v1280 = vmul.f32 %v1227, %v1276
    %v1281 = vmul.f32 %v1228, %v1277
    %v1282 = vmul.f32 %v1229, %v1278
    %v1287 = vcombine.low %v1279, %v1280
    %v1288 = vcombine.low %v1281, %v1282
    %v1290 = vunpack.c.l.s4 1966171168
    %v1291 = vunpack.c.0.s8 %v1290
    %v1292 = vlaneseq
    %v1293 = vshrl.u32 %v1292, 7
    %v1294 = vsub.s32 %v1291, %v1293
    %v1295 = vrot.slane %v1287, %v1294
    %v1297 = vunpack.c.l.s4 1966171168
    %v1298 = vunpack.c.0.s8 %v1297
    %v1299 = vlaneseq
    %v1300 = vshrl.u32 %v1299, 7
    %v1301 = vsub.s32 %v1298, %v1300
    %v1302 = vrot.slane %v1288, %v1301
    %v1303 = vcombine.low %v1295, %v1302
    %v1305 = vunpack.c.l.s4 1966171168
    %v1306 = vunpack.c.0.s8 %v1305
    %v1307 = vlaneseq
    %v1308 = vshrl.u32 %v1307, 7
    %v1309 = vsub.s32 %v1306, %v1308
    %v1310 = vrot.slane %v1303, %v1309
    %v1312 = vsub.f32 %v110, %v1310
    %v1313 = vlaneseq
    %v1314 = vshrl.u32 %v1313, 7
    %v1315 = vsub.s32 0, %v1314
    %v1316 = vrot.slane %v1275, %v1315
    %v1317 = vlaneseq
    %v1318 = vshrl.u32 %v1317, 7
    %v1319 = vsub.s32 0, %v1318
    %v1320 = vrot.slane %v1276, %v1319
    %v1321 = vlaneseq
    %v1322 = vshrl.u32 %v1321, 7
    %v1323 = vsub.s32 0, %v1322
    %v1324 = vrot.slane %v1277, %v1323
    %v1325 = vlaneseq
    %v1326 = vshrl.u32 %v1325, 7
    %v1327 = vsub.s32 0, %v1326
    %v1328 = vrot.slane %v1278, %v1327
    %v1329 = vmul.f32 %v674, %v1316
    %v1330 = vmul.f32 %v675, %v1320
    %v1331 = vmul.f32 %v676, %v1324
    %v1332 = vmul.f32 %v677, %v1328
    %v1333 = vmul.f32 %v678, %v1316
    %v1334 = vmul.f32 %v679, %v1320
    %v1335 = vmul.f32 %v680, %v1324
    %v1336 = vmul.f32 %v681, %v1328
    %v1337 = vmul.f32 %v682, %v1316
    %v1338 = vmul.f32 %v683, %v1320
    %v1339 = vmul.f32 %v684, %v1324
    %v1340 = vmul.f32 %v685, %v1328
    %v1341 = vmul.f32 %v686, %v1316
    %v1342 = vmul.f32 %v687, %v1320
    %v1343 = vmul.f32 %v688, %v1324
    %v1344 = vmul.f32 %v689, %v1328
    %v1345 = vmul.f32 %v690, %v1316
    %v1346 = vmul.f32 %v691, %v1320
    %v1347 = vmul.f32 %v692, %v1324
    %v1348 = vmul.f32 %v693, %v1328
    %v1349 = vmul.f32 %v694, %v1316
    %v1350 = vmul.f32 %v695, %v1320
    %v1351 = vmul.f32 %v696, %v1324
    %v1352 = vmul.f32 %v697, %v1328
    %v1353 = vmul.f32 %v698, %v1316
    %v1354 = vmul.f32 %v699, %v1320
    %v1355 = vmul.f32 %v700, %v1324
    %v1356 = vmul.f32 %v701, %v1328
    %v1357 = vmul.f32 %v702, %v1316
    %v1358 = vmul.f32 %v703, %v1320
    %v1359 = vmul.f32 %v704, %v1324
    %v1360 = vmul.f32 %v705, %v1328
    %v1361 = vmul.f32 %v706, %v1316
    %v1362 = vmul.f32 %v707, %v1320
    %v1363 = vmul.f32 %v708, %v1324
    %v1364 = vmul.f32 %v709, %v1328
    %v1365 = vmul.f32 %v710, %v1316
    %v1366 = vmul.f32 %v711, %v1320
    %v1367 = vmul.f32 %v712, %v1324
    %v1368 = vmul.f32 %v713, %v1328
    %v1369 = vmul.f32 %v714, %v1316
    %v1370 = vmul.f32 %v715, %v1320
    %v1371 = vmul.f32 %v716, %v1324
    %v1372 = vmul.f32 %v717, %v1328
    %v1373 = vmul.f32 %v718, %v1316
    %v1374 = vmul.f32 %v719, %v1320
    %v1375 = vmul.f32 %v720, %v1324
    %v1376 = vmul.f32 %v721, %v1328
    %v1377 = vmul.f32 %v722, %v1316
    %v1378 = vmul.f32 %v723, %v1320
    %v1379 = vmul.f32 %v724, %v1324
    %v1380 = vmul.f32 %v725, %v1328
    %v1381 = vmul.f32 %v726, %v1316
    %v1382 = vmul.f32 %v727, %v1320
    %v1383 = vmul.f32 %v728, %v1324
    %v1384 = vmul.f32 %v729, %v1328
    %v1385 = vmul.f32 %v730, %v1316
    %v1386 = vmul.f32 %v731, %v1320
    %v1387 = vmul.f32 %v732, %v1324
    %v1388 = vmul.f32 %v733, %v1328
    %v1389 = vmul.f32 %v734, %v1316
    %v1390 = vmul.f32 %v735, %v1320
    %v1391 = vmul.f32 %v736, %v1324
    %v1392 = vmul.f32 %v737, %v1328
    %v1393 = vmul.f32 %v738, %v1316
    %v1394 = vmul.f32 %v739, %v1320
    %v1395 = vmul.f32 %v740, %v1324
    %v1396 = vmul.f32 %v741, %v1328
    %v1397 = vmul.f32 %v742, %v1316
    %v1398 = vmul.f32 %v743, %v1320
    %v1399 = vmul.f32 %v744, %v1324
    %v1400 = vmul.f32 %v745, %v1328
    %v1401 = vmul.f32 %v746, %v1316
    %v1402 = vmul.f32 %v747, %v1320
    %v1403 = vmul.f32 %v748, %v1324
    %v1404 = vmul.f32 %v749, %v1328
    %v1405 = vmul.f32 %v750, %v1316
    %v1406 = vmul.f32 %v751, %v1320
    %v1407 = vmul.f32 %v752, %v1324
    %v1408 = vmul.f32 %v753, %v1328
    %v1409 = vmul.f32 %v754, %v1316
    %v1410 = vmul.f32 %v755, %v1320
    %v1411 = vmul.f32 %v756, %v1324
    %v1412 = vmul.f32 %v757, %v1328
    %v1413 = vmul.f32 %v758, %v1316
    %v1414 = vmul.f32 %v759, %v1320
    %v1415 = vmul.f32 %v760, %v1324
    %v1416 = vmul.f32 %v761, %v1328
    %v1417 = vmul.f32 %v762, %v1316
    %v1418 = vmul.f32 %v763, %v1320
    %v1419 = vmul.f32 %v764, %v1324
    %v1420 = vmul.f32 %v765, %v1328
    %v1421 = vmul.f32 %v766, %v1316
    %v1422 = vmul.f32 %v767, %v1320
    %v1423 = vmul.f32 %v768, %v1324
    %v1424 = vmul.f32 %v769, %v1328
    %v1425 = vmul.f32 %v770, %v1316
    %v1426 = vmul.f32 %v771, %v1320
    %v1427 = vmul.f32 %v772, %v1324
    %v1428 = vmul.f32 %v773, %v1328
    %v1429 = vmul.f32 %v774, %v1316
    %v1430 = vmul.f32 %v775, %v1320
    %v1431 = vmul.f32 %v776, %v1324
    %v1432 = vmul.f32 %v777, %v1328
    %v1433 = vmul.f32 %v778, %v1316
    %v1434 = vmul.f32 %v779, %v1320
    %v1435 = vmul.f32 %v780, %v1324
    %v1436 = vmul.f32 %v781, %v1328
    %v1437 = vmul.f32 %v782, %v1316
    %v1438 = vmul.f32 %v783, %v1320
    %v1439 = vmul.f32 %v784, %v1324
    %v1440 = vmul.f32 %v785, %v1328
    %v1441 = vmul.f32 %v786, %v1316
    %v1442 = vmul.f32 %v787, %v1320
    %v1443 = vmul.f32 %v788, %v1324
    %v1444 = vmul.f32 %v789, %v1328
    %v1445 = vmul.f32 %v790, %v1316
    %v1446 = vmul.f32 %v791, %v1320
    %v1447 = vmul.f32 %v792, %v1324
    %v1448 = vmul.f32 %v793, %v1328
    %v1449 = vmul.f32 %v794, %v1316
    %v1450 = vmul.f32 %v795, %v1320
    %v1451 = vmul.f32 %v796, %v1324
    %v1452 = vmul.f32 %v797, %v1328
    %v1453 = vmul.f32 %v798, %v1316
    %v1454 = vmul.f32 %v799, %v1320
    %v1455 = vmul.f32 %v800, %v1324
    %v1456 = vmul.f32 %v801, %v1328
    %v1458 = vlaneseq
    %v1459 = vshrl.u32 %v1458, 7
    %v1460 = vsub.s32 0, %v1459
    %v1461 = vrot.slane %v1312, %v1460
    %v1462 = vlaneseq
    %v1463 = vshrl.u32 %v1462, 7
    %v1464 = vsub.s32 1, %v1463
    %v1465 = vrot.slane %v1312, %v1464
    %v1466 = vlaneseq
    %v1467 = vshrl.u32 %v1466, 7
    %v1468 = vsub.s32 2, %v1467
    %v1469 = vrot.slane %v1312, %v1468
    %v1470 = vlaneseq
    %v1471 = vshrl.u32 %v1470, 7
    %v1472 = vsub.s32 3, %v1471
    %v1473 = vrot.slane %v1312, %v1472
    %v1478 = vadd.f32 %v1329, %v1461
    %v1479 = vadd.f32 %v1330, %v1465
    %v1480 = vadd.f32 %v1331, %v1469
    %v1481 = vadd.f32 %v1332, %v1473
    %v1482 = vadd.f32 %v1333, %v1461
    %v1483 = vadd.f32 %v1334, %v1465
    %v1484 = vadd.f32 %v1335, %v1469
    %v1485 = vadd.f32 %v1336, %v1473
    %v1486 = vadd.f32 %v1337, %v1461
    %v1487 = vadd.f32 %v1338, %v1465
    %v1488 = vadd.f32 %v1339, %v1469
    %v1489 = vadd.f32 %v1340, %v1473
    %v1490 = vadd.f32 %v1341, %v1461
    %v1491 = vadd.f32 %v1342, %v1465
    %v1492 = vadd.f32 %v1343, %v1469
    %v1493 = vadd.f32 %v1344, %v1473
    %v1494 = vadd.f32 %v1345, %v1461
    %v1495 = vadd.f32 %v1346, %v1465
    %v1496 = vadd.f32 %v1347, %v1469
    %v1497 = vadd.f32 %v1348, %v1473
    %v1498 = vadd.f32 %v1349, %v1461
    %v1499 = vadd.f32 %v1350, %v1465
    %v1500 = vadd.f32 %v1351, %v1469
    %v1501 = vadd.f32 %v1352, %v1473
    %v1502 = vadd.f32 %v1353, %v1461
    %v1503 = vadd.f32 %v1354, %v1465
    %v1504 = vadd.f32 %v1355, %v1469
    %v1505 = vadd.f32 %v1356, %v1473
    %v1506 = vadd.f32 %v1357, %v1461
    %v1507 = vadd.f32 %v1358, %v1465
    %v1508 = vadd.f32 %v1359, %v1469
    %v1509 = vadd.f32 %v1360, %v1473
    %v1510 = vadd.f32 %v1361, %v1461
    %v1511 = vadd.f32 %v1362, %v1465
    %v1512 = vadd.f32 %v1363, %v1469
    %v1513 = vadd.f32 %v1364, %v1473
    %v1514 = vadd.f32 %v1365, %v1461
    %v1515 = vadd.f32 %v1366, %v1465
    %v1516 = vadd.f32 %v1367, %v1469
    %v1517 = vadd.f32 %v1368, %v1473
    %v1518 = vadd.f32 %v1369, %v1461
    %v1519 = vadd.f32 %v1370, %v1465
    %v1520 = vadd.f32 %v1371, %v1469
    %v1521 = vadd.f32 %v1372, %v1473
    %v1522 = vadd.f32 %v1373, %v1461
    %v1523 = vadd.f32 %v1374, %v1465
    %v1524 = vadd.f32 %v1375, %v1469
    %v1525 = vadd.f32 %v1376, %v1473
    %v1526 = vadd.f32 %v1377, %v1461
    %v1527 = vadd.f32 %v1378, %v1465
    %v1528 = vadd.f32 %v1379, %v1469
    %v1529 = vadd.f32 %v1380, %v1473
    %v1530 = vadd.f32 %v1381, %v1461
    %v1531 = vadd.f32 %v1382, %v1465
    %v1532 = vadd.f32 %v1383, %v1469
    %v1533 = vadd.f32 %v1384, %v1473
    %v1534 = vadd.f32 %v1385, %v1461
    %v1535 = vadd.f32 %v1386, %v1465
    %v1536 = vadd.f32 %v1387, %v1469
    %v1537 = vadd.f32 %v1388, %v1473
    %v1538 = vadd.f32 %v1389, %v1461
    %v1539 = vadd.f32 %v1390, %v1465
    %v1540 = vadd.f32 %v1391, %v1469
    %v1541 = vadd.f32 %v1392, %v1473
    %v1542 = vadd.f32 %v1393, %v1461
    %v1543 = vadd.f32 %v1394, %v1465
    %v1544 = vadd.f32 %v1395, %v1469
    %v1545 = vadd.f32 %v1396, %v1473
    %v1546 = vadd.f32 %v1397, %v1461
    %v1547 = vadd.f32 %v1398, %v1465
    %v1548 = vadd.f32 %v1399, %v1469
    %v1549 = vadd.f32 %v1400, %v1473
    %v1550 = vadd.f32 %v1401, %v1461
    %v1551 = vadd.f32 %v1402, %v1465
    %v1552 = vadd.f32 %v1403, %v1469
    %v1553 = vadd.f32 %v1404, %v1473
    %v1554 = vadd.f32 %v1405, %v1461
    %v1555 = vadd.f32 %v1406, %v1465
    %v1556 = vadd.f32 %v1407, %v1469
    %v1557 = vadd.f32 %v1408, %v1473
    %v1558 = vadd.f32 %v1409, %v1461
    %v1559 = vadd.f32 %v1410, %v1465
    %v1560 = vadd.f32 %v1411, %v1469
    %v1561 = vadd.f32 %v1412, %v1473
    %v1562 = vadd.f32 %v1413, %v1461
    %v1563 = vadd.f32 %v1414, %v1465
    %v1564 = vadd.f32 %v1415, %v1469
    %v1565 = vadd.f32 %v1416, %v1473
    %v1566 = vadd.f32 %v1417, %v1461
    %v1567 = vadd.f32 %v1418, %v1465
    %v1568 = vadd.f32 %v1419, %v1469
    %v1569 = vadd.f32 %v1420, %v1473
    %v1570 = vadd.f32 %v1421, %v1461
    %v1571 = vadd.f32 %v1422, %v1465
    %v1572 = vadd.f32 %v1423, %v1469
    %v1573 = vadd.f32 %v1424, %v1473
    %v1574 = vadd.f32 %v1425, %v1461
    %v1575 = vadd.f32 %v1426, %v1465
    %v1576 = vadd.f32 %v1427, %v1469
    %v1577 = vadd.f32 %v1428, %v1473
    %v1578 = vadd.f32 %v1429, %v1461
    %v1579 = vadd.f32 %v1430, %v1465
    %v1580 = vadd.f32 %v1431, %v1469
    %v1581 = vadd.f32 %v1432, %v1473
    %v1582 = vadd.f32 %v1433, %v1461
    %v1583 = vadd.f32 %v1434, %v1465
    %v1584 = vadd.f32 %v1435, %v1469
    %v1585 = vadd.f32 %v1436, %v1473
    %v1586 = vadd.f32 %v1437, %v1461
    %v1587 = vadd.f32 %v1438, %v1465
    %v1588 = vadd.f32 %v1439, %v1469
    %v1589 = vadd.f32 %v1440, %v1473
    %v1590 = vadd.f32 %v1441, %v1461
    %v1591 = vadd.f32 %v1442, %v1465
    %v1592 = vadd.f32 %v1443, %v1469
    %v1593 = vadd.f32 %v1444, %v1473
    %v1594 = vadd.f32 %v1445, %v1461
    %v1595 = vadd.f32 %v1446, %v1465
    %v1596 = vadd.f32 %v1447, %v1469
    %v1597 = vadd.f32 %v1448, %v1473
    %v1598 = vadd.f32 %v1449, %v1461
    %v1599 = vadd.f32 %v1450, %v1465
    %v1600 = vadd.f32 %v1451, %v1469
    %v1601 = vadd.f32 %v1452, %v1473
    %v1602 = vadd.f32 %v1453, %v1461
    %v1603 = vadd.f32 %v1454, %v1465
    %v1604 = vadd.f32 %v1455, %v1469
    %v1605 = vadd.f32 %v1456, %v1473
    %v1606 = vpack.c.bf16 %v1482, %v1478
    %v1607 = vpack.c.bf16 %v1483, %v1479
    %v1608 = vpack.c.bf16 %v1484, %v1480
    %v1609 = vpack.c.bf16 %v1485, %v1481
    %v1610 = vpack.c.bf16 %v1490, %v1486
    %v1611 = vpack.c.bf16 %v1491, %v1487
    %v1612 = vpack.c.bf16 %v1492, %v1488
    %v1613 = vpack.c.bf16 %v1493, %v1489
    %v1614 = vpack.c.bf16 %v1498, %v1494
    %v1615 = vpack.c.bf16 %v1499, %v1495
    %v1616 = vpack.c.bf16 %v1500, %v1496
    %v1617 = vpack.c.bf16 %v1501, %v1497
    %v1618 = vpack.c.bf16 %v1506, %v1502
    %v1619 = vpack.c.bf16 %v1507, %v1503
    %v1620 = vpack.c.bf16 %v1508, %v1504
    %v1621 = vpack.c.bf16 %v1509, %v1505
    %v1622 = vpack.c.bf16 %v1514, %v1510
    %v1623 = vpack.c.bf16 %v1515, %v1511
    %v1624 = vpack.c.bf16 %v1516, %v1512
    %v1625 = vpack.c.bf16 %v1517, %v1513
    %v1626 = vpack.c.bf16 %v1522, %v1518
    %v1627 = vpack.c.bf16 %v1523, %v1519
    %v1628 = vpack.c.bf16 %v1524, %v1520
    %v1629 = vpack.c.bf16 %v1525, %v1521
    %v1630 = vpack.c.bf16 %v1530, %v1526
    %v1631 = vpack.c.bf16 %v1531, %v1527
    %v1632 = vpack.c.bf16 %v1532, %v1528
    %v1633 = vpack.c.bf16 %v1533, %v1529
    %v1634 = vpack.c.bf16 %v1538, %v1534
    %v1635 = vpack.c.bf16 %v1539, %v1535
    %v1636 = vpack.c.bf16 %v1540, %v1536
    %v1637 = vpack.c.bf16 %v1541, %v1537
    %v1638 = vpack.c.bf16 %v1546, %v1542
    %v1639 = vpack.c.bf16 %v1547, %v1543
    %v1640 = vpack.c.bf16 %v1548, %v1544
    %v1641 = vpack.c.bf16 %v1549, %v1545
    %v1642 = vpack.c.bf16 %v1554, %v1550
    %v1643 = vpack.c.bf16 %v1555, %v1551
    %v1644 = vpack.c.bf16 %v1556, %v1552
    %v1645 = vpack.c.bf16 %v1557, %v1553
    %v1646 = vpack.c.bf16 %v1562, %v1558
    %v1647 = vpack.c.bf16 %v1563, %v1559
    %v1648 = vpack.c.bf16 %v1564, %v1560
    %v1649 = vpack.c.bf16 %v1565, %v1561
    %v1650 = vpack.c.bf16 %v1570, %v1566
    %v1651 = vpack.c.bf16 %v1571, %v1567
    %v1652 = vpack.c.bf16 %v1572, %v1568
    %v1653 = vpack.c.bf16 %v1573, %v1569
    %v1654 = vpack.c.bf16 %v1578, %v1574
    %v1655 = vpack.c.bf16 %v1579, %v1575
    %v1656 = vpack.c.bf16 %v1580, %v1576
    %v1657 = vpack.c.bf16 %v1581, %v1577
    %v1658 = vpack.c.bf16 %v1586, %v1582
    %v1659 = vpack.c.bf16 %v1587, %v1583
    %v1660 = vpack.c.bf16 %v1588, %v1584
    %v1661 = vpack.c.bf16 %v1589, %v1585
    %v1662 = vpack.c.bf16 %v1594, %v1590
    %v1663 = vpack.c.bf16 %v1595, %v1591
    %v1664 = vpack.c.bf16 %v1596, %v1592
    %v1665 = vpack.c.bf16 %v1597, %v1593
    %v1666 = vpack.c.bf16 %v1602, %v1598
    %v1667 = vpack.c.bf16 %v1603, %v1599
    %v1668 = vpack.c.bf16 %v1604, %v1600
    %v1669 = vpack.c.bf16 %v1605, %v1601
    %v1670 = vld [vmem:[#allocation2] sm:$0xff]
    %v1671 = vld [vmem:[#allocation2 + $0x8] sm:$0xf]
    %v1672 = vld [vmem:[#allocation2 + $0xc] sm:$0xff]
    %v1673 = vld [vmem:[#allocation2 + $0x14] sm:$0xf]
    %v1674 = vld [vmem:[#allocation2 + $0x18] sm:$0xff]
    %v1675 = vld [vmem:[#allocation2 + $0x20] sm:$0xf]
    %v1676 = vld [vmem:[#allocation2 + $0x24] sm:$0xff]
    %v1677 = vld [vmem:[#allocation2 + $0x2c] sm:$0xf]
    %v1678 = vld [vmem:[#allocation2 + $0x30] sm:$0xff]
    %v1679 = vld [vmem:[#allocation2 + $0x38] sm:$0xf]
    %v1680 = vld [vmem:[#allocation2 + $0x3c] sm:$0xff]
    %v1681 = vld [vmem:[#allocation2 + $0x44] sm:$0xf]
    %v1682 = vld [vmem:[#allocation2 + $0x48] sm:$0xff]
    %v1683 = vld [vmem:[#allocation2 + $0x50] sm:$0xf]
    %v1684 = vld [vmem:[#allocation2 + $0x54] sm:$0xff]
    %v1685 = vld [vmem:[#allocation2 + $0x5c] sm:$0xf]
    %v1686 = vld [vmem:[#allocation2 + $0x60] sm:$0xff]
    %v1687 = vld [vmem:[#allocation2 + $0x68] sm:$0xf]
    %v1688 = vld [vmem:[#allocation2 + $0x6c] sm:$0xff]
    %v1689 = vld [vmem:[#allocation2 + $0x74] sm:$0xf]
    %v1690 = vld [vmem:[#allocation2 + $0x78] sm:$0xff]
    %v1691 = vld [vmem:[#allocation2 + $0x80] sm:$0xf]
    %v1692 = vld [vmem:[#allocation2 + $0x84] sm:$0xff]
    %v1693 = vld [vmem:[#allocation2 + $0x8c] sm:$0xf]
    %v1694 = vld [vmem:[#allocation2 + $0x90] sm:$0xff]
    %v1695 = vld [vmem:[#allocation2 + $0x98] sm:$0xf]
    %v1696 = vld [vmem:[#allocation2 + $0x9c] sm:$0xff]
    %v1697 = vld [vmem:[#allocation2 + $0xa4] sm:$0xf]
    %v1698 = vld [vmem:[#allocation2 + $0xa8] sm:$0xff]
    %v1699 = vld [vmem:[#allocation2 + $0xb0] sm:$0xf]
    %v1700 = vld [vmem:[#allocation2 + $0xb4] sm:$0xff]
    %v1701 = vld [vmem:[#allocation2 + $0xbc] sm:$0xf]
    %v1702 = vld [vmem:[#allocation2 + $0xc0] sm:$0xff]
    %v1703 = vld [vmem:[#allocation2 + $0xc8] sm:$0xf]
    %v1704 = vld [vmem:[#allocation2 + $0xcc] sm:$0xff]
    %v1705 = vld [vmem:[#allocation2 + $0xd4] sm:$0xf]
    %v1706 = vld [vmem:[#allocation2 + $0xd8] sm:$0xff]
    %v1707 = vld [vmem:[#allocation2 + $0xe0] sm:$0xf]
    %v1708 = vld [vmem:[#allocation2 + $0xe4] sm:$0xff]
    %v1709 = vld [vmem:[#allocation2 + $0xec] sm:$0xf]
    %v1710 = vld [vmem:[#allocation2 + $0xf0] sm:$0xff]
    %v1711 = vld [vmem:[#allocation2 + $0xf8] sm:$0xf]
    %v1712 = vld [vmem:[#allocation2 + $0xfc] sm:$0xff]
    %v1713 = vld [vmem:[#allocation2 + $0x104] sm:$0xf]
    %v1714 = vld [vmem:[#allocation2 + $0x108] sm:$0xff]
    %v1715 = vld [vmem:[#allocation2 + $0x110] sm:$0xf]
    %v1716 = vld [vmem:[#allocation2 + $0x114] sm:$0xff]
    %v1717 = vld [vmem:[#allocation2 + $0x11c] sm:$0xf]
    %v1718 = vld [vmem:[#allocation2 + $0x120] sm:$0xff]
    %v1719 = vld [vmem:[#allocation2 + $0x128] sm:$0xf]
    %v1720 = vld [vmem:[#allocation2 + $0x12c] sm:$0xff]
    %v1721 = vld [vmem:[#allocation2 + $0x134] sm:$0xf]
    %v1722 = vld [vmem:[#allocation2 + $0x138] sm:$0xff]
    %v1723 = vld [vmem:[#allocation2 + $0x140] sm:$0xf]
    %v1724 = vld [vmem:[#allocation2 + $0x144] sm:$0xff]
    %v1725 = vld [vmem:[#allocation2 + $0x14c] sm:$0xf]
    %v1726 = vld [vmem:[#allocation2 + $0x150] sm:$0xff]
    %v1727 = vld [vmem:[#allocation2 + $0x158] sm:$0xf]
    %v1728 = vld [vmem:[#allocation2 + $0x15c] sm:$0xff]
    %v1729 = vld [vmem:[#allocation2 + $0x164] sm:$0xf]
    %v1730 = vld [vmem:[#allocation2 + $0x168] sm:$0xff]
    %v1731 = vld [vmem:[#allocation2 + $0x170] sm:$0xf]
    %v1732 = vld [vmem:[#allocation2 + $0x174] sm:$0xff]
    %v1733 = vld [vmem:[#allocation2 + $0x17c] sm:$0xf]
    %v1734 = vld [vmem:[#allocation2 + $0x180] sm:$0xff]
    %v1735 = vld [vmem:[#allocation2 + $0x188] sm:$0xf]
    %v1736 = vld [vmem:[#allocation2 + $0x18c] sm:$0xff]
    %v1737 = vld [vmem:[#allocation2 + $0x194] sm:$0xf]
    %v1738 = vld [vmem:[#allocation2 + $0x198] sm:$0xff]
    %v1739 = vld [vmem:[#allocation2 + $0x1a0] sm:$0xf]
    %v1740 = vld [vmem:[#allocation2 + $0x1a4] sm:$0xff]
    %v1741 = vld [vmem:[#allocation2 + $0x1ac] sm:$0xf]
    %v1742 = vld [vmem:[#allocation2 + $0x1b0] sm:$0xff]
    %v1743 = vld [vmem:[#allocation2 + $0x1b8] sm:$0xf]
    %v1744 = vld [vmem:[#allocation2 + $0x1bc] sm:$0xff]
    %v1745 = vld [vmem:[#allocation2 + $0x1c4] sm:$0xf]
    %v1746 = vld [vmem:[#allocation2 + $0x1c8] sm:$0xff]
    %v1747 = vld [vmem:[#allocation2 + $0x1d0] sm:$0xf]
    %v1748 = vld [vmem:[#allocation2 + $0x1d4] sm:$0xff]
    %v1749 = vld [vmem:[#allocation2 + $0x1dc] sm:$0xf]
    %v1750 = vld [vmem:[#allocation2 + $0x1e0] sm:$0xff]
    %v1751 = vld [vmem:[#allocation2 + $0x1e8] sm:$0xf]
    %v1752 = vld [vmem:[#allocation2 + $0x1ec] sm:$0xff]
    %v1753 = vld [vmem:[#allocation2 + $0x1f4] sm:$0xf]
    %v1754 = vld [vmem:[#allocation2 + $0x1f8] sm:$0xff]
    %v1755 = vld [vmem:[#allocation2 + $0x200] sm:$0xf]
    %v1756 = vld [vmem:[#allocation2 + $0x204] sm:$0xff]
    %v1757 = vld [vmem:[#allocation2 + $0x20c] sm:$0xf]
    %v1758 = vld [vmem:[#allocation2 + $0x210] sm:$0xff]
    %v1759 = vld [vmem:[#allocation2 + $0x218] sm:$0xf]
    %v1760 = vld [vmem:[#allocation2 + $0x21c] sm:$0xff]
    %v1761 = vld [vmem:[#allocation2 + $0x224] sm:$0xf]
    %v1762 = vld [vmem:[#allocation2 + $0x228] sm:$0xff]
    %v1763 = vld [vmem:[#allocation2 + $0x230] sm:$0xf]
    %v1764 = vld [vmem:[#allocation2 + $0x234] sm:$0xff]
    %v1765 = vld [vmem:[#allocation2 + $0x23c] sm:$0xf]
    %v1766 = vld [vmem:[#allocation2 + $0x240] sm:$0xff]
    %v1767 = vld [vmem:[#allocation2 + $0x248] sm:$0xf]
    %v1768 = vld [vmem:[#allocation2 + $0x24c] sm:$0xff]
    %v1769 = vld [vmem:[#allocation2 + $0x254] sm:$0xf]
    %v1770 = vld [vmem:[#allocation2 + $0x258] sm:$0xff]
    %v1771 = vld [vmem:[#allocation2 + $0x260] sm:$0xf]
    %v1772 = vld [vmem:[#allocation2 + $0x264] sm:$0xff]
    %v1773 = vld [vmem:[#allocation2 + $0x26c] sm:$0xf]
    %v1774 = vld [vmem:[#allocation2 + $0x270] sm:$0xff]
    %v1775 = vld [vmem:[#allocation2 + $0x278] sm:$0xf]
    %v1776 = vld [vmem:[#allocation2 + $0x27c] sm:$0xff]
    %v1777 = vld [vmem:[#allocation2 + $0x284] sm:$0xf]
    %v1778 = vld [vmem:[#allocation2 + $0x288] sm:$0xff]
    %v1779 = vld [vmem:[#allocation2 + $0x290] sm:$0xf]
    %v1780 = vld [vmem:[#allocation2 + $0x294] sm:$0xff]
    %v1781 = vld [vmem:[#allocation2 + $0x29c] sm:$0xf]
    %v1782 = vld [vmem:[#allocation2 + $0x2a0] sm:$0xff]
    %v1783 = vld [vmem:[#allocation2 + $0x2a8] sm:$0xf]
    %v1784 = vld [vmem:[#allocation2 + $0x2ac] sm:$0xff]
    %v1785 = vld [vmem:[#allocation2 + $0x2b4] sm:$0xf]
    %v1786 = vld [vmem:[#allocation2 + $0x2b8] sm:$0xff]
    %v1787 = vld [vmem:[#allocation2 + $0x2c0] sm:$0xf]
    %v1788 = vld [vmem:[#allocation2 + $0x2c4] sm:$0xff]
    %v1789 = vld [vmem:[#allocation2 + $0x2cc] sm:$0xf]
    %v1790 = vld [vmem:[#allocation2 + $0x2d0] sm:$0xff]
    %v1791 = vld [vmem:[#allocation2 + $0x2d8] sm:$0xf]
    %v1792 = vld [vmem:[#allocation2 + $0x2dc] sm:$0xff]
    %v1793 = vld [vmem:[#allocation2 + $0x2e4] sm:$0xf]
    %v1794 = vld [vmem:[#allocation2 + $0x2e8] sm:$0xff]
    %v1795 = vld [vmem:[#allocation2 + $0x2f0] sm:$0xf]
    %v1796 = vld [vmem:[#allocation2 + $0x2f4] sm:$0xff]
    %v1797 = vld [vmem:[#allocation2 + $0x2fc] sm:$0xf]
    %v1798 = vld [vmem:[%s4] sm:$0x3f]
    %v1831 = vunpack.c.l.b16 %v74
    %v1832 = vunpack.c.l.b16 %v75
    %v1833 = vunpack.c.l.b16 %v76
    %v1834 = vunpack.c.l.b16 %v77
    %v1835 = vunpack.c.l.b16 %v78
    %v1836 = vunpack.c.l.b16 %v79
    %v1837 = vunpack.c.l.b16 %v80
    %v1838 = vunpack.c.l.b16 %v81
    %v1839 = vunpack.c.l.b16 %v82
    %v1840 = vunpack.c.l.b16 %v83
    %v1841 = vunpack.c.l.b16 %v84
    %v1842 = vunpack.c.l.b16 %v85
    %v1843 = vunpack.c.l.b16 %v86
    %v1844 = vunpack.c.l.b16 %v87
    %v1845 = vunpack.c.l.b16 %v88
    %v1846 = vunpack.c.l.b16 %v89
    %v1847 = vunpack.c.l.b16 %v90
    %v1848 = vunpack.c.l.b16 %v91
    %v1849 = vunpack.c.l.b16 %v92
    %v1850 = vunpack.c.l.b16 %v93
    %v1851 = vunpack.c.l.b16 %v94
    %v1852 = vunpack.c.l.b16 %v95
    %v1853 = vunpack.c.l.b16 %v96
    %v1854 = vunpack.c.l.b16 %v97
    %v1855 = vunpack.c.l.b16 %v98
    %v1856 = vunpack.c.l.b16 %v99
    %v1857 = vunpack.c.l.b16 %v100
    %v1858 = vunpack.c.l.b16 %v101
    %v1859 = vunpack.c.l.b16 %v102
    %v1860 = vunpack.c.l.b16 %v103
    %v1861 = vunpack.c.l.b16 %v104
    %v1862 = vunpack.c.l.b16 %v105
    %v1863 = vpack.c.b16 %v1832, %v1831
    %v1864 = vpack.c.b16 %v1834, %v1833
    %v1865 = vpack.c.b16 %v1836, %v1835
    %v1866 = vpack.c.b16 %v1838, %v1837
    %v1867 = vpack.c.b16 %v1840, %v1839
    %v1868 = vpack.c.b16 %v1842, %v1841
    %v1869 = vpack.c.b16 %v1844, %v1843
    %v1870 = vpack.c.b16 %v1846, %v1845
    %v1871 = vpack.c.b16 %v1848, %v1847
    %v1872 = vpack.c.b16 %v1850, %v1849
    %v1873 = vpack.c.b16 %v1852, %v1851
    %v1874 = vpack.c.b16 %v1854, %v1853
    %v1875 = vpack.c.b16 %v1856, %v1855
    %v1876 = vpack.c.b16 %v1858, %v1857
    %v1877 = vpack.c.b16 %v1860, %v1859
    %v1878 = vpack.c.b16 %v1862, %v1861
    %v1880 = vcombine.high %v1798, %v1798
    %v1882 = vunpack.c.l.s4 1983009808
    %v1883 = vunpack.c.0.s8 %v1882
    %v1884 = vlaneseq
    %v1885 = vshrl.u32 %v1884, 7
    %v1886 = vsub.s32 %v1883, %v1885
    %v1887 = vrot.slane %v1798, %v1886
    %v1889 = vunpack.c.l.s4 1983009808
    %v1890 = vunpack.c.0.s8 %v1889
    %v1891 = vlaneseq
    %v1892 = vshrl.u32 %v1891, 7
    %v1893 = vsub.s32 %v1890, %v1892
    %v1894 = vrot.slane %v1880, %v1893
    %v1895 = vcombine.high %v1887, %v1887
    %vm1896 = vcmask 31744
    %v1898 = vsel %vm1896, %v1863, 0
    %v1901 = vsel %vm1896, %v1864, 0
    %v1904 = vsel %vm1896, %v1865, 0
    %v1907 = vsel %vm1896, %v1866, 0
    %v1910 = vsel %vm1896, %v1867, 0
    %v1913 = vsel %vm1896, %v1868, 0
    %v1916 = vsel %vm1896, %v1869, 0
    %v1919 = vsel %vm1896, %v1870, 0
    %v1922 = vsel %vm1896, %v1871, 0
    %v1925 = vsel %vm1896, %v1872, 0
    %v1928 = vsel %vm1896, %v1873, 0
    %v1931 = vsel %vm1896, %v1874, 0
    %v1934 = vsel %vm1896, %v1875, 0
    %v1937 = vsel %vm1896, %v1876, 0
    %v1940 = vsel %vm1896, %v1877, 0
    %v1943 = vsel %vm1896, %v1878, 0
    %vm1945 = vcmask 1041408
    %v1947 = vsel %vm1945, %v1887, 0
    %v1950 = vsel %vm1945, %v1895, 0
    %v1953 = vsel %vm1945, %v1894, 0
    %1955 = vmatprep.subr.bf16.mxu0 0
    %1956 = vmatpush1.bf16.msra.mxu0 0
    %1957 = vmatprep.subr.bf16.mxu0 0
    %1958 = vmatpush1.bf16.msra.mxu0 0
    %1959 = vmatprep.subr.bf16.mxu0 0
    %1960 = vmatpush1.bf16.msra.mxu0 0
    %1961 = vmatprep.subr.bf16.mxu0 0
    %1962 = vmatpush1.bf16.msra.mxu0 0
    %1963 = vmatprep.subr.bf16.mxu0 0
    %1964 = vmatpush1.bf16.msra.mxu0 0
    %1965 = vmatprep.subr.bf16.mxu0 0
    %1966 = vmatpush1.bf16.msra.mxu0 0
    %1967 = vmatprep.subr.bf16.mxu0 0
    %1968 = vmatpush1.bf16.msra.mxu0 0
    %1969 = vmatprep.subr.bf16.mxu0 %v1950
    %1970 = vmatpush1.bf16.msra.mxu0 %v1947
    %1971 = vmatprep.subr.bf16.mxu0 0
    %1972 = vmatpush2.bf16.msra.mxu0 0
    %1973 = vmatprep.subr.bf16.mxu0 0
    %1974 = vmatpush2.bf16.msra.mxu0 0
    %1975 = vmatprep.subr.bf16.mxu0 0
    %1976 = vmatpush2.bf16.msra.mxu0 0
    %1977 = vmatprep.subr.bf16.mxu0 0
    %1978 = vmatpush2.bf16.msra.mxu0 0
    %1979 = vmatprep.subr.bf16.mxu0 0
    %1980 = vmatpush2.bf16.msra.mxu0 0
    %1981 = vmatprep.subr.bf16.mxu0 0
    %1982 = vmatpush2.bf16.msra.mxu0 0
    %1983 = vmatprep.subr.bf16.mxu0 0
    %1984 = vmatpush2.bf16.msra.mxu0 0
    %1985 = vmatprep.subr.bf16.mxu0 0
    %1986 = vmatpush2.bf16.msra.mxu0 0
    %1987 = vmatprep.mubr.bf16.mxu0 0
    %1988 = vmatmul.mubr.bf16.gmra.mxu0 %v1898
    %v1989 = vpop.f32.mrf.mxu0
    %v1990 = vadd.f32 0.0, %v1989
    %v1991 = vpop.f32.mrf.mxu0
    %v1992 = vadd.f32 0.0, %v1991
    %v1993 = vpop.f32.mrf.mxu0
    %v1994 = vadd.f32 0.0, %v1993
    %v1995 = vpop.f32.mrf.mxu0
    %v1996 = vadd.f32 0.0, %v1995
    %1997 = vmatprep.mubr.bf16.mxu0 0
    %1998 = vmatmul.mubr.bf16.gmra.mxu0 %v1901
    %v1999 = vpop.f32.mrf.mxu0
    %v2000 = vadd.f32 0.0, %v1999
    %v2001 = vpop.f32.mrf.mxu0
    %v2002 = vadd.f32 0.0, %v2001
    %v2003 = vpop.f32.mrf.mxu0
    %v2004 = vadd.f32 0.0, %v2003
    %v2005 = vpop.f32.mrf.mxu0
    %v2006 = vadd.f32 0.0, %v2005
    %2007 = vmatprep.mubr.bf16.mxu0 0
    %2008 = vmatmul.mubr.bf16.gmra.mxu0 %v1904
    %v2009 = vpop.f32.mrf.mxu0
    %v2010 = vadd.f32 0.0, %v2009
    %v2011 = vpop.f32.mrf.mxu0
    %v2012 = vadd.f32 0.0, %v2011
    %v2013 = vpop.f32.mrf.mxu0
    %v2014 = vadd.f32 0.0, %v2013
    %v2015 = vpop.f32.mrf.mxu0
    %v2016 = vadd.f32 0.0, %v2015
    %2017 = vmatprep.mubr.bf16.mxu0 0
    %2018 = vmatmul.mubr.bf16.gmra.mxu0 %v1907
    %v2019 = vpop.f32.mrf.mxu0
    %v2020 = vadd.f32 0.0, %v2019
    %v2021 = vpop.f32.mrf.mxu0
    %v2022 = vadd.f32 0.0, %v2021
    %v2023 = vpop.f32.mrf.mxu0
    %v2024 = vadd.f32 0.0, %v2023
    %v2025 = vpop.f32.mrf.mxu0
    %v2026 = vadd.f32 0.0, %v2025
    %2027 = vmatprep.mubr.bf16.mxu0 0
    %2028 = vmatmul.mubr.bf16.gmra.mxu0 %v1910
    %v2029 = vpop.f32.mrf.mxu0
    %v2030 = vadd.f32 0.0, %v2029
    %v2031 = vpop.f32.mrf.mxu0
    %v2032 = vadd.f32 0.0, %v2031
    %v2033 = vpop.f32.mrf.mxu0
    %v2034 = vadd.f32 0.0, %v2033
    %v2035 = vpop.f32.mrf.mxu0
    %v2036 = vadd.f32 0.0, %v2035
    %2037 = vmatprep.mubr.bf16.mxu0 0
    %2038 = vmatmul.mubr.bf16.gmra.mxu0 %v1913
    %v2039 = vpop.f32.mrf.mxu0
    %v2040 = vadd.f32 0.0, %v2039
    %v2041 = vpop.f32.mrf.mxu0
    %v2042 = vadd.f32 0.0, %v2041
    %v2043 = vpop.f32.mrf.mxu0
    %v2044 = vadd.f32 0.0, %v2043
    %v2045 = vpop.f32.mrf.mxu0
    %v2046 = vadd.f32 0.0, %v2045
    %2047 = vmatprep.mubr.bf16.mxu0 0
    %2048 = vmatmul.mubr.bf16.gmra.mxu0 %v1916
    %v2049 = vpop.f32.mrf.mxu0
    %v2050 = vadd.f32 0.0, %v2049
    %v2051 = vpop.f32.mrf.mxu0
    %v2052 = vadd.f32 0.0, %v2051
    %v2053 = vpop.f32.mrf.mxu0
    %v2054 = vadd.f32 0.0, %v2053
    %v2055 = vpop.f32.mrf.mxu0
    %v2056 = vadd.f32 0.0, %v2055
    %2057 = vmatprep.mubr.bf16.mxu0 0
    %2058 = vmatmul.mubr.bf16.gmra.mxu0 %v1919
    %v2059 = vpop.f32.mrf.mxu0
    %v2060 = vadd.f32 0.0, %v2059
    %v2061 = vpop.f32.mrf.mxu0
    %v2062 = vadd.f32 0.0, %v2061
    %v2063 = vpop.f32.mrf.mxu0
    %v2064 = vadd.f32 0.0, %v2063
    %v2065 = vpop.f32.mrf.mxu0
    %v2066 = vadd.f32 0.0, %v2065
    %2067 = vmatprep.mubr.bf16.mxu0 0
    %2068 = vmatmul.mubr.bf16.gmra.mxu0 %v1922
    %v2069 = vpop.f32.mrf.mxu0
    %v2070 = vadd.f32 0.0, %v2069
    %v2071 = vpop.f32.mrf.mxu0
    %v2072 = vadd.f32 0.0, %v2071
    %v2073 = vpop.f32.mrf.mxu0
    %v2074 = vadd.f32 0.0, %v2073
    %v2075 = vpop.f32.mrf.mxu0
    %v2076 = vadd.f32 0.0, %v2075
    %2077 = vmatprep.mubr.bf16.mxu0 0
    %2078 = vmatmul.mubr.bf16.gmra.mxu0 %v1925
    %v2079 = vpop.f32.mrf.mxu0
    %v2080 = vadd.f32 0.0, %v2079
    %v2081 = vpop.f32.mrf.mxu0
    %v2082 = vadd.f32 0.0, %v2081
    %v2083 = vpop.f32.mrf.mxu0
    %v2084 = vadd.f32 0.0, %v2083
    %v2085 = vpop.f32.mrf.mxu0
    %v2086 = vadd.f32 0.0, %v2085
    %2087 = vmatprep.mubr.bf16.mxu0 0
    %2088 = vmatmul.mubr.bf16.gmra.mxu0 %v1928
    %v2089 = vpop.f32.mrf.mxu0
    %v2090 = vadd.f32 0.0, %v2089
    %v2091 = vpop.f32.mrf.mxu0
    %v2092 = vadd.f32 0.0, %v2091
    %v2093 = vpop.f32.mrf.mxu0
    %v2094 = vadd.f32 0.0, %v2093
    %v2095 = vpop.f32.mrf.mxu0
    %v2096 = vadd.f32 0.0, %v2095
    %2097 = vmatprep.mubr.bf16.mxu0 0
    %2098 = vmatmul.mubr.bf16.gmra.mxu0 %v1931
    %v2099 = vpop.f32.mrf.mxu0
    %v2100 = vadd.f32 0.0, %v2099
    %v2101 = vpop.f32.mrf.mxu0
    %v2102 = vadd.f32 0.0, %v2101
    %v2103 = vpop.f32.mrf.mxu0
    %v2104 = vadd.f32 0.0, %v2103
    %v2105 = vpop.f32.mrf.mxu0
    %v2106 = vadd.f32 0.0, %v2105
    %2107 = vmatprep.mubr.bf16.mxu0 0
    %2108 = vmatmul.mubr.bf16.gmra.mxu0 %v1934
    %v2109 = vpop.f32.mrf.mxu0
    %v2110 = vadd.f32 0.0, %v2109
    %v2111 = vpop.f32.mrf.mxu0
    %v2112 = vadd.f32 0.0, %v2111
    %v2113 = vpop.f32.mrf.mxu0
    %v2114 = vadd.f32 0.0, %v2113
    %v2115 = vpop.f32.mrf.mxu0
    %v2116 = vadd.f32 0.0, %v2115
    %2117 = vmatprep.mubr.bf16.mxu0 0
    %2118 = vmatmul.mubr.bf16.gmra.mxu0 %v1937
    %v2119 = vpop.f32.mrf.mxu0
    %v2120 = vadd.f32 0.0, %v2119
    %v2121 = vpop.f32.mrf.mxu0
    %v2122 = vadd.f32 0.0, %v2121
    %v2123 = vpop.f32.mrf.mxu0
    %v2124 = vadd.f32 0.0, %v2123
    %v2125 = vpop.f32.mrf.mxu0
    %v2126 = vadd.f32 0.0, %v2125
    %2127 = vmatprep.mubr.bf16.mxu0 0
    %2128 = vmatmul.mubr.bf16.gmra.mxu0 %v1940
    %v2129 = vpop.f32.mrf.mxu0
    %v2130 = vadd.f32 0.0, %v2129
    %v2131 = vpop.f32.mrf.mxu0
    %v2132 = vadd.f32 0.0, %v2131
    %v2133 = vpop.f32.mrf.mxu0
    %v2134 = vadd.f32 0.0, %v2133
    %v2135 = vpop.f32.mrf.mxu0
    %v2136 = vadd.f32 0.0, %v2135
    %2137 = vmatprep.mubr.bf16.mxu0 0
    %2138 = vmatmul.mubr.bf16.gmra.mxu0 %v1943
    %v2139 = vpop.f32.mrf.mxu0
    %v2140 = vadd.f32 0.0, %v2139
    %v2141 = vpop.f32.mrf.mxu0
    %v2142 = vadd.f32 0.0, %v2141
    %v2143 = vpop.f32.mrf.mxu0
    %v2144 = vadd.f32 0.0, %v2143
    %v2145 = vpop.f32.mrf.mxu0
    %v2146 = vadd.f32 0.0, %v2145
    %2147 = vdwg.mxu0
    %2148 = vmatprep.subr.bf16.mxu0 0
    %2149 = vmatpush1.bf16.msra.mxu0 0
    %2150 = vmatprep.subr.bf16.mxu0 0
    %2151 = vmatpush1.bf16.msra.mxu0 0
    %2152 = vmatprep.subr.bf16.mxu0 0
    %2153 = vmatpush1.bf16.msra.mxu0 0
    %2154 = vmatprep.subr.bf16.mxu0 0
    %2155 = vmatpush1.bf16.msra.mxu0 0
    %2156 = vmatprep.subr.bf16.mxu0 0
    %2157 = vmatpush1.bf16.msra.mxu0 0
    %2158 = vmatprep.subr.bf16.mxu0 0
    %2159 = vmatpush1.bf16.msra.mxu0 0
    %2160 = vmatprep.subr.bf16.mxu0 0
    %2161 = vmatpush1.bf16.msra.mxu0 0
    %2162 = vmatprep.subr.bf16.mxu0 0
    %2163 = vmatpush1.bf16.msra.mxu0 %v1953
    %2164 = vmatprep.subr.bf16.mxu0 0
    %2165 = vmatpush2.bf16.msra.mxu0 0
    %2166 = vmatprep.subr.bf16.mxu0 0
    %2167 = vmatpush2.bf16.msra.mxu0 0
    %2168 = vmatprep.subr.bf16.mxu0 0
    %2169 = vmatpush2.bf16.msra.mxu0 0
    %2170 = vmatprep.subr.bf16.mxu0 0
    %2171 = vmatpush2.bf16.msra.mxu0 0
    %2172 = vmatprep.subr.bf16.mxu0 0
    %2173 = vmatpush2.bf16.msra.mxu0 0
    %2174 = vmatprep.subr.bf16.mxu0 0
    %2175 = vmatpush2.bf16.msra.mxu0 0
    %2176 = vmatprep.subr.bf16.mxu0 0
    %2177 = vmatpush2.bf16.msra.mxu0 0
    %2178 = vmatprep.subr.bf16.mxu0 0
    %2179 = vmatpush2.bf16.msra.mxu0 0
    %2180 = vmatprep.mubr.bf16.mxu0 0
    %2181 = vmatmul.mubr.bf16.gmra.mxu0 %v1898
    %v2182 = vpop.f32.mrf.mxu0
    %v2183 = vadd.f32 0.0, %v2182
    %v2184 = vpop.f32.mrf.mxu0
    %v2185 = vpop.f32.mrf.mxu0
    %v2186 = vadd.f32 0.0, %v2185
    %v2187 = vpop.f32.mrf.mxu0
    %2188 = vmatprep.mubr.bf16.mxu0 0
    %2189 = vmatmul.mubr.bf16.gmra.mxu0 %v1901
    %v2190 = vpop.f32.mrf.mxu0
    %v2191 = vadd.f32 0.0, %v2190
    %v2192 = vpop.f32.mrf.mxu0
    %v2193 = vpop.f32.mrf.mxu0
    %v2194 = vadd.f32 0.0, %v2193
    %v2195 = vpop.f32.mrf.mxu0
    %2196 = vmatprep.mubr.bf16.mxu0 0
    %2197 = vmatmul.mubr.bf16.gmra.mxu0 %v1904
    %v2198 = vpop.f32.mrf.mxu0
    %v2199 = vadd.f32 0.0, %v2198
    %v2200 = vpop.f32.mrf.mxu0
    %v2201 = vpop.f32.mrf.mxu0
    %v2202 = vadd.f32 0.0, %v2201
    %v2203 = vpop.f32.mrf.mxu0
    %2204 = vmatprep.mubr.bf16.mxu0 0
    %2205 = vmatmul.mubr.bf16.gmra.mxu0 %v1907
    %v2206 = vpop.f32.mrf.mxu0
    %v2207 = vadd.f32 0.0, %v2206
    %v2208 = vpop.f32.mrf.mxu0
    %v2209 = vpop.f32.mrf.mxu0
    %v2210 = vadd.f32 0.0, %v2209
    %v2211 = vpop.f32.mrf.mxu0
    %2212 = vmatprep.mubr.bf16.mxu0 0
    %2213 = vmatmul.mubr.bf16.gmra.mxu0 %v1910
    %v2214 = vpop.f32.mrf.mxu0
    %v2215 = vadd.f32 0.0, %v2214
    %v2216 = vpop.f32.mrf.mxu0
    %v2217 = vpop.f32.mrf.mxu0
    %v2218 = vadd.f32 0.0, %v2217
    %v2219 = vpop.f32.mrf.mxu0
    %2220 = vmatprep.mubr.bf16.mxu0 0
    %2221 = vmatmul.mubr.bf16.gmra.mxu0 %v1913
    %v2222 = vpop.f32.mrf.mxu0
    %v2223 = vadd.f32 0.0, %v2222
    %v2224 = vpop.f32.mrf.mxu0
    %v2225 = vpop.f32.mrf.mxu0
    %v2226 = vadd.f32 0.0, %v2225
    %v2227 = vpop.f32.mrf.mxu0
    %2228 = vmatprep.mubr.bf16.mxu0 0
    %2229 = vmatmul.mubr.bf16.gmra.mxu0 %v1916
    %v2230 = vpop.f32.mrf.mxu0
    %v2231 = vadd.f32 0.0, %v2230
    %v2232 = vpop.f32.mrf.mxu0
    %v2233 = vpop.f32.mrf.mxu0
    %v2234 = vadd.f32 0.0, %v2233
    %v2235 = vpop.f32.mrf.mxu0
    %2236 = vmatprep.mubr.bf16.mxu0 0
    %2237 = vmatmul.mubr.bf16.gmra.mxu0 %v1919
    %v2238 = vpop.f32.mrf.mxu0
    %v2239 = vadd.f32 0.0, %v2238
    %v2240 = vpop.f32.mrf.mxu0
    %v2241 = vpop.f32.mrf.mxu0
    %v2242 = vadd.f32 0.0, %v2241
    %v2243 = vpop.f32.mrf.mxu0
    %2244 = vmatprep.mubr.bf16.mxu0 0
    %2245 = vmatmul.mubr.bf16.gmra.mxu0 %v1922
    %v2246 = vpop.f32.mrf.mxu0
    %v2247 = vadd.f32 0.0, %v2246
    %v2248 = vpop.f32.mrf.mxu0
    %v2249 = vpop.f32.mrf.mxu0
    %v2250 = vadd.f32 0.0, %v2249
    %v2251 = vpop.f32.mrf.mxu0
    %2252 = vmatprep.mubr.bf16.mxu0 0
    %2253 = vmatmul.mubr.bf16.gmra.mxu0 %v1925
    %v2254 = vpop.f32.mrf.mxu0
    %v2255 = vadd.f32 0.0, %v2254
    %v2256 = vpop.f32.mrf.mxu0
    %v2257 = vpop.f32.mrf.mxu0
    %v2258 = vadd.f32 0.0, %v2257
    %v2259 = vpop.f32.mrf.mxu0
    %2260 = vmatprep.mubr.bf16.mxu0 0
    %2261 = vmatmul.mubr.bf16.gmra.mxu0 %v1928
    %v2262 = vpop.f32.mrf.mxu0
    %v2263 = vadd.f32 0.0, %v2262
    %v2264 = vpop.f32.mrf.mxu0
    %v2265 = vpop.f32.mrf.mxu0
    %v2266 = vadd.f32 0.0, %v2265
    %v2267 = vpop.f32.mrf.mxu0
    %2268 = vmatprep.mubr.bf16.mxu0 0
    %2269 = vmatmul.mubr.bf16.gmra.mxu0 %v1931
    %v2270 = vpop.f32.mrf.mxu0
    %v2271 = vadd.f32 0.0, %v2270
    %v2272 = vpop.f32.mrf.mxu0
    %v2273 = vpop.f32.mrf.mxu0
    %v2274 = vadd.f32 0.0, %v2273
    %v2275 = vpop.f32.mrf.mxu0
    %2276 = vmatprep.mubr.bf16.mxu0 0
    %2277 = vmatmul.mubr.bf16.gmra.mxu0 %v1934
    %v2278 = vpop.f32.mrf.mxu0
    %v2279 = vadd.f32 0.0, %v2278
    %v2280 = vpop.f32.mrf.mxu0
    %v2281 = vpop.f32.mrf.mxu0
    %v2282 = vadd.f32 0.0, %v2281
    %v2283 = vpop.f32.mrf.mxu0
    %2284 = vmatprep.mubr.bf16.mxu0 0
    %2285 = vmatmul.mubr.bf16.gmra.mxu0 %v1937
    %v2286 = vpop.f32.mrf.mxu0
    %v2287 = vadd.f32 0.0, %v2286
    %v2288 = vpop.f32.mrf.mxu0
    %v2289 = vpop.f32.mrf.mxu0
    %v2290 = vadd.f32 0.0, %v2289
    %v2291 = vpop.f32.mrf.mxu0
    %2292 = vmatprep.mubr.bf16.mxu0 0
    %2293 = vmatmul.mubr.bf16.gmra.mxu0 %v1940
    %v2294 = vpop.f32.mrf.mxu0
    %v2295 = vadd.f32 0.0, %v2294
    %v2296 = vpop.f32.mrf.mxu0
    %v2297 = vpop.f32.mrf.mxu0
    %v2298 = vadd.f32 0.0, %v2297
    %v2299 = vpop.f32.mrf.mxu0
    %2300 = vmatprep.mubr.bf16.mxu0 0
    %2301 = vmatmul.mubr.bf16.gmra.mxu0 %v1943
    %v2302 = vpop.f32.mrf.mxu0
    %v2303 = vadd.f32 0.0, %v2302
    %v2304 = vpop.f32.mrf.mxu0
    %v2305 = vpop.f32.mrf.mxu0
    %v2306 = vadd.f32 0.0, %v2305
    %v2307 = vpop.f32.mrf.mxu0
    %2308 = vdwg.mxu0
    %v2437 = vunpack.c.l.b16 %v1670
    %v2438 = vunpack.c.h.b16 %v1670
    %v2439 = vunpack.c.l.b16 %v1671
    %v2440 = vunpack.c.l.b16 %v1672
    %v2441 = vunpack.c.h.b16 %v1672
    %v2442 = vunpack.c.l.b16 %v1673
    %v2443 = vunpack.c.l.b16 %v1674
    %v2444 = vunpack.c.h.b16 %v1674
    %v2445 = vunpack.c.l.b16 %v1675
    %v2446 = vunpack.c.l.b16 %v1676
    %v2447 = vunpack.c.h.b16 %v1676
    %v2448 = vunpack.c.l.b16 %v1677
    %v2449 = vunpack.c.l.b16 %v1678
    %v2450 = vunpack.c.h.b16 %v1678
    %v2451 = vunpack.c.l.b16 %v1679
    %v2452 = vunpack.c.l.b16 %v1680
    %v2453 = vunpack.c.h.b16 %v1680
    %v2454 = vunpack.c.l.b16 %v1681
    %v2455 = vunpack.c.l.b16 %v1682
    %v2456 = vunpack.c.h.b16 %v1682
    %v2457 = vunpack.c.l.b16 %v1683
    %v2458 = vunpack.c.l.b16 %v1684
    %v2459 = vunpack.c.h.b16 %v1684
    %v2460 = vunpack.c.l.b16 %v1685
    %v2461 = vunpack.c.l.b16 %v1686
    %v2462 = vunpack.c.h.b16 %v1686
    %v2463 = vunpack.c.l.b16 %v1687
    %v2464 = vunpack.c.l.b16 %v1688
    %v2465 = vunpack.c.h.b16 %v1688
    %v2466 = vunpack.c.l.b16 %v1689
    %v2467 = vunpack.c.l.b16 %v1690
    %v2468 = vunpack.c.h.b16 %v1690
    %v2469 = vunpack.c.l.b16 %v1691
    %v2470 = vunpack.c.l.b16 %v1692
    %v2471 = vunpack.c.h.b16 %v1692
    %v2472 = vunpack.c.l.b16 %v1693
    %v2473 = vunpack.c.l.b16 %v1694
    %v2474 = vunpack.c.h.b16 %v1694
    %v2475 = vunpack.c.l.b16 %v1695
    %v2476 = vunpack.c.l.b16 %v1696
    %v2477 = vunpack.c.h.b16 %v1696
    %v2478 = vunpack.c.l.b16 %v1697
    %v2479 = vunpack.c.l.b16 %v1698
    %v2480 = vunpack.c.h.b16 %v1698
    %v2481 = vunpack.c.l.b16 %v1699
    %v2482 = vunpack.c.l.b16 %v1700
    %v2483 = vunpack.c.h.b16 %v1700
    %v2484 = vunpack.c.l.b16 %v1701
    %v2485 = vunpack.c.l.b16 %v1702
    %v2486 = vunpack.c.h.b16 %v1702
    %v2487 = vunpack.c.l.b16 %v1703
    %v2488 = vunpack.c.l.b16 %v1704
    %v2489 = vunpack.c.h.b16 %v1704
    %v2490 = vunpack.c.l.b16 %v1705
    %v2491 = vunpack.c.l.b16 %v1706
    %v2492 = vunpack.c.h.b16 %v1706
    %v2493 = vunpack.c.l.b16 %v1707
    %v2494 = vunpack.c.l.b16 %v1708
    %v2495 = vunpack.c.h.b16 %v1708
    %v2496 = vunpack.c.l.b16 %v1709
    %v2497 = vunpack.c.l.b16 %v1710
    %v2498 = vunpack.c.h.b16 %v1710
    %v2499 = vunpack.c.l.b16 %v1711
    %v2500 = vunpack.c.l.b16 %v1712
    %v2501 = vunpack.c.h.b16 %v1712
    %v2502 = vunpack.c.l.b16 %v1713
    %v2503 = vunpack.c.l.b16 %v1714
    %v2504 = vunpack.c.h.b16 %v1714
    %v2505 = vunpack.c.l.b16 %v1715
    %v2506 = vunpack.c.l.b16 %v1716
    %v2507 = vunpack.c.h.b16 %v1716
    %v2508 = vunpack.c.l.b16 %v1717
    %v2509 = vunpack.c.l.b16 %v1718
    %v2510 = vunpack.c.h.b16 %v1718
    %v2511 = vunpack.c.l.b16 %v1719
    %v2512 = vunpack.c.l.b16 %v1720
    %v2513 = vunpack.c.h.b16 %v1720
    %v2514 = vunpack.c.l.b16 %v1721
    %v2515 = vunpack.c.l.b16 %v1722
    %v2516 = vunpack.c.h.b16 %v1722
    %v2517 = vunpack.c.l.b16 %v1723
    %v2518 = vunpack.c.l.b16 %v1724
    %v2519 = vunpack.c.h.b16 %v1724
    %v2520 = vunpack.c.l.b16 %v1725
    %v2521 = vunpack.c.l.b16 %v1726
    %v2522 = vunpack.c.h.b16 %v1726
    %v2523 = vunpack.c.l.b16 %v1727
    %v2524 = vunpack.c.l.b16 %v1728
    %v2525 = vunpack.c.h.b16 %v1728
    %v2526 = vunpack.c.l.b16 %v1729
    %v2527 = vunpack.c.l.b16 %v1730
    %v2528 = vunpack.c.h.b16 %v1730
    %v2529 = vunpack.c.l.b16 %v1731
    %v2530 = vunpack.c.l.b16 %v1732
    %v2531 = vunpack.c.h.b16 %v1732
    %v2532 = vunpack.c.l.b16 %v1733
    %v2533 = vunpack.c.l.b16 %v1734
    %v2534 = vunpack.c.h.b16 %v1734
    %v2535 = vunpack.c.l.b16 %v1735
    %v2536 = vunpack.c.l.b16 %v1736
    %v2537 = vunpack.c.h.b16 %v1736
    %v2538 = vunpack.c.l.b16 %v1737
    %v2539 = vunpack.c.l.b16 %v1738
    %v2540 = vunpack.c.h.b16 %v1738
    %v2541 = vunpack.c.l.b16 %v1739
    %v2542 = vunpack.c.l.b16 %v1740
    %v2543 = vunpack.c.h.b16 %v1740
    %v2544 = vunpack.c.l.b16 %v1741
    %v2545 = vunpack.c.l.b16 %v1742
    %v2546 = vunpack.c.h.b16 %v1742
    %v2547 = vunpack.c.l.b16 %v1743
    %v2548 = vunpack.c.l.b16 %v1744
    %v2549 = vunpack.c.h.b16 %v1744
    %v2550 = vunpack.c.l.b16 %v1745
    %v2551 = vunpack.c.l.b16 %v1746
    %v2552 = vunpack.c.h.b16 %v1746
    %v2553 = vunpack.c.l.b16 %v1747
    %v2554 = vunpack.c.l.b16 %v1748
    %v2555 = vunpack.c.h.b16 %v1748
    %v2556 = vunpack.c.l.b16 %v1749
    %v2557 = vunpack.c.l.b16 %v1750
    %v2558 = vunpack.c.h.b16 %v1750
    %v2559 = vunpack.c.l.b16 %v1751
    %v2560 = vunpack.c.l.b16 %v1752
    %v2561 = vunpack.c.h.b16 %v1752
    %v2562 = vunpack.c.l.b16 %v1753
    %v2563 = vunpack.c.l.b16 %v1754
    %v2564 = vunpack.c.h.b16 %v1754
    %v2565 = vunpack.c.l.b16 %v1755
    %v2566 = vunpack.c.l.b16 %v1756
    %v2567 = vunpack.c.h.b16 %v1756
    %v2568 = vunpack.c.l.b16 %v1757
    %v2569 = vunpack.c.l.b16 %v1758
    %v2570 = vunpack.c.h.b16 %v1758
    %v2571 = vunpack.c.l.b16 %v1759
    %v2572 = vunpack.c.l.b16 %v1760
    %v2573 = vunpack.c.h.b16 %v1760
    %v2574 = vunpack.c.l.b16 %v1761
    %v2575 = vunpack.c.l.b16 %v1762
    %v2576 = vunpack.c.h.b16 %v1762
    %v2577 = vunpack.c.l.b16 %v1763
    %v2578 = vunpack.c.l.b16 %v1764
    %v2579 = vunpack.c.h.b16 %v1764
    %v2580 = vunpack.c.l.b16 %v1765
    %v2581 = vunpack.c.l.b16 %v1766
    %v2582 = vunpack.c.h.b16 %v1766
    %v2583 = vunpack.c.l.b16 %v1767
    %v2584 = vunpack.c.l.b16 %v1768
    %v2585 = vunpack.c.h.b16 %v1768
    %v2586 = vunpack.c.l.b16 %v1769
    %v2587 = vunpack.c.l.b16 %v1770
    %v2588 = vunpack.c.h.b16 %v1770
    %v2589 = vunpack.c.l.b16 %v1771
    %v2590 = vunpack.c.l.b16 %v1772
    %v2591 = vunpack.c.h.b16 %v1772
    %v2592 = vunpack.c.l.b16 %v1773
    %v2593 = vunpack.c.l.b16 %v1774
    %v2594 = vunpack.c.h.b16 %v1774
    %v2595 = vunpack.c.l.b16 %v1775
    %v2596 = vunpack.c.l.b16 %v1776
    %v2597 = vunpack.c.h.b16 %v1776
    %v2598 = vunpack.c.l.b16 %v1777
    %v2599 = vunpack.c.l.b16 %v1778
    %v2600 = vunpack.c.h.b16 %v1778
    %v2601 = vunpack.c.l.b16 %v1779
    %v2602 = vunpack.c.l.b16 %v1780
    %v2603 = vunpack.c.h.b16 %v1780
    %v2604 = vunpack.c.l.b16 %v1781
    %v2605 = vunpack.c.l.b16 %v1782
    %v2606 = vunpack.c.h.b16 %v1782
    %v2607 = vunpack.c.l.b16 %v1783
    %v2608 = vunpack.c.l.b16 %v1784
    %v2609 = vunpack.c.h.b16 %v1784
    %v2610 = vunpack.c.l.b16 %v1785
    %v2611 = vunpack.c.l.b16 %v1786
    %v2612 = vunpack.c.h.b16 %v1786
    %v2613 = vunpack.c.l.b16 %v1787
    %v2614 = vunpack.c.l.b16 %v1788
    %v2615 = vunpack.c.h.b16 %v1788
    %v2616 = vunpack.c.l.b16 %v1789
    %v2617 = vunpack.c.l.b16 %v1790
    %v2618 = vunpack.c.h.b16 %v1790
    %v2619 = vunpack.c.l.b16 %v1791
    %v2620 = vunpack.c.l.b16 %v1792
    %v2621 = vunpack.c.h.b16 %v1792
    %v2622 = vunpack.c.l.b16 %v1793
    %v2623 = vunpack.c.l.b16 %v1794
    %v2624 = vunpack.c.h.b16 %v1794
    %v2625 = vunpack.c.l.b16 %v1795
    %v2626 = vunpack.c.l.b16 %v1796
    %v2627 = vunpack.c.h.b16 %v1796
    %v2628 = vunpack.c.l.b16 %v1797
    %v2629 = vpack.c.b16 %v2440, %v2437
    %v2630 = vpack.c.b16 %v2441, %v2438
    %v2631 = vpack.c.b16 %v2442, %v2439
    %v2632 = vpack.c.b16 %v2446, %v2443
    %v2633 = vpack.c.b16 %v2447, %v2444
    %v2634 = vpack.c.b16 %v2448, %v2445
    %v2635 = vpack.c.b16 %v2452, %v2449
    %v2636 = vpack.c.b16 %v2453, %v2450
    %v2637 = vpack.c.b16 %v2454, %v2451
    %v2638 = vpack.c.b16 %v2458, %v2455
    %v2639 = vpack.c.b16 %v2459, %v2456
    %v2640 = vpack.c.b16 %v2460, %v2457
    %v2641 = vpack.c.b16 %v2464, %v2461
    %v2642 = vpack.c.b16 %v2465, %v2462
    %v2643 = vpack.c.b16 %v2466, %v2463
    %v2644 = vpack.c.b16 %v2470, %v2467
    %v2645 = vpack.c.b16 %v2471, %v2468
    %v2646 = vpack.c.b16 %v2472, %v2469
    %v2647 = vpack.c.b16 %v2476, %v2473
    %v2648 = vpack.c.b16 %v2477, %v2474
    %v2649 = vpack.c.b16 %v2478, %v2475
    %v2650 = vpack.c.b16 %v2482, %v2479
    %v2651 = vpack.c.b16 %v2483, %v2480
    %v2652 = vpack.c.b16 %v2484, %v2481
    %v2653 = vpack.c.b16 %v2488, %v2485
    %v2654 = vpack.c.b16 %v2489, %v2486
    %v2655 = vpack.c.b16 %v2490, %v2487
    %v2656 = vpack.c.b16 %v2494, %v2491
    %v2657 = vpack.c.b16 %v2495, %v2492
    %v2658 = vpack.c.b16 %v2496, %v2493
    %v2659 = vpack.c.b16 %v2500, %v2497
    %v2660 = vpack.c.b16 %v2501, %v2498
    %v2661 = vpack.c.b16 %v2502, %v2499
    %v2662 = vpack.c.b16 %v2506, %v2503
    %v2663 = vpack.c.b16 %v2507, %v2504
    %v2664 = vpack.c.b16 %v2508, %v2505
    %v2665 = vpack.c.b16 %v2512, %v2509
    %v2666 = vpack.c.b16 %v2513, %v2510
    %v2667 = vpack.c.b16 %v2514, %v2511
    %v2668 = vpack.c.b16 %v2518, %v2515
    %v2669 = vpack.c.b16 %v2519, %v2516
    %v2670 = vpack.c.b16 %v2520, %v2517
    %v2671 = vpack.c.b16 %v2524, %v2521
    %v2672 = vpack.c.b16 %v2525, %v2522
    %v2673 = vpack.c.b16 %v2526, %v2523
    %v2674 = vpack.c.b16 %v2530, %v2527
    %v2675 = vpack.c.b16 %v2531, %v2528
    %v2676 = vpack.c.b16 %v2532, %v2529
    %v2677 = vpack.c.b16 %v2536, %v2533
    %v2678 = vpack.c.b16 %v2537, %v2534
    %v2679 = vpack.c.b16 %v2538, %v2535
    %v2680 = vpack.c.b16 %v2542, %v2539
    %v2681 = vpack.c.b16 %v2543, %v2540
    %v2682 = vpack.c.b16 %v2544, %v2541
    %v2683 = vpack.c.b16 %v2548, %v2545
    %v2684 = vpack.c.b16 %v2549, %v2546
    %v2685 = vpack.c.b16 %v2550, %v2547
    %v2686 = vpack.c.b16 %v2554, %v2551
    %v2687 = vpack.c.b16 %v2555, %v2552
    %v2688 = vpack.c.b16 %v2556, %v2553
    %v2689 = vpack.c.b16 %v2560, %v2557
    %v2690 = vpack.c.b16 %v2561, %v2558
    %v2691 = vpack.c.b16 %v2562, %v2559
    %v2692 = vpack.c.b16 %v2566, %v2563
    %v2693 = vpack.c.b16 %v2567, %v2564
    %v2694 = vpack.c.b16 %v2568, %v2565
    %v2695 = vpack.c.b16 %v2572, %v2569
    %v2696 = vpack.c.b16 %v2573, %v2570
    %v2697 = vpack.c.b16 %v2574, %v2571
    %v2698 = vpack.c.b16 %v2578, %v2575
    %v2699 = vpack.c.b16 %v2579, %v2576
    %v2700 = vpack.c.b16 %v2580, %v2577
    %v2701 = vpack.c.b16 %v2584, %v2581
    %v2702 = vpack.c.b16 %v2585, %v2582
    %v2703 = vpack.c.b16 %v2586, %v2583
    %v2704 = vpack.c.b16 %v2590, %v2587
    %v2705 = vpack.c.b16 %v2591, %v2588
    %v2706 = vpack.c.b16 %v2592, %v2589
    %v2707 = vpack.c.b16 %v2596, %v2593
    %v2708 = vpack.c.b16 %v2597, %v2594
    %v2709 = vpack.c.b16 %v2598, %v2595
    %v2710 = vpack.c.b16 %v2602, %v2599
    %v2711 = vpack.c.b16 %v2603, %v2600
    %v2712 = vpack.c.b16 %v2604, %v2601
    %v2713 = vpack.c.b16 %v2608, %v2605
    %v2714 = vpack.c.b16 %v2609, %v2606
    %v2715 = vpack.c.b16 %v2610, %v2607
    %v2716 = vpack.c.b16 %v2614, %v2611
    %v2717 = vpack.c.b16 %v2615, %v2612
    %v2718 = vpack.c.b16 %v2616, %v2613
    %v2719 = vpack.c.b16 %v2620, %v2617
    %v2720 = vpack.c.b16 %v2621, %v2618
    %v2721 = vpack.c.b16 %v2622, %v2619
    %v2722 = vpack.c.b16 %v2626, %v2623
    %v2723 = vpack.c.b16 %v2627, %v2624
    %v2724 = vpack.c.b16 %v2628, %v2625
    %2821 = vmatprep.subr.bf16.mxu0 %v2651
    %2822 = vmatpush1.bf16.msra.mxu0 %v2650
    %2823 = vmatprep.subr.bf16.mxu0 %v2648
    %2824 = vmatpush1.bf16.msra.mxu0 %v2647
    %2825 = vmatprep.subr.bf16.mxu0 %v2645
    %2826 = vmatpush1.bf16.msra.mxu0 %v2644
    %2827 = vmatprep.subr.bf16.mxu0 %v2642
    %2828 = vmatpush1.bf16.msra.mxu0 %v2641
    %2829 = vmatprep.subr.bf16.mxu0 %v2639
    %2830 = vmatpush1.bf16.msra.mxu0 %v2638
    %2831 = vmatprep.subr.bf16.mxu0 %v2636
    %2832 = vmatpush1.bf16.msra.mxu0 %v2635
    %2833 = vmatprep.subr.bf16.mxu0 %v2633
    %2834 = vmatpush1.bf16.msra.mxu0 %v2632
    %2835 = vmatprep.subr.bf16.mxu0 %v2630
    %2836 = vmatpush1.bf16.msra.mxu0 %v2629
    %2837 = vmatprep.subr.bf16.mxu0 %v2675
    %2838 = vmatpush2.bf16.msra.mxu0 %v2674
    %2839 = vmatprep.subr.bf16.mxu0 %v2672
    %2840 = vmatpush2.bf16.msra.mxu0 %v2671
    %2841 = vmatprep.subr.bf16.mxu0 %v2669
    %2842 = vmatpush2.bf16.msra.mxu0 %v2668
    %2843 = vmatprep.subr.bf16.mxu0 %v2666
    %2844 = vmatpush2.bf16.msra.mxu0 %v2665
    %2845 = vmatprep.subr.bf16.mxu0 %v2663
    %2846 = vmatpush2.bf16.msra.mxu0 %v2662
    %2847 = vmatprep.subr.bf16.mxu0 %v2660
    %2848 = vmatpush2.bf16.msra.mxu0 %v2659
    %2849 = vmatprep.subr.bf16.mxu0 %v2657
    %2850 = vmatpush2.bf16.msra.mxu0 %v2656
    %2851 = vmatprep.subr.bf16.mxu0 %v2654
    %2852 = vmatpush2.bf16.msra.mxu0 %v2653
    %2853 = vmatprep.mubr.bf16.mxu0 %v1607
    %2854 = vmatmul.mubr.bf16.gmra.mxu0 %v1606
    %v2855 = vpop.f32.mrf.mxu0
    %v2856 = vadd.f32 %v1990, %v2855
    %v2857 = vpop.f32.mrf.mxu0
    %v2858 = vadd.f32 %v1992, %v2857
    %v2859 = vpop.f32.mrf.mxu0
    %v2860 = vadd.f32 %v1994, %v2859
    %v2861 = vpop.f32.mrf.mxu0
    %v2862 = vadd.f32 %v1996, %v2861
    %2863 = vmatprep.mubr.bf16.mxu0 %v1611
    %2864 = vmatmul.mubr.bf16.gmra.mxu0 %v1610
    %v2865 = vpop.f32.mrf.mxu0
    %v2866 = vadd.f32 %v2000, %v2865
    %v2867 = vpop.f32.mrf.mxu0
    %v2868 = vadd.f32 %v2002, %v2867
    %v2869 = vpop.f32.mrf.mxu0
    %v2870 = vadd.f32 %v2004, %v2869
    %v2871 = vpop.f32.mrf.mxu0
    %v2872 = vadd.f32 %v2006, %v2871
    %2873 = vmatprep.mubr.bf16.mxu0 %v1615
    %2874 = vmatmul.mubr.bf16.gmra.mxu0 %v1614
    %v2875 = vpop.f32.mrf.mxu0
    %v2876 = vadd.f32 %v2010, %v2875
    %v2877 = vpop.f32.mrf.mxu0
    %v2878 = vadd.f32 %v2012, %v2877
    %v2879 = vpop.f32.mrf.mxu0
    %v2880 = vadd.f32 %v2014, %v2879
    %v2881 = vpop.f32.mrf.mxu0
    %v2882 = vadd.f32 %v2016, %v2881
    %2883 = vmatprep.mubr.bf16.mxu0 %v1619
    %2884 = vmatmul.mubr.bf16.gmra.mxu0 %v1618
    %v2885 = vpop.f32.mrf.mxu0
    %v2886 = vadd.f32 %v2020, %v2885
    %v2887 = vpop.f32.mrf.mxu0
    %v2888 = vadd.f32 %v2022, %v2887
    %v2889 = vpop.f32.mrf.mxu0
    %v2890 = vadd.f32 %v2024, %v2889
    %v2891 = vpop.f32.mrf.mxu0
    %v2892 = vadd.f32 %v2026, %v2891
    %2893 = vmatprep.mubr.bf16.mxu0 %v1623
    %2894 = vmatmul.mubr.bf16.gmra.mxu0 %v1622
    %v2895 = vpop.f32.mrf.mxu0
    %v2896 = vadd.f32 %v2030, %v2895
    %v2897 = vpop.f32.mrf.mxu0
    %v2898 = vadd.f32 %v2032, %v2897
    %v2899 = vpop.f32.mrf.mxu0
    %v2900 = vadd.f32 %v2034, %v2899
    %v2901 = vpop.f32.mrf.mxu0
    %v2902 = vadd.f32 %v2036, %v2901
    %2903 = vmatprep.mubr.bf16.mxu0 %v1627
    %2904 = vmatmul.mubr.bf16.gmra.mxu0 %v1626
    %v2905 = vpop.f32.mrf.mxu0
    %v2906 = vadd.f32 %v2040, %v2905
    %v2907 = vpop.f32.mrf.mxu0
    %v2908 = vadd.f32 %v2042, %v2907
    %v2909 = vpop.f32.mrf.mxu0
    %v2910 = vadd.f32 %v2044, %v2909
    %v2911 = vpop.f32.mrf.mxu0
    %v2912 = vadd.f32 %v2046, %v2911
    %2913 = vmatprep.mubr.bf16.mxu0 %v1631
    %2914 = vmatmul.mubr.bf16.gmra.mxu0 %v1630
    %v2915 = vpop.f32.mrf.mxu0
    %v2916 = vadd.f32 %v2050, %v2915
    %v2917 = vpop.f32.mrf.mxu0
    %v2918 = vadd.f32 %v2052, %v2917
    %v2919 = vpop.f32.mrf.mxu0
    %v2920 = vadd.f32 %v2054, %v2919
    %v2921 = vpop.f32.mrf.mxu0
    %v2922 = vadd.f32 %v2056, %v2921
    %2923 = vmatprep.mubr.bf16.mxu0 %v1635
    %2924 = vmatmul.mubr.bf16.gmra.mxu0 %v1634
    %v2925 = vpop.f32.mrf.mxu0
    %v2926 = vadd.f32 %v2060, %v2925
    %v2927 = vpop.f32.mrf.mxu0
    %v2928 = vadd.f32 %v2062, %v2927
    %v2929 = vpop.f32.mrf.mxu0
    %v2930 = vadd.f32 %v2064, %v2929
    %v2931 = vpop.f32.mrf.mxu0
    %v2932 = vadd.f32 %v2066, %v2931
    %2933 = vmatprep.mubr.bf16.mxu0 %v1639
    %2934 = vmatmul.mubr.bf16.gmra.mxu0 %v1638
    %v2935 = vpop.f32.mrf.mxu0
    %v2936 = vadd.f32 %v2070, %v2935
    %v2937 = vpop.f32.mrf.mxu0
    %v2938 = vadd.f32 %v2072, %v2937
    %v2939 = vpop.f32.mrf.mxu0
    %v2940 = vadd.f32 %v2074, %v2939
    %v2941 = vpop.f32.mrf.mxu0
    %v2942 = vadd.f32 %v2076, %v2941
    %2943 = vmatprep.mubr.bf16.mxu0 %v1643
    %2944 = vmatmul.mubr.bf16.gmra.mxu0 %v1642
    %v2945 = vpop.f32.mrf.mxu0
    %v2946 = vadd.f32 %v2080, %v2945
    %v2947 = vpop.f32.mrf.mxu0
    %v2948 = vadd.f32 %v2082, %v2947
    %v2949 = vpop.f32.mrf.mxu0
    %v2950 = vadd.f32 %v2084, %v2949
    %v2951 = vpop.f32.mrf.mxu0
    %v2952 = vadd.f32 %v2086, %v2951
    %2953 = vmatprep.mubr.bf16.mxu0 %v1647
    %2954 = vmatmul.mubr.bf16.gmra.mxu0 %v1646
    %v2955 = vpop.f32.mrf.mxu0
    %v2956 = vadd.f32 %v2090, %v2955
    %v2957 = vpop.f32.mrf.mxu0
    %v2958 = vadd.f32 %v2092, %v2957
    %v2959 = vpop.f32.mrf.mxu0
    %v2960 = vadd.f32 %v2094, %v2959
    %v2961 = vpop.f32.mrf.mxu0
    %v2962 = vadd.f32 %v2096, %v2961
    %2963 = vmatprep.mubr.bf16.mxu0 %v1651
    %2964 = vmatmul.mubr.bf16.gmra.mxu0 %v1650
    %v2965 = vpop.f32.mrf.mxu0
    %v2966 = vadd.f32 %v2100, %v2965
    %v2967 = vpop.f32.mrf.mxu0
    %v2968 = vadd.f32 %v2102, %v2967
    %v2969 = vpop.f32.mrf.mxu0
    %v2970 = vadd.f32 %v2104, %v2969
    %v2971 = vpop.f32.mrf.mxu0
    %v2972 = vadd.f32 %v2106, %v2971
    %2973 = vmatprep.mubr.bf16.mxu0 %v1655
    %2974 = vmatmul.mubr.bf16.gmra.mxu0 %v1654
    %v2975 = vpop.f32.mrf.mxu0
    %v2976 = vadd.f32 %v2110, %v2975
    %v2977 = vpop.f32.mrf.mxu0
    %v2978 = vadd.f32 %v2112, %v2977
    %v2979 = vpop.f32.mrf.mxu0
    %v2980 = vadd.f32 %v2114, %v2979
    %v2981 = vpop.f32.mrf.mxu0
    %v2982 = vadd.f32 %v2116, %v2981
    %2983 = vmatprep.mubr.bf16.mxu0 %v1659
    %2984 = vmatmul.mubr.bf16.gmra.mxu0 %v1658
    %v2985 = vpop.f32.mrf.mxu0
    %v2986 = vadd.f32 %v2120, %v2985
    %v2987 = vpop.f32.mrf.mxu0
    %v2988 = vadd.f32 %v2122, %v2987
    %v2989 = vpop.f32.mrf.mxu0
    %v2990 = vadd.f32 %v2124, %v2989
    %v2991 = vpop.f32.mrf.mxu0
    %v2992 = vadd.f32 %v2126, %v2991
    %2993 = vmatprep.mubr.bf16.mxu0 %v1663
    %2994 = vmatmul.mubr.bf16.gmra.mxu0 %v1662
    %v2995 = vpop.f32.mrf.mxu0
    %v2996 = vadd.f32 %v2130, %v2995
    %v2997 = vpop.f32.mrf.mxu0
    %v2998 = vadd.f32 %v2132, %v2997
    %v2999 = vpop.f32.mrf.mxu0
    %v3000 = vadd.f32 %v2134, %v2999
    %v3001 = vpop.f32.mrf.mxu0
    %v3002 = vadd.f32 %v2136, %v3001
    %3003 = vmatprep.mubr.bf16.mxu0 %v1667
    %3004 = vmatmul.mubr.bf16.gmra.mxu0 %v1666
    %v3005 = vpop.f32.mrf.mxu0
    %v3006 = vadd.f32 %v2140, %v3005
    %v3007 = vpop.f32.mrf.mxu0
    %v3008 = vadd.f32 %v2142, %v3007
    %v3009 = vpop.f32.mrf.mxu0
    %v3010 = vadd.f32 %v2144, %v3009
    %v3011 = vpop.f32.mrf.mxu0
    %v3012 = vadd.f32 %v2146, %v3011
    %3013 = vdwg.mxu0
    %3014 = vmatprep.subr.bf16.mxu0 %v2699
    %3015 = vmatpush1.bf16.msra.mxu0 %v2698
    %3016 = vmatprep.subr.bf16.mxu0 %v2696
    %3017 = vmatpush1.bf16.msra.mxu0 %v2695
    %3018 = vmatprep.subr.bf16.mxu0 %v2693
    %3019 = vmatpush1.bf16.msra.mxu0 %v2692
    %3020 = vmatprep.subr.bf16.mxu0 %v2690
    %3021 = vmatpush1.bf16.msra.mxu0 %v2689
    %3022 = vmatprep.subr.bf16.mxu0 %v2687
    %3023 = vmatpush1.bf16.msra.mxu0 %v2686
    %3024 = vmatprep.subr.bf16.mxu0 %v2684
    %3025 = vmatpush1.bf16.msra.mxu0 %v2683
    %3026 = vmatprep.subr.bf16.mxu0 %v2681
    %3027 = vmatpush1.bf16.msra.mxu0 %v2680
    %3028 = vmatprep.subr.bf16.mxu0 %v2678
    %3029 = vmatpush1.bf16.msra.mxu0 %v2677
    %3030 = vmatprep.subr.bf16.mxu0 %v2723
    %3031 = vmatpush2.bf16.msra.mxu0 %v2722
    %3032 = vmatprep.subr.bf16.mxu0 %v2720
    %3033 = vmatpush2.bf16.msra.mxu0 %v2719
    %3034 = vmatprep.subr.bf16.mxu0 %v2717
    %3035 = vmatpush2.bf16.msra.mxu0 %v2716
    %3036 = vmatprep.subr.bf16.mxu0 %v2714
    %3037 = vmatpush2.bf16.msra.mxu0 %v2713
    %3038 = vmatprep.subr.bf16.mxu0 %v2711
    %3039 = vmatpush2.bf16.msra.mxu0 %v2710
    %3040 = vmatprep.subr.bf16.mxu0 %v2708
    %3041 = vmatpush2.bf16.msra.mxu0 %v2707
    %3042 = vmatprep.subr.bf16.mxu0 %v2705
    %3043 = vmatpush2.bf16.msra.mxu0 %v2704
    %3044 = vmatprep.subr.bf16.mxu0 %v2702
    %3045 = vmatpush2.bf16.msra.mxu0 %v2701
    %3046 = vmatprep.mubr.bf16.mxu0 %v1609
    %3047 = vmatmul.mubr.bf16.gmra.mxu0 %v1608
    %v3048 = vpop.f32.mrf.mxu0
    %v3049 = vadd.f32 %v2856, %v3048
    %v3050 = vpop.f32.mrf.mxu0
    %v3051 = vadd.f32 %v2858, %v3050
    %v3052 = vpop.f32.mrf.mxu0
    %v3053 = vadd.f32 %v2860, %v3052
    %v3054 = vpop.f32.mrf.mxu0
    %v3055 = vadd.f32 %v2862, %v3054
    %3056 = vmatprep.mubr.bf16.mxu0 %v1613
    %3057 = vmatmul.mubr.bf16.gmra.mxu0 %v1612
    %v3058 = vpop.f32.mrf.mxu0
    %v3059 = vadd.f32 %v2866, %v3058
    %v3060 = vpop.f32.mrf.mxu0
    %v3061 = vadd.f32 %v2868, %v3060
    %v3062 = vpop.f32.mrf.mxu0
    %v3063 = vadd.f32 %v2870, %v3062
    %v3064 = vpop.f32.mrf.mxu0
    %v3065 = vadd.f32 %v2872, %v3064
    %3066 = vmatprep.mubr.bf16.mxu0 %v1617
    %3067 = vmatmul.mubr.bf16.gmra.mxu0 %v1616
    %v3068 = vpop.f32.mrf.mxu0
    %v3069 = vadd.f32 %v2876, %v3068
    %v3070 = vpop.f32.mrf.mxu0
    %v3071 = vadd.f32 %v2878, %v3070
    %v3072 = vpop.f32.mrf.mxu0
    %v3073 = vadd.f32 %v2880, %v3072
    %v3074 = vpop.f32.mrf.mxu0
    %v3075 = vadd.f32 %v2882, %v3074
    %3076 = vmatprep.mubr.bf16.mxu0 %v1621
    %3077 = vmatmul.mubr.bf16.gmra.mxu0 %v1620
    %v3078 = vpop.f32.mrf.mxu0
    %v3079 = vadd.f32 %v2886, %v3078
    %v3080 = vpop.f32.mrf.mxu0
    %v3081 = vadd.f32 %v2888, %v3080
    %v3082 = vpop.f32.mrf.mxu0
    %v3083 = vadd.f32 %v2890, %v3082
    %v3084 = vpop.f32.mrf.mxu0
    %v3085 = vadd.f32 %v2892, %v3084
    %3086 = vmatprep.mubr.bf16.mxu0 %v1625
    %3087 = vmatmul.mubr.bf16.gmra.mxu0 %v1624
    %v3088 = vpop.f32.mrf.mxu0
    %v3089 = vadd.f32 %v2896, %v3088
    %v3090 = vpop.f32.mrf.mxu0
    %v3091 = vadd.f32 %v2898, %v3090
    %v3092 = vpop.f32.mrf.mxu0
    %v3093 = vadd.f32 %v2900, %v3092
    %v3094 = vpop.f32.mrf.mxu0
    %v3095 = vadd.f32 %v2902, %v3094
    %3096 = vmatprep.mubr.bf16.mxu0 %v1629
    %3097 = vmatmul.mubr.bf16.gmra.mxu0 %v1628
    %v3098 = vpop.f32.mrf.mxu0
    %v3099 = vadd.f32 %v2906, %v3098
    %v3100 = vpop.f32.mrf.mxu0
    %v3101 = vadd.f32 %v2908, %v3100
    %v3102 = vpop.f32.mrf.mxu0
    %v3103 = vadd.f32 %v2910, %v3102
    %v3104 = vpop.f32.mrf.mxu0
    %v3105 = vadd.f32 %v2912, %v3104
    %3106 = vmatprep.mubr.bf16.mxu0 %v1633
    %3107 = vmatmul.mubr.bf16.gmra.mxu0 %v1632
    %v3108 = vpop.f32.mrf.mxu0
    %v3109 = vadd.f32 %v2916, %v3108
    %v3110 = vpop.f32.mrf.mxu0
    %v3111 = vadd.f32 %v2918, %v3110
    %v3112 = vpop.f32.mrf.mxu0
    %v3113 = vadd.f32 %v2920, %v3112
    %v3114 = vpop.f32.mrf.mxu0
    %v3115 = vadd.f32 %v2922, %v3114
    %3116 = vmatprep.mubr.bf16.mxu0 %v1637
    %3117 = vmatmul.mubr.bf16.gmra.mxu0 %v1636
    %v3118 = vpop.f32.mrf.mxu0
    %v3119 = vadd.f32 %v2926, %v3118
    %v3120 = vpop.f32.mrf.mxu0
    %v3121 = vadd.f32 %v2928, %v3120
    %v3122 = vpop.f32.mrf.mxu0
    %v3123 = vadd.f32 %v2930, %v3122
    %v3124 = vpop.f32.mrf.mxu0
    %v3125 = vadd.f32 %v2932, %v3124
    %3126 = vmatprep.mubr.bf16.mxu0 %v1641
    %3127 = vmatmul.mubr.bf16.gmra.mxu0 %v1640
    %v3128 = vpop.f32.mrf.mxu0
    %v3129 = vadd.f32 %v2936, %v3128
    %v3130 = vpop.f32.mrf.mxu0
    %v3131 = vadd.f32 %v2938, %v3130
    %v3132 = vpop.f32.mrf.mxu0
    %v3133 = vadd.f32 %v2940, %v3132
    %v3134 = vpop.f32.mrf.mxu0
    %v3135 = vadd.f32 %v2942, %v3134
    %3136 = vmatprep.mubr.bf16.mxu0 %v1645
    %3137 = vmatmul.mubr.bf16.gmra.mxu0 %v1644
    %v3138 = vpop.f32.mrf.mxu0
    %v3139 = vadd.f32 %v2946, %v3138
    %v3140 = vpop.f32.mrf.mxu0
    %v3141 = vadd.f32 %v2948, %v3140
    %v3142 = vpop.f32.mrf.mxu0
    %v3143 = vadd.f32 %v2950, %v3142
    %v3144 = vpop.f32.mrf.mxu0
    %v3145 = vadd.f32 %v2952, %v3144
    %3146 = vmatprep.mubr.bf16.mxu0 %v1649
    %3147 = vmatmul.mubr.bf16.gmra.mxu0 %v1648
    %v3148 = vpop.f32.mrf.mxu0
    %v3149 = vadd.f32 %v2956, %v3148
    %v3150 = vpop.f32.mrf.mxu0
    %v3151 = vadd.f32 %v2958, %v3150
    %v3152 = vpop.f32.mrf.mxu0
    %v3153 = vadd.f32 %v2960, %v3152
    %v3154 = vpop.f32.mrf.mxu0
    %v3155 = vadd.f32 %v2962, %v3154
    %3156 = vmatprep.mubr.bf16.mxu0 %v1653
    %3157 = vmatmul.mubr.bf16.gmra.mxu0 %v1652
    %v3158 = vpop.f32.mrf.mxu0
    %v3159 = vadd.f32 %v2966, %v3158
    %v3160 = vpop.f32.mrf.mxu0
    %v3161 = vadd.f32 %v2968, %v3160
    %v3162 = vpop.f32.mrf.mxu0
    %v3163 = vadd.f32 %v2970, %v3162
    %v3164 = vpop.f32.mrf.mxu0
    %v3165 = vadd.f32 %v2972, %v3164
    %3166 = vmatprep.mubr.bf16.mxu0 %v1657
    %3167 = vmatmul.mubr.bf16.gmra.mxu0 %v1656
    %v3168 = vpop.f32.mrf.mxu0
    %v3169 = vadd.f32 %v2976, %v3168
    %v3170 = vpop.f32.mrf.mxu0
    %v3171 = vadd.f32 %v2978, %v3170
    %v3172 = vpop.f32.mrf.mxu0
    %v3173 = vadd.f32 %v2980, %v3172
    %v3174 = vpop.f32.mrf.mxu0
    %v3175 = vadd.f32 %v2982, %v3174
    %3176 = vmatprep.mubr.bf16.mxu0 %v1661
    %3177 = vmatmul.mubr.bf16.gmra.mxu0 %v1660
    %v3178 = vpop.f32.mrf.mxu0
    %v3179 = vadd.f32 %v2986, %v3178
    %v3180 = vpop.f32.mrf.mxu0
    %v3181 = vadd.f32 %v2988, %v3180
    %v3182 = vpop.f32.mrf.mxu0
    %v3183 = vadd.f32 %v2990, %v3182
    %v3184 = vpop.f32.mrf.mxu0
    %v3185 = vadd.f32 %v2992, %v3184
    %3186 = vmatprep.mubr.bf16.mxu0 %v1665
    %3187 = vmatmul.mubr.bf16.gmra.mxu0 %v1664
    %v3188 = vpop.f32.mrf.mxu0
    %v3189 = vadd.f32 %v2996, %v3188
    %v3190 = vpop.f32.mrf.mxu0
    %v3191 = vadd.f32 %v2998, %v3190
    %v3192 = vpop.f32.mrf.mxu0
    %v3193 = vadd.f32 %v3000, %v3192
    %v3194 = vpop.f32.mrf.mxu0
    %v3195 = vadd.f32 %v3002, %v3194
    %3196 = vmatprep.mubr.bf16.mxu0 %v1669
    %3197 = vmatmul.mubr.bf16.gmra.mxu0 %v1668
    %v3198 = vpop.f32.mrf.mxu0
    %v3199 = vadd.f32 %v3006, %v3198
    %v3200 = vpop.f32.mrf.mxu0
    %v3201 = vadd.f32 %v3008, %v3200
    %v3202 = vpop.f32.mrf.mxu0
    %v3203 = vadd.f32 %v3010, %v3202
    %v3204 = vpop.f32.mrf.mxu0
    %v3205 = vadd.f32 %v3012, %v3204
    %3206 = vdwg.mxu0
    %3207 = vmatprep.subr.bf16.mxu0 0
    %3208 = vmatpush1.bf16.msra.mxu0 %v2652
    %3209 = vmatprep.subr.bf16.mxu0 0
    %3210 = vmatpush1.bf16.msra.mxu0 %v2649
    %3211 = vmatprep.subr.bf16.mxu0 0
    %3212 = vmatpush1.bf16.msra.mxu0 %v2646
    %3213 = vmatprep.subr.bf16.mxu0 0
    %3214 = vmatpush1.bf16.msra.mxu0 %v2643
    %3215 = vmatprep.subr.bf16.mxu0 0
    %3216 = vmatpush1.bf16.msra.mxu0 %v2640
    %3217 = vmatprep.subr.bf16.mxu0 0
    %3218 = vmatpush1.bf16.msra.mxu0 %v2637
    %3219 = vmatprep.subr.bf16.mxu0 0
    %3220 = vmatpush1.bf16.msra.mxu0 %v2634
    %3221 = vmatprep.subr.bf16.mxu0 0
    %3222 = vmatpush1.bf16.msra.mxu0 %v2631
    %3223 = vmatprep.subr.bf16.mxu0 0
    %3224 = vmatpush2.bf16.msra.mxu0 %v2676
    %3225 = vmatprep.subr.bf16.mxu0 0
    %3226 = vmatpush2.bf16.msra.mxu0 %v2673
    %3227 = vmatprep.subr.bf16.mxu0 0
    %3228 = vmatpush2.bf16.msra.mxu0 %v2670
    %3229 = vmatprep.subr.bf16.mxu0 0
    %3230 = vmatpush2.bf16.msra.mxu0 %v2667
    %3231 = vmatprep.subr.bf16.mxu0 0
    %3232 = vmatpush2.bf16.msra.mxu0 %v2664
    %3233 = vmatprep.subr.bf16.mxu0 0
    %3234 = vmatpush2.bf16.msra.mxu0 %v2661
    %3235 = vmatprep.subr.bf16.mxu0 0
    %3236 = vmatpush2.bf16.msra.mxu0 %v2658
    %3237 = vmatprep.subr.bf16.mxu0 0
    %3238 = vmatpush2.bf16.msra.mxu0 %v2655
    %3239 = vmatprep.mubr.bf16.mxu0 %v1607
    %3240 = vmatmul.mubr.bf16.gmra.mxu0 %v1606
    %v3241 = vpop.f32.mrf.mxu0
    %v3242 = vadd.f32 %v2183, %v3241
    %v3243 = vpop.f32.mrf.mxu0
    %v3244 = vpop.f32.mrf.mxu0
    %v3245 = vadd.f32 %v2186, %v3244
    %v3246 = vpop.f32.mrf.mxu0
    %3247 = vmatprep.mubr.bf16.mxu0 %v1611
    %3248 = vmatmul.mubr.bf16.gmra.mxu0 %v1610
    %v3249 = vpop.f32.mrf.mxu0
    %v3250 = vadd.f32 %v2191, %v3249
    %v3251 = vpop.f32.mrf.mxu0
    %v3252 = vpop.f32.mrf.mxu0
    %v3253 = vadd.f32 %v2194, %v3252
    %v3254 = vpop.f32.mrf.mxu0
    %3255 = vmatprep.mubr.bf16.mxu0 %v1615
    %3256 = vmatmul.mubr.bf16.gmra.mxu0 %v1614
    %v3257 = vpop.f32.mrf.mxu0
    %v3258 = vadd.f32 %v2199, %v3257
    %v3259 = vpop.f32.mrf.mxu0
    %v3260 = vpop.f32.mrf.mxu0
    %v3261 = vadd.f32 %v2202, %v3260
    %v3262 = vpop.f32.mrf.mxu0
    %3263 = vmatprep.mubr.bf16.mxu0 %v1619
    %3264 = vmatmul.mubr.bf16.gmra.mxu0 %v1618
    %v3265 = vpop.f32.mrf.mxu0
    %v3266 = vadd.f32 %v2207, %v3265
    %v3267 = vpop.f32.mrf.mxu0
    %v3268 = vpop.f32.mrf.mxu0
    %v3269 = vadd.f32 %v2210, %v3268
    %v3270 = vpop.f32.mrf.mxu0
    %3271 = vmatprep.mubr.bf16.mxu0 %v1623
    %3272 = vmatmul.mubr.bf16.gmra.mxu0 %v1622
    %v3273 = vpop.f32.mrf.mxu0
    %v3274 = vadd.f32 %v2215, %v3273
    %v3275 = vpop.f32.mrf.mxu0
    %v3276 = vpop.f32.mrf.mxu0
    %v3277 = vadd.f32 %v2218, %v3276
    %v3278 = vpop.f32.mrf.mxu0
    %3279 = vmatprep.mubr.bf16.mxu0 %v1627
    %3280 = vmatmul.mubr.bf16.gmra.mxu0 %v1626
    %v3281 = vpop.f32.mrf.mxu0
    %v3282 = vadd.f32 %v2223, %v3281
    %v3283 = vpop.f32.mrf.mxu0
    %v3284 = vpop.f32.mrf.mxu0
    %v3285 = vadd.f32 %v2226, %v3284
    %v3286 = vpop.f32.mrf.mxu0
    %3287 = vmatprep.mubr.bf16.mxu0 %v1631
    %3288 = vmatmul.mubr.bf16.gmra.mxu0 %v1630
    %v3289 = vpop.f32.mrf.mxu0
    %v3290 = vadd.f32 %v2231, %v3289
    %v3291 = vpop.f32.mrf.mxu0
    %v3292 = vpop.f32.mrf.mxu0
    %v3293 = vadd.f32 %v2234, %v3292
    %v3294 = vpop.f32.mrf.mxu0
    %3295 = vmatprep.mubr.bf16.mxu0 %v1635
    %3296 = vmatmul.mubr.bf16.gmra.mxu0 %v1634
    %v3297 = vpop.f32.mrf.mxu0
    %v3298 = vadd.f32 %v2239, %v3297
    %v3299 = vpop.f32.mrf.mxu0
    %v3300 = vpop.f32.mrf.mxu0
    %v3301 = vadd.f32 %v2242, %v3300
    %v3302 = vpop.f32.mrf.mxu0
    %3303 = vmatprep.mubr.bf16.mxu0 %v1639
    %3304 = vmatmul.mubr.bf16.gmra.mxu0 %v1638
    %v3305 = vpop.f32.mrf.mxu0
    %v3306 = vadd.f32 %v2247, %v3305
    %v3307 = vpop.f32.mrf.mxu0
    %v3308 = vpop.f32.mrf.mxu0
    %v3309 = vadd.f32 %v2250, %v3308
    %v3310 = vpop.f32.mrf.mxu0
    %3311 = vmatprep.mubr.bf16.mxu0 %v1643
    %3312 = vmatmul.mubr.bf16.gmra.mxu0 %v1642
    %v3313 = vpop.f32.mrf.mxu0
    %v3314 = vadd.f32 %v2255, %v3313
    %v3315 = vpop.f32.mrf.mxu0
    %v3316 = vpop.f32.mrf.mxu0
    %v3317 = vadd.f32 %v2258, %v3316
    %v3318 = vpop.f32.mrf.mxu0
    %3319 = vmatprep.mubr.bf16.mxu0 %v1647
    %3320 = vmatmul.mubr.bf16.gmra.mxu0 %v1646
    %v3321 = vpop.f32.mrf.mxu0
    %v3322 = vadd.f32 %v2263, %v3321
    %v3323 = vpop.f32.mrf.mxu0
    %v3324 = vpop.f32.mrf.mxu0
    %v3325 = vadd.f32 %v2266, %v3324
    %v3326 = vpop.f32.mrf.mxu0
    %3327 = vmatprep.mubr.bf16.mxu0 %v1651
    %3328 = vmatmul.mubr.bf16.gmra.mxu0 %v1650
    %v3329 = vpop.f32.mrf.mxu0
    %v3330 = vadd.f32 %v2271, %v3329
    %v3331 = vpop.f32.mrf.mxu0
    %v3332 = vpop.f32.mrf.mxu0
    %v3333 = vadd.f32 %v2274, %v3332
    %v3334 = vpop.f32.mrf.mxu0
    %3335 = vmatprep.mubr.bf16.mxu0 %v1655
    %3336 = vmatmul.mubr.bf16.gmra.mxu0 %v1654
    %v3337 = vpop.f32.mrf.mxu0
    %v3338 = vadd.f32 %v2279, %v3337
    %v3339 = vpop.f32.mrf.mxu0
    %v3340 = vpop.f32.mrf.mxu0
    %v3341 = vadd.f32 %v2282, %v3340
    %v3342 = vpop.f32.mrf.mxu0
    %3343 = vmatprep.mubr.bf16.mxu0 %v1659
    %3344 = vmatmul.mubr.bf16.gmra.mxu0 %v1658
    %v3345 = vpop.f32.mrf.mxu0
    %v3346 = vadd.f32 %v2287, %v3345
    %v3347 = vpop.f32.mrf.mxu0
    %v3348 = vpop.f32.mrf.mxu0
    %v3349 = vadd.f32 %v2290, %v3348
    %v3350 = vpop.f32.mrf.mxu0
    %3351 = vmatprep.mubr.bf16.mxu0 %v1663
    %3352 = vmatmul.mubr.bf16.gmra.mxu0 %v1662
    %v3353 = vpop.f32.mrf.mxu0
    %v3354 = vadd.f32 %v2295, %v3353
    %v3355 = vpop.f32.mrf.mxu0
    %v3356 = vpop.f32.mrf.mxu0
    %v3357 = vadd.f32 %v2298, %v3356
    %v3358 = vpop.f32.mrf.mxu0
    %3359 = vmatprep.mubr.bf16.mxu0 %v1667
    %3360 = vmatmul.mubr.bf16.gmra.mxu0 %v1666
    %v3361 = vpop.f32.mrf.mxu0
    %v3362 = vadd.f32 %v2303, %v3361
    %v3363 = vpop.f32.mrf.mxu0
    %v3364 = vpop.f32.mrf.mxu0
    %v3365 = vadd.f32 %v2306, %v3364
    %v3366 = vpop.f32.mrf.mxu0
    %3367 = vdwg.mxu0
    %3368 = vmatprep.subr.bf16.mxu0 0
    %3369 = vmatpush1.bf16.msra.mxu0 %v2700
    %3370 = vmatprep.subr.bf16.mxu0 0
    %3371 = vmatpush1.bf16.msra.mxu0 %v2697
    %3372 = vmatprep.subr.bf16.mxu0 0
    %3373 = vmatpush1.bf16.msra.mxu0 %v2694
    %3374 = vmatprep.subr.bf16.mxu0 0
    %3375 = vmatpush1.bf16.msra.mxu0 %v2691
    %3376 = vmatprep.subr.bf16.mxu0 0
    %3377 = vmatpush1.bf16.msra.mxu0 %v2688
    %3378 = vmatprep.subr.bf16.mxu0 0
    %3379 = vmatpush1.bf16.msra.mxu0 %v2685
    %3380 = vmatprep.subr.bf16.mxu0 0
    %3381 = vmatpush1.bf16.msra.mxu0 %v2682
    %3382 = vmatprep.subr.bf16.mxu0 0
    %3383 = vmatpush1.bf16.msra.mxu0 %v2679
    %3384 = vmatprep.subr.bf16.mxu0 0
    %3385 = vmatpush2.bf16.msra.mxu0 %v2724
    %3386 = vmatprep.subr.bf16.mxu0 0
    %3387 = vmatpush2.bf16.msra.mxu0 %v2721
    %3388 = vmatprep.subr.bf16.mxu0 0
    %3389 = vmatpush2.bf16.msra.mxu0 %v2718
    %3390 = vmatprep.subr.bf16.mxu0 0
    %3391 = vmatpush2.bf16.msra.mxu0 %v2715
    %3392 = vmatprep.subr.bf16.mxu0 0
    %3393 = vmatpush2.bf16.msra.mxu0 %v2712
    %3394 = vmatprep.subr.bf16.mxu0 0
    %3395 = vmatpush2.bf16.msra.mxu0 %v2709
    %3396 = vmatprep.subr.bf16.mxu0 0
    %3397 = vmatpush2.bf16.msra.mxu0 %v2706
    %3398 = vmatprep.subr.bf16.mxu0 0
    %3399 = vmatpush2.bf16.msra.mxu0 %v2703
    %3400 = vmatprep.mubr.bf16.mxu0 %v1609
    %3401 = vmatmul.mubr.bf16.gmra.mxu0 %v1608
    %v3402 = vpop.f32.mrf.mxu0
    %v3403 = vadd.f32 %v3242, %v3402
    %v3404 = vpop.f32.mrf.mxu0
    %v3405 = vpop.f32.mrf.mxu0
    %v3406 = vadd.f32 %v3245, %v3405
    %v3407 = vpop.f32.mrf.mxu0
    %3408 = vmatprep.mubr.bf16.mxu0 %v1613
    %3409 = vmatmul.mubr.bf16.gmra.mxu0 %v1612
    %v3410 = vpop.f32.mrf.mxu0
    %v3411 = vadd.f32 %v3250, %v3410
    %v3412 = vpop.f32.mrf.mxu0
    %v3413 = vpop.f32.mrf.mxu0
    %v3414 = vadd.f32 %v3253, %v3413
    %v3415 = vpop.f32.mrf.mxu0
    %3416 = vmatprep.mubr.bf16.mxu0 %v1617
    %3417 = vmatmul.mubr.bf16.gmra.mxu0 %v1616
    %v3418 = vpop.f32.mrf.mxu0
    %v3419 = vadd.f32 %v3258, %v3418
    %v3420 = vpop.f32.mrf.mxu0
    %v3421 = vpop.f32.mrf.mxu0
    %v3422 = vadd.f32 %v3261, %v3421
    %v3423 = vpop.f32.mrf.mxu0
    %3424 = vmatprep.mubr.bf16.mxu0 %v1621
    %3425 = vmatmul.mubr.bf16.gmra.mxu0 %v1620
    %v3426 = vpop.f32.mrf.mxu0
    %v3427 = vadd.f32 %v3266, %v3426
    %v3428 = vpop.f32.mrf.mxu0
    %v3429 = vpop.f32.mrf.mxu0
    %v3430 = vadd.f32 %v3269, %v3429
    %v3431 = vpop.f32.mrf.mxu0
    %3432 = vmatprep.mubr.bf16.mxu0 %v1625
    %3433 = vmatmul.mubr.bf16.gmra.mxu0 %v1624
    %v3434 = vpop.f32.mrf.mxu0
    %v3435 = vadd.f32 %v3274, %v3434
    %v3436 = vpop.f32.mrf.mxu0
    %v3437 = vpop.f32.mrf.mxu0
    %v3438 = vadd.f32 %v3277, %v3437
    %v3439 = vpop.f32.mrf.mxu0
    %3440 = vmatprep.mubr.bf16.mxu0 %v1629
    %3441 = vmatmul.mubr.bf16.gmra.mxu0 %v1628
    %v3442 = vpop.f32.mrf.mxu0
    %v3443 = vadd.f32 %v3282, %v3442
    %v3444 = vpop.f32.mrf.mxu0
    %v3445 = vpop.f32.mrf.mxu0
    %v3446 = vadd.f32 %v3285, %v3445
    %v3447 = vpop.f32.mrf.mxu0
    %3448 = vmatprep.mubr.bf16.mxu0 %v1633
    %3449 = vmatmul.mubr.bf16.gmra.mxu0 %v1632
    %v3450 = vpop.f32.mrf.mxu0
    %v3451 = vadd.f32 %v3290, %v3450
    %v3452 = vpop.f32.mrf.mxu0
    %v3453 = vpop.f32.mrf.mxu0
    %v3454 = vadd.f32 %v3293, %v3453
    %v3455 = vpop.f32.mrf.mxu0
    %3456 = vmatprep.mubr.bf16.mxu0 %v1637
    %3457 = vmatmul.mubr.bf16.gmra.mxu0 %v1636
    %v3458 = vpop.f32.mrf.mxu0
    %v3459 = vadd.f32 %v3298, %v3458
    %v3460 = vpop.f32.mrf.mxu0
    %v3461 = vpop.f32.mrf.mxu0
    %v3462 = vadd.f32 %v3301, %v3461
    %v3463 = vpop.f32.mrf.mxu0
    %3464 = vmatprep.mubr.bf16.mxu0 %v1641
    %3465 = vmatmul.mubr.bf16.gmra.mxu0 %v1640
    %v3466 = vpop.f32.mrf.mxu0
    %v3467 = vadd.f32 %v3306, %v3466
    %v3468 = vpop.f32.mrf.mxu0
    %v3469 = vpop.f32.mrf.mxu0
    %v3470 = vadd.f32 %v3309, %v3469
    %v3471 = vpop.f32.mrf.mxu0
    %3472 = vmatprep.mubr.bf16.mxu0 %v1645
    %3473 = vmatmul.mubr.bf16.gmra.mxu0 %v1644
    %v3474 = vpop.f32.mrf.mxu0
    %v3475 = vadd.f32 %v3314, %v3474
    %v3476 = vpop.f32.mrf.mxu0
    %v3477 = vpop.f32.mrf.mxu0
    %v3478 = vadd.f32 %v3317, %v3477
    %v3479 = vpop.f32.mrf.mxu0
    %3480 = vmatprep.mubr.bf16.mxu0 %v1649
    %3481 = vmatmul.mubr.bf16.gmra.mxu0 %v1648
    %v3482 = vpop.f32.mrf.mxu0
    %v3483 = vadd.f32 %v3322, %v3482
    %v3484 = vpop.f32.mrf.mxu0
    %v3485 = vpop.f32.mrf.mxu0
    %v3486 = vadd.f32 %v3325, %v3485
    %v3487 = vpop.f32.mrf.mxu0
    %3488 = vmatprep.mubr.bf16.mxu0 %v1653
    %3489 = vmatmul.mubr.bf16.gmra.mxu0 %v1652
    %v3490 = vpop.f32.mrf.mxu0
    %v3491 = vadd.f32 %v3330, %v3490
    %v3492 = vpop.f32.mrf.mxu0
    %v3493 = vpop.f32.mrf.mxu0
    %v3494 = vadd.f32 %v3333, %v3493
    %v3495 = vpop.f32.mrf.mxu0
    %3496 = vmatprep.mubr.bf16.mxu0 %v1657
    %3497 = vmatmul.mubr.bf16.gmra.mxu0 %v1656
    %v3498 = vpop.f32.mrf.mxu0
    %v3499 = vadd.f32 %v3338, %v3498
    %v3500 = vpop.f32.mrf.mxu0
    %v3501 = vpop.f32.mrf.mxu0
    %v3502 = vadd.f32 %v3341, %v3501
    %v3503 = vpop.f32.mrf.mxu0
    %3504 = vmatprep.mubr.bf16.mxu0 %v1661
    %3505 = vmatmul.mubr.bf16.gmra.mxu0 %v1660
    %v3506 = vpop.f32.mrf.mxu0
    %v3507 = vadd.f32 %v3346, %v3506
    %v3508 = vpop.f32.mrf.mxu0
    %v3509 = vpop.f32.mrf.mxu0
    %v3510 = vadd.f32 %v3349, %v3509
    %v3511 = vpop.f32.mrf.mxu0
    %3512 = vmatprep.mubr.bf16.mxu0 %v1665
    %3513 = vmatmul.mubr.bf16.gmra.mxu0 %v1664
    %v3514 = vpop.f32.mrf.mxu0
    %v3515 = vadd.f32 %v3354, %v3514
    %v3516 = vpop.f32.mrf.mxu0
    %v3517 = vpop.f32.mrf.mxu0
    %v3518 = vadd.f32 %v3357, %v3517
    %v3519 = vpop.f32.mrf.mxu0
    %3520 = vmatprep.mubr.bf16.mxu0 %v1669
    %3521 = vmatmul.mubr.bf16.gmra.mxu0 %v1668
    %v3522 = vpop.f32.mrf.mxu0
    %v3523 = vadd.f32 %v3362, %v3522
    %v3524 = vpop.f32.mrf.mxu0
    %v3525 = vpop.f32.mrf.mxu0
    %v3526 = vadd.f32 %v3365, %v3525
    %v3527 = vpop.f32.mrf.mxu0
    %3528 = vdwg.mxu0
    %v3530 = vlaneseq
    %v3531 = vshrl.u32 %v3530, 7
    %v3532 = vsub.s32 0, %v3531
    %v3533 = vrot.slane %v112, %v3532
    %v3534 = vlaneseq
    %v3535 = vshrl.u32 %v3534, 7
    %v3536 = vsub.s32 1, %v3535
    %v3537 = vrot.slane %v112, %v3536
    %v3538 = vlaneseq
    %v3539 = vshrl.u32 %v3538, 7
    %v3540 = vsub.s32 2, %v3539
    %v3541 = vrot.slane %v112, %v3540
    %v3545 = vadd.f32 %v3049, %v3533
    %v3546 = vadd.f32 %v3051, %v3537
    %v3547 = vadd.f32 %v3403, %v3541
    %v3548 = vadd.f32 %v3053, %v3533
    %v3549 = vadd.f32 %v3055, %v3537
    %v3550 = vadd.f32 %v3406, %v3541
    %v3551 = vadd.f32 %v3059, %v3533
    %v3552 = vadd.f32 %v3061, %v3537
    %v3553 = vadd.f32 %v3411, %v3541
    %v3554 = vadd.f32 %v3063, %v3533
    %v3555 = vadd.f32 %v3065, %v3537
    %v3556 = vadd.f32 %v3414, %v3541
    %v3557 = vadd.f32 %v3069, %v3533
    %v3558 = vadd.f32 %v3071, %v3537
    %v3559 = vadd.f32 %v3419, %v3541
    %v3560 = vadd.f32 %v3073, %v3533
    %v3561 = vadd.f32 %v3075, %v3537
    %v3562 = vadd.f32 %v3422, %v3541
    %v3563 = vadd.f32 %v3079, %v3533
    %v3564 = vadd.f32 %v3081, %v3537
    %v3565 = vadd.f32 %v3427, %v3541
    %v3566 = vadd.f32 %v3083, %v3533
    %v3567 = vadd.f32 %v3085, %v3537
    %v3568 = vadd.f32 %v3430, %v3541
    %v3569 = vadd.f32 %v3089, %v3533
    %v3570 = vadd.f32 %v3091, %v3537
    %v3571 = vadd.f32 %v3435, %v3541
    %v3572 = vadd.f32 %v3093, %v3533
    %v3573 = vadd.f32 %v3095, %v3537
    %v3574 = vadd.f32 %v3438, %v3541
    %v3575 = vadd.f32 %v3099, %v3533
    %v3576 = vadd.f32 %v3101, %v3537
    %v3577 = vadd.f32 %v3443, %v3541
    %v3578 = vadd.f32 %v3103, %v3533
    %v3579 = vadd.f32 %v3105, %v3537
    %v3580 = vadd.f32 %v3446, %v3541
    %v3581 = vadd.f32 %v3109, %v3533
    %v3582 = vadd.f32 %v3111, %v3537
    %v3583 = vadd.f32 %v3451, %v3541
    %v3584 = vadd.f32 %v3113, %v3533
    %v3585 = vadd.f32 %v3115, %v3537
    %v3586 = vadd.f32 %v3454, %v3541
    %v3587 = vadd.f32 %v3119, %v3533
    %v3588 = vadd.f32 %v3121, %v3537
    %v3589 = vadd.f32 %v3459, %v3541
    %v3590 = vadd.f32 %v3123, %v3533
    %v3591 = vadd.f32 %v3125, %v3537
    %v3592 = vadd.f32 %v3462, %v3541
    %v3593 = vadd.f32 %v3129, %v3533
    %v3594 = vadd.f32 %v3131, %v3537
    %v3595 = vadd.f32 %v3467, %v3541
    %v3596 = vadd.f32 %v3133, %v3533
    %v3597 = vadd.f32 %v3135, %v3537
    %v3598 = vadd.f32 %v3470, %v3541
    %v3599 = vadd.f32 %v3139, %v3533
    %v3600 = vadd.f32 %v3141, %v3537
    %v3601 = vadd.f32 %v3475, %v3541
    %v3602 = vadd.f32 %v3143, %v3533
    %v3603 = vadd.f32 %v3145, %v3537
    %v3604 = vadd.f32 %v3478, %v3541
    %v3605 = vadd.f32 %v3149, %v3533
    %v3606 = vadd.f32 %v3151, %v3537
    %v3607 = vadd.f32 %v3483, %v3541
    %v3608 = vadd.f32 %v3153, %v3533
    %v3609 = vadd.f32 %v3155, %v3537
    %v3610 = vadd.f32 %v3486, %v3541
    %v3611 = vadd.f32 %v3159, %v3533
    %v3612 = vadd.f32 %v3161, %v3537
    %v3613 = vadd.f32 %v3491, %v3541
    %v3614 = vadd.f32 %v3163, %v3533
    %v3615 = vadd.f32 %v3165, %v3537
    %v3616 = vadd.f32 %v3494, %v3541
    %v3617 = vadd.f32 %v3169, %v3533
    %v3618 = vadd.f32 %v3171, %v3537
    %v3619 = vadd.f32 %v3499, %v3541
    %v3620 = vadd.f32 %v3173, %v3533
    %v3621 = vadd.f32 %v3175, %v3537
    %v3622 = vadd.f32 %v3502, %v3541
    %v3623 = vadd.f32 %v3179, %v3533
    %v3624 = vadd.f32 %v3181, %v3537
    %v3625 = vadd.f32 %v3507, %v3541
    %v3626 = vadd.f32 %v3183, %v3533
    %v3627 = vadd.f32 %v3185, %v3537
    %v3628 = vadd.f32 %v3510, %v3541
    %v3629 = vadd.f32 %v3189, %v3533
    %v3630 = vadd.f32 %v3191, %v3537
    %v3631 = vadd.f32 %v3515, %v3541
    %v3632 = vadd.f32 %v3193, %v3533
    %v3633 = vadd.f32 %v3195, %v3537
    %v3634 = vadd.f32 %v3518, %v3541
    %v3635 = vadd.f32 %v3199, %v3533
    %v3636 = vadd.f32 %v3201, %v3537
    %v3637 = vadd.f32 %v3523, %v3541
    %v3638 = vadd.f32 %v3203, %v3533
    %v3639 = vadd.f32 %v3205, %v3537
    %v3640 = vadd.f32 %v3526, %v3541
    %v3641 = vmax.f32 %v3545, 0.0
    %v3642 = vmax.f32 %v3546, 0.0
    %v3643 = vmax.f32 %v3547, 0.0
    %v3644 = vmax.f32 %v3548, 0.0
    %v3645 = vmax.f32 %v3549, 0.0
    %v3646 = vmax.f32 %v3550, 0.0
    %v3647 = vmax.f32 %v3551, 0.0
    %v3648 = vmax.f32 %v3552, 0.0
    %v3649 = vmax.f32 %v3553, 0.0
    %v3650 = vmax.f32 %v3554, 0.0
    %v3651 = vmax.f32 %v3555, 0.0
    %v3652 = vmax.f32 %v3556, 0.0
    %v3653 = vmax.f32 %v3557, 0.0
    %v3654 = vmax.f32 %v3558, 0.0
    %v3655 = vmax.f32 %v3559, 0.0
    %v3656 = vmax.f32 %v3560, 0.0
    %v3657 = vmax.f32 %v3561, 0.0
    %v3658 = vmax.f32 %v3562, 0.0
    %v3659 = vmax.f32 %v3563, 0.0
    %v3660 = vmax.f32 %v3564, 0.0
    %v3661 = vmax.f32 %v3565, 0.0
    %v3662 = vmax.f32 %v3566, 0.0
    %v3663 = vmax.f32 %v3567, 0.0
    %v3664 = vmax.f32 %v3568, 0.0
    %v3665 = vmax.f32 %v3569, 0.0
    %v3666 = vmax.f32 %v3570, 0.0
    %v3667 = vmax.f32 %v3571, 0.0
    %v3668 = vmax.f32 %v3572, 0.0
    %v3669 = vmax.f32 %v3573, 0.0
    %v3670 = vmax.f32 %v3574, 0.0
    %v3671 = vmax.f32 %v3575, 0.0
    %v3672 = vmax.f32 %v3576, 0.0
    %v3673 = vmax.f32 %v3577, 0.0
    %v3674 = vmax.f32 %v3578, 0.0
    %v3675 = vmax.f32 %v3579, 0.0
    %v3676 = vmax.f32 %v3580, 0.0
    %v3677 = vmax.f32 %v3581, 0.0
    %v3678 = vmax.f32 %v3582, 0.0
    %v3679 = vmax.f32 %v3583, 0.0
    %v3680 = vmax.f32 %v3584, 0.0
    %v3681 = vmax.f32 %v3585, 0.0
    %v3682 = vmax.f32 %v3586, 0.0
    %v3683 = vmax.f32 %v3587, 0.0
    %v3684 = vmax.f32 %v3588, 0.0
    %v3685 = vmax.f32 %v3589, 0.0
    %v3686 = vmax.f32 %v3590, 0.0
    %v3687 = vmax.f32 %v3591, 0.0
    %v3688 = vmax.f32 %v3592, 0.0
    %v3689 = vmax.f32 %v3593, 0.0
    %v3690 = vmax.f32 %v3594, 0.0
    %v3691 = vmax.f32 %v3595, 0.0
    %v3692 = vmax.f32 %v3596, 0.0
    %v3693 = vmax.f32 %v3597, 0.0
    %v3694 = vmax.f32 %v3598, 0.0
    %v3695 = vmax.f32 %v3599, 0.0
    %v3696 = vmax.f32 %v3600, 0.0
    %v3697 = vmax.f32 %v3601, 0.0
    %v3698 = vmax.f32 %v3602, 0.0
    %v3699 = vmax.f32 %v3603, 0.0
    %v3700 = vmax.f32 %v3604, 0.0
    %v3701 = vmax.f32 %v3605, 0.0
    %v3702 = vmax.f32 %v3606, 0.0
    %v3703 = vmax.f32 %v3607, 0.0
    %v3704 = vmax.f32 %v3608, 0.0
    %v3705 = vmax.f32 %v3609, 0.0
    %v3706 = vmax.f32 %v3610, 0.0
    %v3707 = vmax.f32 %v3611, 0.0
    %v3708 = vmax.f32 %v3612, 0.0
    %v3709 = vmax.f32 %v3613, 0.0
    %v3710 = vmax.f32 %v3614, 0.0
    %v3711 = vmax.f32 %v3615, 0.0
    %v3712 = vmax.f32 %v3616, 0.0
    %v3713 = vmax.f32 %v3617, 0.0
    %v3714 = vmax.f32 %v3618, 0.0
    %v3715 = vmax.f32 %v3619, 0.0
    %v3716 = vmax.f32 %v3620, 0.0
    %v3717 = vmax.f32 %v3621, 0.0
    %v3718 = vmax.f32 %v3622, 0.0
    %v3719 = vmax.f32 %v3623, 0.0
    %v3720 = vmax.f32 %v3624, 0.0
    %v3721 = vmax.f32 %v3625, 0.0
    %v3722 = vmax.f32 %v3626, 0.0
    %v3723 = vmax.f32 %v3627, 0.0
    %v3724 = vmax.f32 %v3628, 0.0
    %v3725 = vmax.f32 %v3629, 0.0
    %v3726 = vmax.f32 %v3630, 0.0
    %v3727 = vmax.f32 %v3631, 0.0
    %v3728 = vmax.f32 %v3632, 0.0
    %v3729 = vmax.f32 %v3633, 0.0
    %v3730 = vmax.f32 %v3634, 0.0
    %v3731 = vmax.f32 %v3635, 0.0
    %v3732 = vmax.f32 %v3636, 0.0
    %v3733 = vmax.f32 %v3637, 0.0
    %v3734 = vmax.f32 %v3638, 0.0
    %v3735 = vmax.f32 %v3639, 0.0
    %v3736 = vmax.f32 %v3640, 0.0
    %v3737 = vpack.c.bf16 %v3644, %v3641
    %v3738 = vpack.c.bf16 %v3645, %v3642
    %v3739 = vpack.c.bf16 %v3646, %v3643
    %v3740 = vpack.c.bf16 %v3650, %v3647
    %v3741 = vpack.c.bf16 %v3651, %v3648
    %v3742 = vpack.c.bf16 %v3652, %v3649
    %v3743 = vpack.c.bf16 %v3656, %v3653
    %v3744 = vpack.c.bf16 %v3657, %v3654
    %v3745 = vpack.c.bf16 %v3658, %v3655
    %v3746 = vpack.c.bf16 %v3662, %v3659
    %v3747 = vpack.c.bf16 %v3663, %v3660
    %v3748 = vpack.c.bf16 %v3664, %v3661
    %v3749 = vpack.c.bf16 %v3668, %v3665
    %v3750 = vpack.c.bf16 %v3669, %v3666
    %v3751 = vpack.c.bf16 %v3670, %v3667
    %v3752 = vpack.c.bf16 %v3674, %v3671
    %v3753 = vpack.c.bf16 %v3675, %v3672
    %v3754 = vpack.c.bf16 %v3676, %v3673
    %v3755 = vpack.c.bf16 %v3680, %v3677
    %v3756 = vpack.c.bf16 %v3681, %v3678
    %v3757 = vpack.c.bf16 %v3682, %v3679
    %v3758 = vpack.c.bf16 %v3686, %v3683
    %v3759 = vpack.c.bf16 %v3687, %v3684
    %v3760 = vpack.c.bf16 %v3688, %v3685
    %v3761 = vpack.c.bf16 %v3692, %v3689
    %v3762 = vpack.c.bf16 %v3693, %v3690
    %v3763 = vpack.c.bf16 %v3694, %v3691
    %v3764 = vpack.c.bf16 %v3698, %v3695
    %v3765 = vpack.c.bf16 %v3699, %v3696
    %v3766 = vpack.c.bf16 %v3700, %v3697
    %v3767 = vpack.c.bf16 %v3704, %v3701
    %v3768 = vpack.c.bf16 %v3705, %v3702
    %v3769 = vpack.c.bf16 %v3706, %v3703
    %v3770 = vpack.c.bf16 %v3710, %v3707
    %v3771 = vpack.c.bf16 %v3711, %v3708
    %v3772 = vpack.c.bf16 %v3712, %v3709
    %v3773 = vpack.c.bf16 %v3716, %v3713
    %v3774 = vpack.c.bf16 %v3717, %v3714
    %v3775 = vpack.c.bf16 %v3718, %v3715
    %v3776 = vpack.c.bf16 %v3722, %v3719
    %v3777 = vpack.c.bf16 %v3723, %v3720
    %v3778 = vpack.c.bf16 %v3724, %v3721
    %v3779 = vpack.c.bf16 %v3728, %v3725
    %v3780 = vpack.c.bf16 %v3729, %v3726
    %v3781 = vpack.c.bf16 %v3730, %v3727
    %v3782 = vpack.c.bf16 %v3734, %v3731
    %v3783 = vpack.c.bf16 %v3735, %v3732
    %v3784 = vpack.c.bf16 %v3736, %v3733
    %v3785 = vld [vmem:[%s5] sm:$0xf]
    %v3786 = vld [vmem:[%s5 + $0x4] sm:$0xf]
    %v3787 = vld [vmem:[%s5 + $0x8] sm:$0xf]
    %v3788 = vld [vmem:[%s5 + $0xc] sm:$0xf]
    %v3789 = vld [vmem:[%s5 + $0x10] sm:$0xf]
    %v3790 = vld [vmem:[%s5 + $0x14] sm:$0xf]
    %v3791 = vld [vmem:[%s5 + $0x18] sm:$0xf]
    %v3792 = vld [vmem:[%s5 + $0x1c] sm:$0xf]
    %v3793 = vld [vmem:[%s5 + $0x20] sm:$0xf]
    %v3794 = vld [vmem:[%s5 + $0x24] sm:$0xf]
    %v3795 = vld [vmem:[%s5 + $0x28] sm:$0xf]
    %v3796 = vld [vmem:[%s5 + $0x2c] sm:$0xf]
    %v3797 = vld [vmem:[%s5 + $0x30] sm:$0xf]
    %v3798 = vld [vmem:[%s5 + $0x34] sm:$0xf]
    %v3799 = vld [vmem:[%s5 + $0x38] sm:$0xf]
    %v3800 = vld [vmem:[%s5 + $0x3c] sm:$0xf]
    %v3801 = vld [vmem:[%s5 + $0x40] sm:$0xf]
    %v3802 = vld [vmem:[%s5 + $0x44] sm:$0xf]
    %v3803 = vld [vmem:[%s5 + $0x48] sm:$0xf]
    %v3804 = vld [vmem:[%s5 + $0x4c] sm:$0xf]
    %v3805 = vld [vmem:[%s5 + $0x50] sm:$0xf]
    %v3806 = vld [vmem:[%s5 + $0x54] sm:$0xf]
    %v3807 = vld [vmem:[%s5 + $0x58] sm:$0xf]
    %v3808 = vld [vmem:[%s5 + $0x5c] sm:$0xf]
    %v3809 = vld [vmem:[%s5 + $0x60] sm:$0xf]
    %v3810 = vld [vmem:[%s5 + $0x64] sm:$0xf]
    %v3811 = vld [vmem:[%s5 + $0x68] sm:$0xf]
    %v3812 = vld [vmem:[%s5 + $0x6c] sm:$0xf]
    %v3813 = vld [vmem:[%s5 + $0x70] sm:$0xf]
    %v3814 = vld [vmem:[%s5 + $0x74] sm:$0xf]
    %v3815 = vld [vmem:[%s5 + $0x78] sm:$0xf]
    %v3816 = vld [vmem:[%s5 + $0x7c] sm:$0xf]
    %v3817 = vld [vmem:[%s5 + $0x80] sm:$0xf]
    %v3818 = vld [vmem:[%s5 + $0x84] sm:$0xf]
    %v3819 = vld [vmem:[%s5 + $0x88] sm:$0xf]
    %v3820 = vld [vmem:[%s5 + $0x8c] sm:$0xf]
    %v3821 = vld [vmem:[%s5 + $0x90] sm:$0xf]
    %v3822 = vld [vmem:[%s5 + $0x94] sm:$0xf]
    %v3823 = vld [vmem:[%s5 + $0x98] sm:$0xf]
    %v3824 = vld [vmem:[%s5 + $0x9c] sm:$0xf]
    %v3825 = vld [vmem:[%s5 + $0xa0] sm:$0xf]
    %v3826 = vld [vmem:[%s5 + $0xa4] sm:$0xf]
    %v3827 = vld [vmem:[%s5 + $0xa8] sm:$0xf]
    %v3828 = vld [vmem:[%s5 + $0xac] sm:$0xf]
    %v3829 = vld [vmem:[%s5 + $0xb0] sm:$0xf]
    %v3830 = vld [vmem:[%s5 + $0xb4] sm:$0xf]
    %v3831 = vld [vmem:[%s5 + $0xb8] sm:$0xf]
    %v3832 = vld [vmem:[%s5 + $0xbc] sm:$0xf]
    %v3881 = vunpack.c.l.b16 %v3785
    %v3882 = vunpack.c.l.b16 %v3786
    %v3883 = vunpack.c.l.b16 %v3787
    %v3884 = vunpack.c.l.b16 %v3788
    %v3885 = vunpack.c.l.b16 %v3789
    %v3886 = vunpack.c.l.b16 %v3790
    %v3887 = vunpack.c.l.b16 %v3791
    %v3888 = vunpack.c.l.b16 %v3792
    %v3889 = vunpack.c.l.b16 %v3793
    %v3890 = vunpack.c.l.b16 %v3794
    %v3891 = vunpack.c.l.b16 %v3795
    %v3892 = vunpack.c.l.b16 %v3796
    %v3893 = vunpack.c.l.b16 %v3797
    %v3894 = vunpack.c.l.b16 %v3798
    %v3895 = vunpack.c.l.b16 %v3799
    %v3896 = vunpack.c.l.b16 %v3800
    %v3897 = vunpack.c.l.b16 %v3801
    %v3898 = vunpack.c.l.b16 %v3802
    %v3899 = vunpack.c.l.b16 %v3803
    %v3900 = vunpack.c.l.b16 %v3804
    %v3901 = vunpack.c.l.b16 %v3805
    %v3902 = vunpack.c.l.b16 %v3806
    %v3903 = vunpack.c.l.b16 %v3807
    %v3904 = vunpack.c.l.b16 %v3808
    %v3905 = vunpack.c.l.b16 %v3809
    %v3906 = vunpack.c.l.b16 %v3810
    %v3907 = vunpack.c.l.b16 %v3811
    %v3908 = vunpack.c.l.b16 %v3812
    %v3909 = vunpack.c.l.b16 %v3813
    %v3910 = vunpack.c.l.b16 %v3814
    %v3911 = vunpack.c.l.b16 %v3815
    %v3912 = vunpack.c.l.b16 %v3816
    %v3913 = vunpack.c.l.b16 %v3817
    %v3914 = vunpack.c.l.b16 %v3818
    %v3915 = vunpack.c.l.b16 %v3819
    %v3916 = vunpack.c.l.b16 %v3820
    %v3917 = vunpack.c.l.b16 %v3821
    %v3918 = vunpack.c.l.b16 %v3822
    %v3919 = vunpack.c.l.b16 %v3823
    %v3920 = vunpack.c.l.b16 %v3824
    %v3921 = vunpack.c.l.b16 %v3825
    %v3922 = vunpack.c.l.b16 %v3826
    %v3923 = vunpack.c.l.b16 %v3827
    %v3924 = vunpack.c.l.b16 %v3828
    %v3925 = vunpack.c.l.b16 %v3829
    %v3926 = vunpack.c.l.b16 %v3830
    %v3927 = vunpack.c.l.b16 %v3831
    %v3928 = vunpack.c.l.b16 %v3832
    %v3929 = vpack.c.b16 %v3882, %v3881
    %v3930 = vpack.c.b16 %v3884, %v3883
    %v3931 = vpack.c.b16 %v3886, %v3885
    %v3932 = vpack.c.b16 %v3888, %v3887
    %v3933 = vpack.c.b16 %v3890, %v3889
    %v3934 = vpack.c.b16 %v3892, %v3891
    %v3935 = vpack.c.b16 %v3894, %v3893
    %v3936 = vpack.c.b16 %v3896, %v3895
    %v3937 = vpack.c.b16 %v3898, %v3897
    %v3938 = vpack.c.b16 %v3900, %v3899
    %v3939 = vpack.c.b16 %v3902, %v3901
    %v3940 = vpack.c.b16 %v3904, %v3903
    %v3941 = vpack.c.b16 %v3906, %v3905
    %v3942 = vpack.c.b16 %v3908, %v3907
    %v3943 = vpack.c.b16 %v3910, %v3909
    %v3944 = vpack.c.b16 %v3912, %v3911
    %v3945 = vpack.c.b16 %v3914, %v3913
    %v3946 = vpack.c.b16 %v3916, %v3915
    %v3947 = vpack.c.b16 %v3918, %v3917
    %v3948 = vpack.c.b16 %v3920, %v3919
    %v3949 = vpack.c.b16 %v3922, %v3921
    %v3950 = vpack.c.b16 %v3924, %v3923
    %v3951 = vpack.c.b16 %v3926, %v3925
    %v3952 = vpack.c.b16 %v3928, %v3927
    %3977 = vmatprep.subr.bf16.mxu0 0
    %3978 = vmatpush1.bf16.msra.mxu0 %v3936
    %3979 = vmatprep.subr.bf16.mxu0 0
    %3980 = vmatpush1.bf16.msra.mxu0 %v3935
    %3981 = vmatprep.subr.bf16.mxu0 0
    %3982 = vmatpush1.bf16.msra.mxu0 %v3934
    %3983 = vmatprep.subr.bf16.mxu0 0
    %3984 = vmatpush1.bf16.msra.mxu0 %v3933
    %3985 = vmatprep.subr.bf16.mxu0 0
    %3986 = vmatpush1.bf16.msra.mxu0 %v3932
    %3987 = vmatprep.subr.bf16.mxu0 0
    %3988 = vmatpush1.bf16.msra.mxu0 %v3931
    %3989 = vmatprep.subr.bf16.mxu0 0
    %3990 = vmatpush1.bf16.msra.mxu0 %v3930
    %3991 = vmatprep.subr.bf16.mxu0 0
    %3992 = vmatpush1.bf16.msra.mxu0 %v3929
    %3993 = vmatprep.subr.bf16.mxu0 0
    %3994 = vmatpush2.bf16.msra.mxu0 %v3944
    %3995 = vmatprep.subr.bf16.mxu0 0
    %3996 = vmatpush2.bf16.msra.mxu0 %v3943
    %3997 = vmatprep.subr.bf16.mxu0 0
    %3998 = vmatpush2.bf16.msra.mxu0 %v3942
    %3999 = vmatprep.subr.bf16.mxu0 0
    %4000 = vmatpush2.bf16.msra.mxu0 %v3941
    %4001 = vmatprep.subr.bf16.mxu0 0
    %4002 = vmatpush2.bf16.msra.mxu0 %v3940
    %4003 = vmatprep.subr.bf16.mxu0 0
    %4004 = vmatpush2.bf16.msra.mxu0 %v3939
    %4005 = vmatprep.subr.bf16.mxu0 0
    %4006 = vmatpush2.bf16.msra.mxu0 %v3938
    %4007 = vmatprep.subr.bf16.mxu0 0
    %4008 = vmatpush2.bf16.msra.mxu0 %v3937
    %4009 = vmatprep.mubr.bf16.mxu0 %v3738
    %4010 = vmatmul.mubr.bf16.gmra.mxu0 %v3737
    %v4011 = vpop.f32.mrf.mxu0
    %v4012 = vadd.f32 %v113, %v4011
    %v4013 = vpop.f32.mrf.mxu0
    %v4014 = vpop.f32.mrf.mxu0
    %v4015 = vadd.f32 %v113, %v4014
    %v4016 = vpop.f32.mrf.mxu0
    %4017 = vmatprep.mubr.bf16.mxu0 %v3741
    %4018 = vmatmul.mubr.bf16.gmra.mxu0 %v3740
    %v4019 = vpop.f32.mrf.mxu0
    %v4020 = vadd.f32 %v113, %v4019
    %v4021 = vpop.f32.mrf.mxu0
    %v4022 = vpop.f32.mrf.mxu0
    %v4023 = vadd.f32 %v113, %v4022
    %v4024 = vpop.f32.mrf.mxu0
    %4025 = vmatprep.mubr.bf16.mxu0 %v3744
    %4026 = vmatmul.mubr.bf16.gmra.mxu0 %v3743
    %v4027 = vpop.f32.mrf.mxu0
    %v4028 = vadd.f32 %v113, %v4027
    %v4029 = vpop.f32.mrf.mxu0
    %v4030 = vpop.f32.mrf.mxu0
    %v4031 = vadd.f32 %v113, %v4030
    %v4032 = vpop.f32.mrf.mxu0
    %4033 = vmatprep.mubr.bf16.mxu0 %v3747
    %4034 = vmatmul.mubr.bf16.gmra.mxu0 %v3746
    %v4035 = vpop.f32.mrf.mxu0
    %v4036 = vadd.f32 %v113, %v4035
    %v4037 = vpop.f32.mrf.mxu0
    %v4038 = vpop.f32.mrf.mxu0
    %v4039 = vadd.f32 %v113, %v4038
    %v4040 = vpop.f32.mrf.mxu0
    %4041 = vmatprep.mubr.bf16.mxu0 %v3750
    %4042 = vmatmul.mubr.bf16.gmra.mxu0 %v3749
    %v4043 = vpop.f32.mrf.mxu0
    %v4044 = vadd.f32 %v113, %v4043
    %v4045 = vpop.f32.mrf.mxu0
    %v4046 = vpop.f32.mrf.mxu0
    %v4047 = vadd.f32 %v113, %v4046
    %v4048 = vpop.f32.mrf.mxu0
    %4049 = vmatprep.mubr.bf16.mxu0 %v3753
    %4050 = vmatmul.mubr.bf16.gmra.mxu0 %v3752
    %v4051 = vpop.f32.mrf.mxu0
    %v4052 = vadd.f32 %v113, %v4051
    %v4053 = vpop.f32.mrf.mxu0
    %v4054 = vpop.f32.mrf.mxu0
    %v4055 = vadd.f32 %v113, %v4054
    %v4056 = vpop.f32.mrf.mxu0
    %4057 = vmatprep.mubr.bf16.mxu0 %v3756
    %4058 = vmatmul.mubr.bf16.gmra.mxu0 %v3755
    %v4059 = vpop.f32.mrf.mxu0
    %v4060 = vadd.f32 %v113, %v4059
    %v4061 = vpop.f32.mrf.mxu0
    %v4062 = vpop.f32.mrf.mxu0
    %v4063 = vadd.f32 %v113, %v4062
    %v4064 = vpop.f32.mrf.mxu0
    %4065 = vmatprep.mubr.bf16.mxu0 %v3759
    %4066 = vmatmul.mubr.bf16.gmra.mxu0 %v3758
    %v4067 = vpop.f32.mrf.mxu0
    %v4068 = vadd.f32 %v113, %v4067
    %v4069 = vpop.f32.mrf.mxu0
    %v4070 = vpop.f32.mrf.mxu0
    %v4071 = vadd.f32 %v113, %v4070
    %v4072 = vpop.f32.mrf.mxu0
    %4073 = vmatprep.mubr.bf16.mxu0 %v3762
    %4074 = vmatmul.mubr.bf16.gmra.mxu0 %v3761
    %v4075 = vpop.f32.mrf.mxu0
    %v4076 = vadd.f32 %v113, %v4075
    %v4077 = vpop.f32.mrf.mxu0
    %v4078 = vpop.f32.mrf.mxu0
    %v4079 = vadd.f32 %v113, %v4078
    %v4080 = vpop.f32.mrf.mxu0
    %4081 = vmatprep.mubr.bf16.mxu0 %v3765
    %4082 = vmatmul.mubr.bf16.gmra.mxu0 %v3764
    %v4083 = vpop.f32.mrf.mxu0
    %v4084 = vadd.f32 %v113, %v4083
    %v4085 = vpop.f32.mrf.mxu0
    %v4086 = vpop.f32.mrf.mxu0
    %v4087 = vadd.f32 %v113, %v4086
    %v4088 = vpop.f32.mrf.mxu0
    %4089 = vmatprep.mubr.bf16.mxu0 %v3768
    %4090 = vmatmul.mubr.bf16.gmra.mxu0 %v3767
    %v4091 = vpop.f32.mrf.mxu0
    %v4092 = vadd.f32 %v113, %v4091
    %v4093 = vpop.f32.mrf.mxu0
    %v4094 = vpop.f32.mrf.mxu0
    %v4095 = vadd.f32 %v113, %v4094
    %v4096 = vpop.f32.mrf.mxu0
    %4097 = vmatprep.mubr.bf16.mxu0 %v3771
    %4098 = vmatmul.mubr.bf16.gmra.mxu0 %v3770
    %v4099 = vpop.f32.mrf.mxu0
    %v4100 = vadd.f32 %v113, %v4099
    %v4101 = vpop.f32.mrf.mxu0
    %v4102 = vpop.f32.mrf.mxu0
    %v4103 = vadd.f32 %v113, %v4102
    %v4104 = vpop.f32.mrf.mxu0
    %4105 = vmatprep.mubr.bf16.mxu0 %v3774
    %4106 = vmatmul.mubr.bf16.gmra.mxu0 %v3773
    %v4107 = vpop.f32.mrf.mxu0
    %v4108 = vadd.f32 %v113, %v4107
    %v4109 = vpop.f32.mrf.mxu0
    %v4110 = vpop.f32.mrf.mxu0
    %v4111 = vadd.f32 %v113, %v4110
    %v4112 = vpop.f32.mrf.mxu0
    %4113 = vmatprep.mubr.bf16.mxu0 %v3777
    %4114 = vmatmul.mubr.bf16.gmra.mxu0 %v3776
    %v4115 = vpop.f32.mrf.mxu0
    %v4116 = vadd.f32 %v113, %v4115
    %v4117 = vpop.f32.mrf.mxu0
    %v4118 = vpop.f32.mrf.mxu0
    %v4119 = vadd.f32 %v113, %v4118
    %v4120 = vpop.f32.mrf.mxu0
    %4121 = vmatprep.mubr.bf16.mxu0 %v3780
    %4122 = vmatmul.mubr.bf16.gmra.mxu0 %v3779
    %v4123 = vpop.f32.mrf.mxu0
    %v4124 = vadd.f32 %v113, %v4123
    %v4125 = vpop.f32.mrf.mxu0
    %v4126 = vpop.f32.mrf.mxu0
    %v4127 = vadd.f32 %v113, %v4126
    %v4128 = vpop.f32.mrf.mxu0
    %4129 = vmatprep.mubr.bf16.mxu0 %v3783
    %4130 = vmatmul.mubr.bf16.gmra.mxu0 %v3782
    %v4131 = vpop.f32.mrf.mxu0
    %v4132 = vadd.f32 %v113, %v4131
    %v4133 = vpop.f32.mrf.mxu0
    %v4134 = vpop.f32.mrf.mxu0
    %v4135 = vadd.f32 %v113, %v4134
    %v4136 = vpop.f32.mrf.mxu0
    %4137 = vdwg.mxu0
    %4138 = vmatprep.subr.bf16.mxu0 0
    %4139 = vmatpush1.bf16.msra.mxu0 %v3952
    %4140 = vmatprep.subr.bf16.mxu0 0
    %4141 = vmatpush1.bf16.msra.mxu0 %v3951
    %4142 = vmatprep.subr.bf16.mxu0 0
    %4143 = vmatpush1.bf16.msra.mxu0 %v3950
    %4144 = vmatprep.subr.bf16.mxu0 0
    %4145 = vmatpush1.bf16.msra.mxu0 %v3949
    %4146 = vmatprep.subr.bf16.mxu0 0
    %4147 = vmatpush1.bf16.msra.mxu0 %v3948
    %4148 = vmatprep.subr.bf16.mxu0 0
    %4149 = vmatpush1.bf16.msra.mxu0 %v3947
    %4150 = vmatprep.subr.bf16.mxu0 0
    %4151 = vmatpush1.bf16.msra.mxu0 %v3946
    %4152 = vmatprep.subr.bf16.mxu0 0
    %4153 = vmatpush1.bf16.msra.mxu0 %v3945
    %4154 = vmatprep.subr.bf16.mxu0 0
    %4155 = vmatpush2.bf16.msra.mxu0 0
    %4156 = vmatprep.subr.bf16.mxu0 0
    %4157 = vmatpush2.bf16.msra.mxu0 0
    %4158 = vmatprep.subr.bf16.mxu0 0
    %4159 = vmatpush2.bf16.msra.mxu0 0
    %4160 = vmatprep.subr.bf16.mxu0 0
    %4161 = vmatpush2.bf16.msra.mxu0 0
    %4162 = vmatprep.subr.bf16.mxu0 0
    %4163 = vmatpush2.bf16.msra.mxu0 0
    %4164 = vmatprep.subr.bf16.mxu0 0
    %4165 = vmatpush2.bf16.msra.mxu0 0
    %4166 = vmatprep.subr.bf16.mxu0 0
    %4167 = vmatpush2.bf16.msra.mxu0 0
    %4168 = vmatprep.subr.bf16.mxu0 0
    %4169 = vmatpush2.bf16.msra.mxu0 0
    %4170 = vmatprep.mubr.bf16.mxu0 0
    %4171 = vmatmul.mubr.bf16.gmra.mxu0 %v3739
    %v4172 = vpop.f32.mrf.mxu0
    %v4173 = vadd.f32 %v4012, %v4172
    %v4174 = vpop.f32.mrf.mxu0
    %v4175 = vpop.f32.mrf.mxu0
    %v4176 = vadd.f32 %v4015, %v4175
    %v4177 = vpop.f32.mrf.mxu0
    %4178 = vmatprep.mubr.bf16.mxu0 0
    %4179 = vmatmul.mubr.bf16.gmra.mxu0 %v3742
    %v4180 = vpop.f32.mrf.mxu0
    %v4181 = vadd.f32 %v4020, %v4180
    %v4182 = vpop.f32.mrf.mxu0
    %v4183 = vpop.f32.mrf.mxu0
    %v4184 = vadd.f32 %v4023, %v4183
    %v4185 = vpop.f32.mrf.mxu0
    %4186 = vmatprep.mubr.bf16.mxu0 0
    %4187 = vmatmul.mubr.bf16.gmra.mxu0 %v3745
    %v4188 = vpop.f32.mrf.mxu0
    %v4189 = vadd.f32 %v4028, %v4188
    %v4190 = vpop.f32.mrf.mxu0
    %v4191 = vpop.f32.mrf.mxu0
    %v4192 = vadd.f32 %v4031, %v4191
    %v4193 = vpop.f32.mrf.mxu0
    %4194 = vmatprep.mubr.bf16.mxu0 0
    %4195 = vmatmul.mubr.bf16.gmra.mxu0 %v3748
    %v4196 = vpop.f32.mrf.mxu0
    %v4197 = vadd.f32 %v4036, %v4196
    %v4198 = vpop.f32.mrf.mxu0
    %v4199 = vpop.f32.mrf.mxu0
    %v4200 = vadd.f32 %v4039, %v4199
    %v4201 = vpop.f32.mrf.mxu0
    %4202 = vmatprep.mubr.bf16.mxu0 0
    %4203 = vmatmul.mubr.bf16.gmra.mxu0 %v3751
    %v4204 = vpop.f32.mrf.mxu0
    %v4205 = vadd.f32 %v4044, %v4204
    %v4206 = vpop.f32.mrf.mxu0
    %v4207 = vpop.f32.mrf.mxu0
    %v4208 = vadd.f32 %v4047, %v4207
    %v4209 = vpop.f32.mrf.mxu0
    %4210 = vmatprep.mubr.bf16.mxu0 0
    %4211 = vmatmul.mubr.bf16.gmra.mxu0 %v3754
    %v4212 = vpop.f32.mrf.mxu0
    %v4213 = vadd.f32 %v4052, %v4212
    %v4214 = vpop.f32.mrf.mxu0
    %v4215 = vpop.f32.mrf.mxu0
    %v4216 = vadd.f32 %v4055, %v4215
    %v4217 = vpop.f32.mrf.mxu0
    %4218 = vmatprep.mubr.bf16.mxu0 0
    %4219 = vmatmul.mubr.bf16.gmra.mxu0 %v3757
    %v4220 = vpop.f32.mrf.mxu0
    %v4221 = vadd.f32 %v4060, %v4220
    %v4222 = vpop.f32.mrf.mxu0
    %v4223 = vpop.f32.mrf.mxu0
    %v4224 = vadd.f32 %v4063, %v4223
    %v4225 = vpop.f32.mrf.mxu0
    %4226 = vmatprep.mubr.bf16.mxu0 0
    %4227 = vmatmul.mubr.bf16.gmra.mxu0 %v3760
    %v4228 = vpop.f32.mrf.mxu0
    %v4229 = vadd.f32 %v4068, %v4228
    %v4230 = vpop.f32.mrf.mxu0
    %v4231 = vpop.f32.mrf.mxu0
    %v4232 = vadd.f32 %v4071, %v4231
    %v4233 = vpop.f32.mrf.mxu0
    %4234 = vmatprep.mubr.bf16.mxu0 0
    %4235 = vmatmul.mubr.bf16.gmra.mxu0 %v3763
    %v4236 = vpop.f32.mrf.mxu0
    %v4237 = vadd.f32 %v4076, %v4236
    %v4238 = vpop.f32.mrf.mxu0
    %v4239 = vpop.f32.mrf.mxu0
    %v4240 = vadd.f32 %v4079, %v4239
    %v4241 = vpop.f32.mrf.mxu0
    %4242 = vmatprep.mubr.bf16.mxu0 0
    %4243 = vmatmul.mubr.bf16.gmra.mxu0 %v3766
    %v4244 = vpop.f32.mrf.mxu0
    %v4245 = vadd.f32 %v4084, %v4244
    %v4246 = vpop.f32.mrf.mxu0
    %v4247 = vpop.f32.mrf.mxu0
    %v4248 = vadd.f32 %v4087, %v4247
    %v4249 = vpop.f32.mrf.mxu0
    %4250 = vmatprep.mubr.bf16.mxu0 0
    %4251 = vmatmul.mubr.bf16.gmra.mxu0 %v3769
    %v4252 = vpop.f32.mrf.mxu0
    %v4253 = vadd.f32 %v4092, %v4252
    %v4254 = vpop.f32.mrf.mxu0
    %v4255 = vpop.f32.mrf.mxu0
    %v4256 = vadd.f32 %v4095, %v4255
    %v4257 = vpop.f32.mrf.mxu0
    %4258 = vmatprep.mubr.bf16.mxu0 0
    %4259 = vmatmul.mubr.bf16.gmra.mxu0 %v3772
    %v4260 = vpop.f32.mrf.mxu0
    %v4261 = vadd.f32 %v4100, %v4260
    %v4262 = vpop.f32.mrf.mxu0
    %v4263 = vpop.f32.mrf.mxu0
    %v4264 = vadd.f32 %v4103, %v4263
    %v4265 = vpop.f32.mrf.mxu0
    %4266 = vmatprep.mubr.bf16.mxu0 0
    %4267 = vmatmul.mubr.bf16.gmra.mxu0 %v3775
    %v4268 = vpop.f32.mrf.mxu0
    %v4269 = vadd.f32 %v4108, %v4268
    %v4270 = vpop.f32.mrf.mxu0
    %v4271 = vpop.f32.mrf.mxu0
    %v4272 = vadd.f32 %v4111, %v4271
    %v4273 = vpop.f32.mrf.mxu0
    %4274 = vmatprep.mubr.bf16.mxu0 0
    %4275 = vmatmul.mubr.bf16.gmra.mxu0 %v3778
    %v4276 = vpop.f32.mrf.mxu0
    %v4277 = vadd.f32 %v4116, %v4276
    %v4278 = vpop.f32.mrf.mxu0
    %v4279 = vpop.f32.mrf.mxu0
    %v4280 = vadd.f32 %v4119, %v4279
    %v4281 = vpop.f32.mrf.mxu0
    %4282 = vmatprep.mubr.bf16.mxu0 0
    %4283 = vmatmul.mubr.bf16.gmra.mxu0 %v3781
    %v4284 = vpop.f32.mrf.mxu0
    %v4285 = vadd.f32 %v4124, %v4284
    %v4286 = vpop.f32.mrf.mxu0
    %v4287 = vpop.f32.mrf.mxu0
    %v4288 = vadd.f32 %v4127, %v4287
    %v4289 = vpop.f32.mrf.mxu0
    %4290 = vmatprep.mubr.bf16.mxu0 0
    %4291 = vmatmul.mubr.bf16.gmra.mxu0 %v3784
    %v4292 = vpop.f32.mrf.mxu0
    %v4293 = vadd.f32 %v4132, %v4292
    %v4294 = vpop.f32.mrf.mxu0
    %v4295 = vpop.f32.mrf.mxu0
    %v4296 = vadd.f32 %v4135, %v4295
    %v4297 = vpop.f32.mrf.mxu0
    %4298 = vdwg.mxu0
    %4299 = vst [vmem:[#allocation5] sm:$0xff] %v4173
    %4300 = vst [vmem:[#allocation5 + $0x8] sm:$0xff] %v4176
    %4301 = vst [vmem:[#allocation5 + $0x10] sm:$0xff] %v4181
    %4302 = vst [vmem:[#allocation5 + $0x18] sm:$0xff] %v4184
    %4303 = vst [vmem:[#allocation5 + $0x20] sm:$0xff] %v4189
    %4304 = vst [vmem:[#allocation5 + $0x28] sm:$0xff] %v4192
    %4305 = vst [vmem:[#allocation5 + $0x30] sm:$0xff] %v4197
    %4306 = vst [vmem:[#allocation5 + $0x38] sm:$0xff] %v4200
    %4307 = vst [vmem:[#allocation5 + $0x40] sm:$0xff] %v4205
    %4308 = vst [vmem:[#allocation5 + $0x48] sm:$0xff] %v4208
    %4309 = vst [vmem:[#allocation5 + $0x50] sm:$0xff] %v4213
    %4310 = vst [vmem:[#allocation5 + $0x58] sm:$0xff] %v4216
    %4311 = vst [vmem:[#allocation5 + $0x60] sm:$0xff] %v4221
    %4312 = vst [vmem:[#allocation5 + $0x68] sm:$0xff] %v4224
    %4313 = vst [vmem:[#allocation5 + $0x70] sm:$0xff] %v4229
    %4314 = vst [vmem:[#allocation5 + $0x78] sm:$0xff] %v4232
    %4315 = vst [vmem:[#allocation5 + $0x80] sm:$0xff] %v4237
    %4316 = vst [vmem:[#allocation5 + $0x88] sm:$0xff] %v4240
    %4317 = vst [vmem:[#allocation5 + $0x90] sm:$0xff] %v4245
    %4318 = vst [vmem:[#allocation5 + $0x98] sm:$0xff] %v4248
    %4319 = vst [vmem:[#allocation5 + $0xa0] sm:$0xff] %v4253
    %4320 = vst [vmem:[#allocation5 + $0xa8] sm:$0xff] %v4256
    %4321 = vst [vmem:[#allocation5 + $0xb0] sm:$0xff] %v4261
    %4322 = vst [vmem:[#allocation5 + $0xb8] sm:$0xff] %v4264
    %4323 = vst [vmem:[#allocation5 + $0xc0] sm:$0xff] %v4269
    %4324 = vst [vmem:[#allocation5 + $0xc8] sm:$0xff] %v4272
    %4325 = vst [vmem:[#allocation5 + $0xd0] sm:$0xff] %v4277
    %4326 = vst [vmem:[#allocation5 + $0xd8] sm:$0xff] %v4280
    %4327 = vst [vmem:[#allocation5 + $0xe0] sm:$0xff] %v4285
    %4328 = vst [vmem:[#allocation5 + $0xe8] sm:$0xff] %v4288
    %4329 = vst [vmem:[#allocation5 + $0xf0] sm:$0xff] %v4293
    %4330 = vst [vmem:[#allocation5 + $0xf8] sm:$0xff] %v4296
    // Predicated region
    $region34: #{tpu_custom_call.1} parent=1 // pred_check
      _
    $region35: #{tpu_custom_call.1} parent=1 // pred_check_branch
      %4332 = sbr.rel (0) target = $region37
    $region36: #{tpu_custom_call.1} parent=1 // pred_region
      %s4334 = ssub.s32 4096, 4096
      %4335 = vsyncadd [#allocation4], %s4334
      %s4336 = sshll.u32 [#allocation5], 4
      %s4337 = int_to_ptr.vmem [resolvable:$true] %s4336
      %4342 = dma.vmem_to_hbm [thread:$0]  %s4337, 4096, %s7, [#allocation4], 128, 128, 8
    $region37: #{tpu_custom_call.1} parent=1 // pred_fallthru
      _
    // Predicated region
    $region38: #{tpu_custom_call.1} parent=1 // pred_check
      _
    $region39: #{tpu_custom_call.1} parent=1 // pred_check_branch
      %4344 = sbr.rel (0) target = $region41
    $region40: #{tpu_custom_call.1} parent=1 // pred_region
      %4345 = dma.done [#allocation4], 4096
    $region41: #{tpu_custom_call.1} parent=1 // pred_fallthru
      _
    %4346 = vsyncpa [#allocation3], 1
    %4347 = vsyncpa [#allocation4], 1

</llo_original>
